<compile_context>
chip_gen: v6e
topology: v6e:2x2x1
jax: 0.10.0
libtpu: 0.0.40
codegen_flags: <defaults>
</compile_context>

<pallas_src>
import functools

import jax
import jax.numpy as jnp
from jax import lax
from jax.experimental import pallas as pl
from jax.experimental.pallas import tpu as pltpu

BN_EPS = 1e-5
LN_EPS_BLOCK = 1e-5   # Block norm_layer eps=1e-05
LN_EPS_FINAL = 1e-6   # self.norm eps=1e-06
LANE = 128


def _rup(n, m=LANE):
    return ((n + m - 1) // m) * m


def _swish(x):
    # x * sigmoid(x) == x / (1 + exp(-x)); kept in f32.
    return x / (1.0 + jnp.exp(-x))


# ==========================================================================
# The fused encoder kernel (one grid step = Bt batch items, all layers).
# ==========================================================================
def _encoder_kernel(hcat_ref,
                    w1, b1, w2, b2,
                    ln1g, ln1b, qw, kw, vw, qb, kb, vb, pw, pb,
                    ln2g, ln2b, f1w, f1b, f2w, f2b,
                    ng, nb, w3, b3, w4h, w4z, b4, w5, b5,
                    o_ref, *, depth, heads, c_real, scale):
    bt, n_tok, _ = hcat_ref.shape
    m = bt * n_tok
    cp = w2.shape[1]                       # padded hidden width (multiple of 128)
    f32 = jnp.float32
    bf16 = jnp.bfloat16

    # LayerNorm over the real `c_real` channels of a zero-padded (.., cp) slab.
    # Padded channels stay exactly 0 because gamma/beta pads are 0.
    cmask = (lax.broadcasted_iota(jnp.int32, (1, cp), 1) < c_real).astype(f32)
    inv_c = 1.0 / c_real

    def ln(x, g, b, eps):
        mu = jnp.sum(x, axis=-1, keepdims=True) * inv_c
        xc = (x - mu) * cmask
        var = jnp.sum(xc * xc, axis=-1, keepdims=True) * inv_c
        return xc * lax.rsqrt(var + eps) * g + b

    def mm(a_bf16, w_bf16):
        return jnp.dot(a_bf16, w_bf16, preferred_element_type=f32)

    # -------- front: conv1 (3x3 -> im2col 1x3 matmul) + conv2 (1x1), BN folded
    hcat = hcat_ref[...].reshape(m, -1).astype(bf16)            # (M, 3*Cin), reused by conv4
    y1 = _swish(mm(hcat, w1[...]) + b1[...])                    # (M, c1p)
    z = _swish(mm(y1.astype(bf16), w2[...]) + b2[...])          # (M, cp) residual stream

    # -------- depth x SVTR Block (prenorm=False): z += attn(LN1 z); z += mlp(LN2 z)
    def block_step(d, z):
        x = ln(z, ln1g[d], ln1b[d], LN_EPS_BLOCK)
        xb = x.astype(bf16)                                     # single cast feeds q,k,v

        def head_step(h, o):
            i = d * heads + h
            qh = mm(xb, qw[i]) + qb[i]                          # (M, dhp)
            kh = mm(xb, kw[i]) + kb[i]
            vh = mm(xb, vw[i]) + vb[i]
            q3 = qh.reshape(bt, n_tok, -1).astype(bf16)
            k3 = kh.reshape(bt, n_tok, -1).astype(bf16)
            v3 = vh.reshape(bt, n_tok, -1).astype(bf16)
            s = lax.dot_general(q3, k3, (((2,), (2,)), ((0,), (0,))),
                                preferred_element_type=f32) * scale      # (bt, n, n)
            s = s - jnp.max(s, axis=-1, keepdims=True)
            p = jnp.exp(s)
            p = p * pl.reciprocal(jnp.sum(p, axis=-1, keepdims=True), approx=False)
            a3 = lax.dot_general(p.astype(bf16), v3, (((2,), (1,)), ((0,), (0,))),
                                 preferred_element_type=f32)             # (bt, n, dhp)
            ah = a3.reshape(m, -1).astype(bf16)
            # fused output projection: sum over heads of ah @ proj_w[rows_h]
            return o + mm(ah, pw[i])

        attn = lax.fori_loop(0, heads, head_step, jnp.zeros((m, cp), f32))
        z = z + attn + pb[d]

        x2 = ln(z, ln2g[d], ln2b[d], LN_EPS_BLOCK)
        h1 = _swish(mm(x2.astype(bf16), f1w[d]) + f1b[d])
        return z + mm(h1.astype(bf16), f2w[d]) + f2b[d]

    z = lax.fori_loop(0, depth, block_step, z)

    # -------- back: final LN -> conv3(1x1) -> concat(h, .) -> conv4(1x3) -> conv1x1
    zn = ln(z, ng[...], nb[...], LN_EPS_FINAL)
    y3 = _swish(mm(zn.astype(bf16), w3[...]) + b3[...])         # (M, cinp)

    # conv4: h-half via the precomputed im2col slab (single matmul, bias-initialised
    # accumulator); z-half via 3 tap matmuls + per-item sublane shifts.
    acc = mm(hcat, w4h[...]) + b4[...]                          # (M, c4p)
    y3b = y3.astype(bf16)
    a0 = mm(y3b, w4z[0]).reshape(bt, n_tok, -1)                 # tap j-1
    a1 = mm(y3b, w4z[1]).reshape(bt, n_tok, -1)                 # tap j
    a2 = mm(y3b, w4z[2]).reshape(bt, n_tok, -1)                 # tap j+1
    zr = jnp.zeros_like(a0[:, :1, :])
    a0 = jnp.concatenate([zr, a0[:, :-1, :]], axis=1)           # out[j] += A0[j-1]
    a2 = jnp.concatenate([a2[:, 1:, :], zr], axis=1)            # out[j] += A2[j+1]
    y4 = _swish(acc + (a0 + a1 + a2).reshape(m, -1))
    y5 = _swish(mm(y4.astype(bf16), w5[...]) + b5[...])         # (M, dims_pad) lane-dense
    o_ref[...] = y5.reshape(bt, n_tok, -1)


# ==========================================================================
# Wrapper: pooling + im2col in plain JAX, one pallas_call for everything else.
# ==========================================================================
def _choose_bt(batch, n_tok, target_rows=512):
    """Largest divisor of `batch` with bt*n_tok <= target_rows, preferring >=2 grid steps."""
    divs = [d for d in range(1, batch + 1) if batch % d == 0]
    cands = [d for d in divs if d * n_tok <= max(target_rows, n_tok)] or [1]
    multi = [d for d in cands if batch // d >= 2]
    return max(multi) if multi else max(cands)


def encoder_with_svtr(x, p, *, depth, heads, hidden, dims, block_batch=None):
    B, cin, H, W = x.shape
    n_tok = W // 2
    assert hidden % heads == 0

    # pool_h_2: mean over H then avg_pool2d kernel (1,2) (floor, drops odd tail col)
    pooled = x[:, :, :, :2 * n_tok].reshape(B, cin, H, n_tok, 2).mean(axis=(2, 4))
    h_tok = pooled.transpose(0, 2, 1)                                   # (B, N, Cin)
    prev = jnp.pad(h_tok, ((0, 0), (1, 0), (0, 0)))[:, :n_tok, :]       # token j-1 (zero at edge)
    nxt = jnp.pad(h_tok, ((0, 0), (0, 1), (0, 0)))[:, 1:, :]            # token j+1 (zero at edge)
    h_cat = jnp.concatenate([prev, h_tok, nxt], axis=-1)                # (B, N, 3*Cin) im2col

    bt = block_batch if block_batch is not None else _choose_bt(B, n_tok)
    assert B % bt == 0, (B, bt)
    grid = (B // bt,)

    k3 = h_cat.shape[-1]
    dp = p["w5"].shape[1]                                               # padded `dims`

    order = ("w1", "b1", "w2", "b2",
             "ln1_g", "ln1_b", "qw", "kw", "vw", "qb", "kb", "vb", "pw", "pb",
             "ln2_g", "ln2_b", "f1w", "f1b", "f2w", "f2b",
             "norm_g", "norm_b", "w3", "b3", "w4h", "w4z", "b4", "w5", "b5")
    w_args = [p[k] for k in order]

    def bcast_spec(a):
        return pl.BlockSpec(a.shape, lambda b, _z=(0,) * a.ndim: _z)

    kernel = functools.partial(
        _encoder_kernel, depth=depth, heads=heads, c_real=hidden,
        scale=float((hidden // heads) ** -0.5))

    out = pl.pallas_call(
        kernel,
        out_shape=jax.ShapeDtypeStruct((B, n_tok, dp), jnp.float32),
        grid=grid,
        in_specs=[pl.BlockSpec((bt, n_tok, k3), lambda b: (b, 0, 0))]
                 + [bcast_spec(a) for a in w_args],
        out_specs=pl.BlockSpec((bt, n_tok, dp), lambda b: (b, 0, 0)),
        compiler_params=pltpu.CompilerParams(
            dimension_semantics=("parallel",),
            vmem_limit_bytes=32 * 1024 * 1024),
    )(h_cat, *w_args)

    # (B, N, dims_pad) -> slice off lane padding -> NCHW (B, dims, 1, N)
    return out[:, :, :dims].transpose(0, 2, 1)[:, :, None, :]


# ==========================================================================
# Parameter prep: fold eval-mode BN, im2col-ify 3x3 convs (middle kernel row,
# exact for the pooled H==1 path), pre-split attention weights per head, and
# zero-pad every channel dim to a multiple of 128 (lane-dense everywhere).
# ==========================================================================
def prepare_params(raw, *, heads):
    in_ch = raw["conv1"]["w"].shape[1]
    hidden = int(raw["conv2"]["w"].shape[0])
    dims = int(raw["conv1x1"]["w"].shape[0])
    depth = len(raw["blocks"])
    mlp_h = raw["blocks"][0]["fc1_w"].shape[1]
    dh = hidden // heads

    cp = _rup(hidden)          # padded token-channel width
    dhp = _rup(dh)             # padded per-head width
    mp = _rup(mlp_h)           # padded MLP width
    c1p = _rup(in_ch // 8)     # padded conv1 / conv4 output channels
    cinp = _rup(in_ch)         # padded conv3 output channels
    dp = _rup(dims)            # padded output channels

    def bn_fold(c):
        scale = c["gamma"] / jnp.sqrt(c["var"] + BN_EPS)
        bias = c["beta"] - c["mean"] * scale
        return scale, bias

    def pad2(a, r, c):
        out = jnp.zeros((r, c), jnp.float32)
        return out.at[:a.shape[0], :a.shape[1]].set(a.astype(jnp.float32))

    def pad_vec(v, width):
        return pad2(v.reshape(1, -1), 1, width)

    def conv1x1_fold(c, rpad, cpad):
        cout, cin_ = c["w"].shape[:2]
        s, b = bn_fold(c)
        w = (c["w"].reshape(cout, cin_) * s[:, None]).T                 # (cin, cout)
        return pad2(w, rpad, cpad).astype(jnp.bfloat16), pad_vec(b, cpad)

    def im2col_rows(w4d, s):
        # (cout, cin, 3, 3) -> (3*cin, cout) using only the middle kernel row (H==1).
        wmid = w4d[:, :, 1, :] * s[:, None, None]                       # (cout, cin, 3)
        return jnp.transpose(wmid, (2, 1, 0)).reshape(-1, w4d.shape[0])

    # conv1 / conv2 (front)
    s1, bb1 = bn_fold(raw["conv1"])
    w1 = pad2(im2col_rows(raw["conv1"]["w"], s1), 3 * in_ch, c1p).astype(jnp.bfloat16)
    b1 = pad_vec(bb1, c1p)
    w2, b2 = conv1x1_fold(raw["conv2"], c1p, cp)

    # conv3 / conv4 / conv1x1 (back); conv4 weight split into h-half and z-half
    w3, b3 = conv1x1_fold(raw["conv3"], cp, cinp)
    s4, bb4 = bn_fold(raw["conv4"])
    wmid4 = raw["conv4"]["w"][:, :, 1, :] * s4[:, None, None]           # (cout4, 2*in_ch, 3)
    cout4 = wmid4.shape[0]
    w4h = pad2(jnp.transpose(wmid4[:, :in_ch, :], (2, 1, 0)).reshape(3 * in_ch, cout4),
               3 * in_ch, c1p).astype(jnp.bfloat16)
    w4z = jnp.transpose(wmid4[:, in_ch:, :], (2, 1, 0))                 # (3, in_ch, cout4)
    w4z = jnp.pad(w4z, ((0, 0), (0, cinp - in_ch), (0, c1p - cout4))).astype(jnp.bfloat16)
    b4 = pad_vec(bb4, c1p)
    w5, b5 = conv1x1_fold(raw["conv1x1"], c1p, dp)

    # SVTR blocks: stack on leading depth / depth*heads axes, head-major q/k/v/proj
    ln1_g, ln1_b, ln2_g, ln2_b, pb_ = [], [], [], [], []
    f1w, f1b, f2w, f2b = [], [], [], []
    qw, kw, vw, qb, kb, vb, pw = [], [], [], [], [], [], []
    for blk in raw["blocks"]:
        ln1_g.append(pad_vec(blk["ln1_g"], cp)); ln1_b.append(pad_vec(blk["ln1_b"], cp))
        ln2_g.append(pad_vec(blk["ln2_g"], cp)); ln2_b.append(pad_vec(blk["ln2_b"], cp))
        pb_.append(pad_vec(blk["proj_b"], cp))
        f1w.append(pad2(blk["fc1_w"], cp, mp)); f1b.append(pad_vec(blk["fc1_b"], mp))
        f2w.append(pad2(blk["fc2_w"], mp, cp)); f2b.append(pad_vec(blk["fc2_b"], cp))
        Wqkv, bqkv, Wp = blk["qkv_w"], blk["qkv_b"], blk["proj_w"]      # (in,out) layouts
        for h in range(heads):
            lo, hi = h * dh, (h + 1) * dh
            qw.append(pad2(Wqkv[:, lo:hi], cp, dhp))
            kw.append(pad2(Wqkv[:, hidden + lo:hidden + hi], cp, dhp))
            vw.append(pad2(Wqkv[:, 2 * hidden + lo:2 * hidden + hi], cp, dhp))
            qb.append(pad_vec(bqkv[lo:hi], dhp))
            kb.append(pad_vec(bqkv[hidden + lo:hidden + hi], dhp))
            vb.append(pad_vec(bqkv[2 * hidden + lo:2 * hidden + hi], dhp))
            pw.append(pad2(Wp[lo:hi, :], dhp, cp))

    weights = dict(
        w1=w1, b1=b1, w2=w2, b2=b2,
        ln1_g=jnp.stack(ln1_g), ln1_b=jnp.stack(ln1_b),
        qw=jnp.stack(qw).astype(jnp.bfloat16),
        kw=jnp.stack(kw).astype(jnp.bfloat16),
        vw=jnp.stack(vw).astype(jnp.bfloat16),
        qb=jnp.stack(qb), kb=jnp.stack(kb), vb=jnp.stack(vb),
        pw=jnp.stack(pw).astype(jnp.bfloat16), pb=jnp.stack(pb_),
        ln2_g=jnp.stack(ln2_g), ln2_b=jnp.stack(ln2_b),
        f1w=jnp.stack(f1w).astype(jnp.bfloat16), f1b=jnp.stack(f1b),
        f2w=jnp.stack(f2w).astype(jnp.bfloat16), f2b=jnp.stack(f2b),
        norm_g=pad_vec(raw["norm_g"], cp), norm_b=pad_vec(raw["norm_b"], cp),
        w3=w3, b3=b3, w4h=w4h, w4z=w4z, b4=b4, w5=w5, b5=b5,
    )
    meta = dict(depth=depth, heads=heads, hidden=hidden, dims=dims)
    return weights, meta


# ==========================================================================
# Deterministic synthetic parameters (mirrors the torch module's shapes).
# ==========================================================================
def init_params(key, in_ch, dims, depth, hidden, mlp_ratio):
    keys = iter(jax.random.split(key, 128))

    def nrm(shape, std=0.02):
        return std * jax.random.normal(next(keys), shape, jnp.float32)

    def conv_bn(cout, cin, k):
        return dict(
            w=nrm((cout, cin, k, k), std=0.1),
            gamma=1.0 + 0.05 * jax.random.normal(next(keys), (cout,), jnp.float32),
            beta=0.05 * jax.random.normal(next(keys), (cout,), jnp.float32),
            mean=0.05 * jax.random.normal(next(keys), (cout,), jnp.float32),
            var=1.0 + 0.1 * jnp.abs(jax.random.normal(next(keys), (cout,), jnp.float32)),
        )

    mlp_h = int(hidden * mlp_ratio)
    p = {
        "conv1": conv_bn(in_ch // 8, in_ch, 3),
        "conv2": conv_bn(hidden, in_ch // 8, 1),
        "blocks": [],
        "norm_g": jnp.ones((hidden,), jnp.float32),
        "norm_b": jnp.zeros((hidden,), jnp.float32),
        "conv3": conv_bn(in_ch, hidden, 1),
        "conv4": conv_bn(in_ch // 8, 2 * in_ch, 3),
        "conv1x1": conv_bn(dims, in_ch // 8, 1),
    }
    for _ in range(depth):
        p["blocks"].append(dict(
            ln1_g=jnp.ones((hidden,), jnp.float32),
            ln1_b=jnp.zeros((hidden,), jnp.float32),
            qkv_w=nrm((hidden, 3 * hidden)), qkv_b=nrm((3 * hidden,)),
            proj_w=nrm((hidden, hidden)), proj_b=nrm((hidden,)),
            ln2_g=jnp.ones((hidden,), jnp.float32),
            ln2_b=jnp.zeros((hidden,), jnp.float32),
            fc1_w=nrm((hidden, mlp_h)), fc1_b=nrm((mlp_h,)),
            fc2_w=nrm((mlp_h, hidden)), fc2_b=nrm((hidden,)),
        ))
    return p


# ==========================================================================
if __name__ == "__main__":
    # Small shapes consistent with the module (in_channels divisible by 8).
    B, in_ch, H, W = 8, 16, 8, 32
    dims, depth, hidden, heads, mlp_ratio = 32, 2, 64, 8, 2.0

    key = jax.random.PRNGKey(0)
    kx, kp = jax.random.split(key)
    x = jax.random.normal(kx, (B, in_ch, H, W), jnp.float32)
    raw = init_params(kp, in_ch, dims, depth, hidden, mlp_ratio)
    weights, meta = prepare_params(raw, heads=heads)

    fwd = jax.jit(functools.partial(encoder_with_svtr, **meta))
    out = jax.block_until_ready(fwd(x, weights))

    assert out.shape == (B, dims, 1, W // 2), out.shape
    assert bool(jnp.all(jnp.isfinite(out)))
    print("KERNEL_OK")
</pallas_src>

<mosaic_0001>
module attributes {stable_mosaic.version = 11 : i64} {
  func.func @_encoder_kernel(%arg0: i32, %arg1: memref<4x16x48xf32, #tpu.memory_space<vmem>>, %arg2: memref<48x128xbf16, #tpu.memory_space<vmem>>, %arg3: memref<1x128xf32, #tpu.memory_space<vmem>>, %arg4: memref<128x128xbf16, #tpu.memory_space<vmem>>, %arg5: memref<1x128xf32, #tpu.memory_space<vmem>>, %arg6: memref<2x1x128xf32, #tpu.memory_space<vmem>>, %arg7: memref<2x1x128xf32, #tpu.memory_space<vmem>>, %arg8: memref<16x128x128xbf16, #tpu.memory_space<vmem>>, %arg9: memref<16x128x128xbf16, #tpu.memory_space<vmem>>, %arg10: memref<16x128x128xbf16, #tpu.memory_space<vmem>>, %arg11: memref<16x1x128xf32, #tpu.memory_space<vmem>>, %arg12: memref<16x1x128xf32, #tpu.memory_space<vmem>>, %arg13: memref<16x1x128xf32, #tpu.memory_space<vmem>>, %arg14: memref<16x128x128xbf16, #tpu.memory_space<vmem>>, %arg15: memref<2x1x128xf32, #tpu.memory_space<vmem>>, %arg16: memref<2x1x128xf32, #tpu.memory_space<vmem>>, %arg17: memref<2x1x128xf32, #tpu.memory_space<vmem>>, %arg18: memref<2x128x128xbf16, #tpu.memory_space<vmem>>, %arg19: memref<2x1x128xf32, #tpu.memory_space<vmem>>, %arg20: memref<2x128x128xbf16, #tpu.memory_space<vmem>>, %arg21: memref<2x1x128xf32, #tpu.memory_space<vmem>>, %arg22: memref<1x128xf32, #tpu.memory_space<vmem>>, %arg23: memref<1x128xf32, #tpu.memory_space<vmem>>, %arg24: memref<128x128xbf16, #tpu.memory_space<vmem>>, %arg25: memref<1x128xf32, #tpu.memory_space<vmem>>, %arg26: memref<48x128xbf16, #tpu.memory_space<vmem>>, %arg27: memref<3x128x128xbf16, #tpu.memory_space<vmem>>, %arg28: memref<1x128xf32, #tpu.memory_space<vmem>>, %arg29: memref<128x128xbf16, #tpu.memory_space<vmem>>, %arg30: memref<1x128xf32, #tpu.memory_space<vmem>>, %arg31: memref<4x16x128xf32, #tpu.memory_space<vmem>>) attributes {dimension_semantics = [#tpu.dimension_semantics<parallel>], iteration_bounds = array<i64: 2>, scalar_prefetch = 0 : i64, scratch_operands = 0 : i64, tpu.core_type = #tpu.core_type<tc>, window_params = [{transform_indices = @transform_0, window_bounds = array<i64: 4, 16, 48>}, {pipeline_mode = #tpu.pipeline_mode<synchronous>, transform_indices = @transform_1, window_bounds = array<i64: 48, 128>}, {pipeline_mode = #tpu.pipeline_mode<synchronous>, transform_indices = @transform_2, window_bounds = array<i64: 1, 128>}, {pipeline_mode = #tpu.pipeline_mode<synchronous>, transform_indices = @transform_3, window_bounds = array<i64: 128, 128>}, {pipeline_mode = #tpu.pipeline_mode<synchronous>, transform_indices = @transform_4, window_bounds = array<i64: 1, 128>}, {pipeline_mode = #tpu.pipeline_mode<synchronous>, transform_indices = @transform_5, window_bounds = array<i64: 2, 1, 128>}, {pipeline_mode = #tpu.pipeline_mode<synchronous>, transform_indices = @transform_6, window_bounds = array<i64: 2, 1, 128>}, {pipeline_mode = #tpu.pipeline_mode<synchronous>, transform_indices = @transform_7, window_bounds = array<i64: 16, 128, 128>}, {pipeline_mode = #tpu.pipeline_mode<synchronous>, transform_indices = @transform_8, window_bounds = array<i64: 16, 128, 128>}, {pipeline_mode = #tpu.pipeline_mode<synchronous>, transform_indices = @transform_9, window_bounds = array<i64: 16, 128, 128>}, {pipeline_mode = #tpu.pipeline_mode<synchronous>, transform_indices = @transform_10, window_bounds = array<i64: 16, 1, 128>}, {pipeline_mode = #tpu.pipeline_mode<synchronous>, transform_indices = @transform_11, window_bounds = array<i64: 16, 1, 128>}, {pipeline_mode = #tpu.pipeline_mode<synchronous>, transform_indices = @transform_12, window_bounds = array<i64: 16, 1, 128>}, {pipeline_mode = #tpu.pipeline_mode<synchronous>, transform_indices = @transform_13, window_bounds = array<i64: 16, 128, 128>}, {pipeline_mode = #tpu.pipeline_mode<synchronous>, transform_indices = @transform_14, window_bounds = array<i64: 2, 1, 128>}, {pipeline_mode = #tpu.pipeline_mode<synchronous>, transform_indices = @transform_15, window_bounds = array<i64: 2, 1, 128>}, {pipeline_mode = #tpu.pipeline_mode<synchronous>, transform_indices = @transform_16, window_bounds = array<i64: 2, 1, 128>}, {pipeline_mode = #tpu.pipeline_mode<synchronous>, transform_indices = @transform_17, window_bounds = array<i64: 2, 128, 128>}, {pipeline_mode = #tpu.pipeline_mode<synchronous>, transform_indices = @transform_18, window_bounds = array<i64: 2, 1, 128>}, {pipeline_mode = #tpu.pipeline_mode<synchronous>, transform_indices = @transform_19, window_bounds = array<i64: 2, 128, 128>}, {pipeline_mode = #tpu.pipeline_mode<synchronous>, transform_indices = @transform_20, window_bounds = array<i64: 2, 1, 128>}, {pipeline_mode = #tpu.pipeline_mode<synchronous>, transform_indices = @transform_21, window_bounds = array<i64: 1, 128>}, {pipeline_mode = #tpu.pipeline_mode<synchronous>, transform_indices = @transform_22, window_bounds = array<i64: 1, 128>}, {pipeline_mode = #tpu.pipeline_mode<synchronous>, transform_indices = @transform_23, window_bounds = array<i64: 128, 128>}, {pipeline_mode = #tpu.pipeline_mode<synchronous>, transform_indices = @transform_24, window_bounds = array<i64: 1, 128>}, {pipeline_mode = #tpu.pipeline_mode<synchronous>, transform_indices = @transform_25, window_bounds = array<i64: 48, 128>}, {pipeline_mode = #tpu.pipeline_mode<synchronous>, transform_indices = @transform_26, window_bounds = array<i64: 3, 128, 128>}, {pipeline_mode = #tpu.pipeline_mode<synchronous>, transform_indices = @transform_27, window_bounds = array<i64: 1, 128>}, {pipeline_mode = #tpu.pipeline_mode<synchronous>, transform_indices = @transform_28, window_bounds = array<i64: 128, 128>}, {pipeline_mode = #tpu.pipeline_mode<synchronous>, transform_indices = @transform_29, window_bounds = array<i64: 1, 128>}, {transform_indices = @transform_30, window_bounds = array<i64: 4, 16, 128>}]} {
    %0 = tpu.iota {dimensions = array<i32: 1>} : vector<1x128xi32>
    %c64_i32 = arith.constant 64 : i32
    %1 = vector.broadcast %c64_i32 : i32 to vector<1x128xi32>
    %2 = arith.cmpi slt, %0, %1 : vector<1x128xi32>
    %3 = arith.extui %2 : vector<1x128xi1> to vector<1x128xi32>
    %4 = arith.sitofp %3 : vector<1x128xi32> to vector<1x128xf32>
    %c0 = arith.constant 0 : index
    %c0_0 = arith.constant 0 : index
    %c0_1 = arith.constant 0 : index
    %5 = vector.load %arg1[%c0, %c0_0, %c0_1] : memref<4x16x48xf32, #tpu.memory_space<vmem>>, vector<4x16x48xf32>
    %6 = vector.shape_cast %5 : vector<4x16x48xf32> to vector<64x48xf32>
    %7 = arith.truncf %6 : vector<64x48xf32> to vector<64x48xbf16>
    %c0_2 = arith.constant 0 : index
    %c0_3 = arith.constant 0 : index
    %8 = vector.load %arg2[%c0_2, %c0_3] : memref<48x128xbf16, #tpu.memory_space<vmem>>, vector<48x128xbf16>
    %cst = arith.constant dense<0.000000e+00> : vector<64x128xf32>
    %9 = tpu.matmul %7, %8, %cst {dimension_numbers = #tpu.dot_dimension_numbers<[1], [0], [0], [1], [0, 0, 1, 1], [], []>} : vector<64x48xbf16>, vector<48x128xbf16>, vector<64x128xf32> -> vector<64x128xf32>
    %c0_4 = arith.constant 0 : index
    %c0_5 = arith.constant 0 : index
    %10 = vector.load %arg3[%c0_4, %c0_5] : memref<1x128xf32, #tpu.memory_space<vmem>>, vector<1x128xf32>
    %11 = vector.broadcast %10 : vector<1x128xf32> to vector<64x128xf32>
    %12 = arith.addf %9, %11 : vector<64x128xf32>
    %cst_6 = arith.constant 0.000000e+00 : f32
    %13 = vector.broadcast %cst_6 : f32 to vector<64x128xf32>
    %14 = arith.subf %13, %12 : vector<64x128xf32>
    %15 = math.exp %14 : vector<64x128xf32>
    %cst_7 = arith.constant 1.000000e+00 : f32
    %16 = vector.broadcast %cst_7 : f32 to vector<64x128xf32>
    %17 = arith.addf %16, %15 : vector<64x128xf32>
    %18 = arith.divf %12, %17 : vector<64x128xf32>
    %19 = arith.truncf %18 : vector<64x128xf32> to vector<64x128xbf16>
    %c0_8 = arith.constant 0 : index
    %c0_9 = arith.constant 0 : index
    %20 = vector.load %arg4[%c0_8, %c0_9] : memref<128x128xbf16, #tpu.memory_space<vmem>>, vector<128x128xbf16>
    %cst_10 = arith.constant dense<0.000000e+00> : vector<64x128xf32>
    %21 = tpu.matmul %19, %20, %cst_10 {dimension_numbers = #tpu.dot_dimension_numbers<[1], [0], [0], [1], [0, 0, 1, 1], [], []>} : vector<64x128xbf16>, vector<128x128xbf16>, vector<64x128xf32> -> vector<64x128xf32>
    %c0_11 = arith.constant 0 : index
    %c0_12 = arith.constant 0 : index
    %22 = vector.load %arg5[%c0_11, %c0_12] : memref<1x128xf32, #tpu.memory_space<vmem>>, vector<1x128xf32>
    %23 = vector.broadcast %22 : vector<1x128xf32> to vector<64x128xf32>
    %24 = arith.addf %21, %23 : vector<64x128xf32>
    %cst_13 = arith.constant 0.000000e+00 : f32
    %25 = vector.broadcast %cst_13 : f32 to vector<64x128xf32>
    %26 = arith.subf %25, %24 : vector<64x128xf32>
    %27 = math.exp %26 : vector<64x128xf32>
    %cst_14 = arith.constant 1.000000e+00 : f32
    %28 = vector.broadcast %cst_14 : f32 to vector<64x128xf32>
    %29 = arith.addf %28, %27 : vector<64x128xf32>
    %30 = arith.divf %24, %29 : vector<64x128xf32>
    %c0_i32 = arith.constant 0 : i32
    %c2_i32 = arith.constant 2 : i32
    %31 = arith.addi %c0_i32, %c2_i32 : i32
    %c1_i32 = arith.constant 1 : i32
    %32 = scf.for %arg32 = %c0_i32 to %31 step %c1_i32 iter_args(%arg33 = %30) -> (vector<64x128xf32>)  : i32 {
      %116 = arith.index_cast %arg32 : i32 to index
      %c0_60 = arith.constant 0 : index
      %c0_61 = arith.constant 0 : index
      %117 = vector.load %arg6[%116, %c0_60, %c0_61] : memref<2x1x128xf32, #tpu.memory_space<vmem>>, vector<1x1x128xf32>
      %118 = vector.shape_cast %117 : vector<1x1x128xf32> to vector<1x128xf32>
      %119 = arith.index_cast %arg32 : i32 to index
      %c0_62 = arith.constant 0 : index
      %c0_63 = arith.constant 0 : index
      %120 = vector.load %arg7[%119, %c0_62, %c0_63] : memref<2x1x128xf32, #tpu.memory_space<vmem>>, vector<1x1x128xf32>
      %121 = vector.shape_cast %120 : vector<1x1x128xf32> to vector<1x128xf32>
      %cst_64 = arith.constant dense<0.000000e+00> : vector<64xf32>
      %122 = vector.multi_reduction <add>, %arg33, %cst_64 [1] : vector<64x128xf32> to vector<64xf32>
      %123 = vector.shape_cast %122 : vector<64xf32> to vector<64x1xf32>
      %cst_65 = arith.constant 1.562500e-02 : f32
      %124 = vector.broadcast %cst_65 : f32 to vector<64x1xf32>
      %125 = arith.mulf %123, %124 : vector<64x1xf32>
      %126 = vector.broadcast %125 : vector<64x1xf32> to vector<64x128xf32>
      %127 = arith.subf %arg33, %126 : vector<64x128xf32>
      %128 = vector.broadcast %4 : vector<1x128xf32> to vector<64x128xf32>
      %129 = arith.mulf %127, %128 : vector<64x128xf32>
      %130 = arith.mulf %129, %129 : vector<64x128xf32>
      %cst_66 = arith.constant dense<0.000000e+00> : vector<64xf32>
      %131 = vector.multi_reduction <add>, %130, %cst_66 [1] : vector<64x128xf32> to vector<64xf32>
      %132 = vector.shape_cast %131 : vector<64xf32> to vector<64x1xf32>
      %cst_67 = arith.constant 1.562500e-02 : f32
      %133 = vector.broadcast %cst_67 : f32 to vector<64x1xf32>
      %134 = arith.mulf %132, %133 : vector<64x1xf32>
      %cst_68 = arith.constant 9.99999974E-6 : f32
      %135 = vector.broadcast %cst_68 : f32 to vector<64x1xf32>
      %136 = arith.addf %134, %135 : vector<64x1xf32>
      %137 = math.rsqrt %136 : vector<64x1xf32>
      %138 = vector.broadcast %137 : vector<64x1xf32> to vector<64x128xf32>
      %139 = arith.mulf %129, %138 : vector<64x128xf32>
      %140 = vector.broadcast %118 : vector<1x128xf32> to vector<64x128xf32>
      %141 = arith.mulf %139, %140 : vector<64x128xf32>
      %142 = vector.broadcast %121 : vector<1x128xf32> to vector<64x128xf32>
      %143 = arith.addf %141, %142 : vector<64x128xf32>
      %144 = arith.truncf %143 : vector<64x128xf32> to vector<64x128xbf16>
      %cst_69 = arith.constant 0.000000e+00 : f32
      %145 = vector.broadcast %cst_69 : f32 to vector<64x128xf32>
      %c0_i32_70 = arith.constant 0 : i32
      %c8_i32 = arith.constant 8 : i32
      %146 = arith.addi %c0_i32_70, %c8_i32 : i32
      %c1_i32_71 = arith.constant 1 : i32
      %147 = scf.for %arg34 = %c0_i32_70 to %146 step %c1_i32_71 iter_args(%arg35 = %145) -> (vector<64x128xf32>)  : i32 {
        %c8_i32_96 = arith.constant 8 : i32
        %209 = arith.muli %arg32, %c8_i32_96 : i32
        %210 = arith.addi %209, %arg34 : i32
        %211 = arith.index_cast %210 : i32 to index
        %c0_97 = arith.constant 0 : index
        %c0_98 = arith.constant 0 : index
        %212 = vector.load %arg8[%211, %c0_97, %c0_98] : memref<16x128x128xbf16, #tpu.memory_space<vmem>>, vector<1x128x128xbf16>
        %213 = vector.shape_cast %212 : vector<1x128x128xbf16> to vector<128x128xbf16>
        %cst_99 = arith.constant dense<0.000000e+00> : vector<64x128xf32>
        %214 = tpu.matmul %144, %213, %cst_99 {dimension_numbers = #tpu.dot_dimension_numbers<[1], [0], [0], [1], [0, 0, 1, 1], [], []>} : vector<64x128xbf16>, vector<128x128xbf16>, vector<64x128xf32> -> vector<64x128xf32>
        %215 = arith.index_cast %210 : i32 to index
        %c0_100 = arith.constant 0 : index
        %c0_101 = arith.constant 0 : index
        %216 = vector.load %arg11[%215, %c0_100, %c0_101] : memref<16x1x128xf32, #tpu.memory_space<vmem>>, vector<1x1x128xf32>
        %217 = vector.shape_cast %216 : vector<1x1x128xf32> to vector<1x128xf32>
        %218 = vector.broadcast %217 : vector<1x128xf32> to vector<64x128xf32>
        %219 = arith.addf %214, %218 : vector<64x128xf32>
        %220 = arith.index_cast %210 : i32 to index
        %c0_102 = arith.constant 0 : index
        %c0_103 = arith.constant 0 : index
        %221 = vector.load %arg9[%220, %c0_102, %c0_103] : memref<16x128x128xbf16, #tpu.memory_space<vmem>>, vector<1x128x128xbf16>
        %222 = vector.shape_cast %221 : vector<1x128x128xbf16> to vector<128x128xbf16>
        %cst_104 = arith.constant dense<0.000000e+00> : vector<64x128xf32>
        %223 = tpu.matmul %144, %222, %cst_104 {dimension_numbers = #tpu.dot_dimension_numbers<[1], [0], [0], [1], [0, 0, 1, 1], [], []>} : vector<64x128xbf16>, vector<128x128xbf16>, vector<64x128xf32> -> vector<64x128xf32>
        %224 = arith.index_cast %210 : i32 to index
        %c0_105 = arith.constant 0 : index
        %c0_106 = arith.constant 0 : index
        %225 = vector.load %arg12[%224, %c0_105, %c0_106] : memref<16x1x128xf32, #tpu.memory_space<vmem>>, vector<1x1x128xf32>
        %226 = vector.shape_cast %225 : vector<1x1x128xf32> to vector<1x128xf32>
        %227 = vector.broadcast %226 : vector<1x128xf32> to vector<64x128xf32>
        %228 = arith.addf %223, %227 : vector<64x128xf32>
        %229 = arith.index_cast %210 : i32 to index
        %c0_107 = arith.constant 0 : index
        %c0_108 = arith.constant 0 : index
        %230 = vector.load %arg10[%229, %c0_107, %c0_108] : memref<16x128x128xbf16, #tpu.memory_space<vmem>>, vector<1x128x128xbf16>
        %231 = vector.shape_cast %230 : vector<1x128x128xbf16> to vector<128x128xbf16>
        %cst_109 = arith.constant dense<0.000000e+00> : vector<64x128xf32>
        %232 = tpu.matmul %144, %231, %cst_109 {dimension_numbers = #tpu.dot_dimension_numbers<[1], [0], [0], [1], [0, 0, 1, 1], [], []>} : vector<64x128xbf16>, vector<128x128xbf16>, vector<64x128xf32> -> vector<64x128xf32>
        %233 = arith.index_cast %210 : i32 to index
        %c0_110 = arith.constant 0 : index
        %c0_111 = arith.constant 0 : index
        %234 = vector.load %arg13[%233, %c0_110, %c0_111] : memref<16x1x128xf32, #tpu.memory_space<vmem>>, vector<1x1x128xf32>
        %235 = vector.shape_cast %234 : vector<1x1x128xf32> to vector<1x128xf32>
        %236 = vector.broadcast %235 : vector<1x128xf32> to vector<64x128xf32>
        %237 = arith.addf %232, %236 : vector<64x128xf32>
        %238 = vector.shape_cast %219 : vector<64x128xf32> to vector<4x16x128xf32>
        %239 = arith.truncf %238 : vector<4x16x128xf32> to vector<4x16x128xbf16>
        %240 = vector.shape_cast %228 : vector<64x128xf32> to vector<4x16x128xf32>
        %241 = arith.truncf %240 : vector<4x16x128xf32> to vector<4x16x128xbf16>
        %242 = vector.shape_cast %237 : vector<64x128xf32> to vector<4x16x128xf32>
        %243 = arith.truncf %242 : vector<4x16x128xf32> to vector<4x16x128xbf16>
        %cst_112 = arith.constant dense<0.000000e+00> : vector<4x16x16xf32>
        %244 = tpu.matmul %239, %241, %cst_112 {dimension_numbers = #tpu.dot_dimension_numbers<[2], [2], [1], [1], [0, 0, 0, 1, 1, 1], [0], [0]>} : vector<4x16x128xbf16>, vector<4x16x128xbf16>, vector<4x16x16xf32> -> vector<4x16x16xf32>
        %cst_113 = arith.constant 0.353553385 : f32
        %245 = vector.broadcast %cst_113 : f32 to vector<4x16x16xf32>
        %246 = arith.mulf %244, %245 : vector<4x16x16xf32>
        %cst_114 = arith.constant dense<0xFF800000> : vector<4x16xf32>
        %247 = vector.multi_reduction <maximumf>, %246, %cst_114 [2] : vector<4x16x16xf32> to vector<4x16xf32>
        %248 = vector.shape_cast %247 : vector<4x16xf32> to vector<4x16x1xf32>
        %249 = vector.broadcast %248 : vector<4x16x1xf32> to vector<4x16x16xf32>
        %250 = arith.subf %246, %249 : vector<4x16x16xf32>
        %251 = math.exp %250 : vector<4x16x16xf32>
        %cst_115 = arith.constant dense<0.000000e+00> : vector<4x16xf32>
        %252 = vector.multi_reduction <add>, %251, %cst_115 [2] : vector<4x16x16xf32> to vector<4x16xf32>
        %253 = vector.shape_cast %252 : vector<4x16xf32> to vector<4x16x1xf32>
        %254 = tpu.reciprocal %253 : vector<4x16x1xf32> -> vector<4x16x1xf32>
        %255 = vector.broadcast %254 : vector<4x16x1xf32> to vector<4x16x16xf32>
        %256 = arith.mulf %251, %255 : vector<4x16x16xf32>
        %257 = arith.truncf %256 : vector<4x16x16xf32> to vector<4x16x16xbf16>
        %cst_116 = arith.constant dense<0.000000e+00> : vector<4x16x128xf32>
        %258 = tpu.matmul %257, %243, %cst_116 {dimension_numbers = #tpu.dot_dimension_numbers<[2], [1], [1], [2], [0, 0, 0, 1, 1, 2], [0], [0]>} : vector<4x16x16xbf16>, vector<4x16x128xbf16>, vector<4x16x128xf32> -> vector<4x16x128xf32>
        %259 = vector.shape_cast %258 : vector<4x16x128xf32> to vector<64x128xf32>
        %260 = arith.truncf %259 : vector<64x128xf32> to vector<64x128xbf16>
        %261 = arith.index_cast %210 : i32 to index
        %c0_117 = arith.constant 0 : index
        %c0_118 = arith.constant 0 : index
        %262 = vector.load %arg14[%261, %c0_117, %c0_118] : memref<16x128x128xbf16, #tpu.memory_space<vmem>>, vector<1x128x128xbf16>
        %263 = vector.shape_cast %262 : vector<1x128x128xbf16> to vector<128x128xbf16>
        %cst_119 = arith.constant dense<0.000000e+00> : vector<64x128xf32>
        %264 = tpu.matmul %260, %263, %cst_119 {dimension_numbers = #tpu.dot_dimension_numbers<[1], [0], [0], [1], [0, 0, 1, 1], [], []>} : vector<64x128xbf16>, vector<128x128xbf16>, vector<64x128xf32> -> vector<64x128xf32>
        %265 = arith.addf %arg35, %264 : vector<64x128xf32>
        scf.yield %265 : vector<64x128xf32>
      }
      %c8_i32_72 = arith.constant 8 : i32
      %148 = arith.addf %arg33, %147 : vector<64x128xf32>
      %149 = arith.index_cast %arg32 : i32 to index
      %c0_73 = arith.constant 0 : index
      %c0_74 = arith.constant 0 : index
      %150 = vector.load %arg15[%149, %c0_73, %c0_74] : memref<2x1x128xf32, #tpu.memory_space<vmem>>, vector<1x1x128xf32>
      %151 = vector.shape_cast %150 : vector<1x1x128xf32> to vector<1x128xf32>
      %152 = vector.broadcast %151 : vector<1x128xf32> to vector<64x128xf32>
      %153 = arith.addf %148, %152 : vector<64x128xf32>
      %154 = arith.index_cast %arg32 : i32 to index
      %c0_75 = arith.constant 0 : index
      %c0_76 = arith.constant 0 : index
      %155 = vector.load %arg16[%154, %c0_75, %c0_76] : memref<2x1x128xf32, #tpu.memory_space<vmem>>, vector<1x1x128xf32>
      %156 = vector.shape_cast %155 : vector<1x1x128xf32> to vector<1x128xf32>
      %157 = arith.index_cast %arg32 : i32 to index
      %c0_77 = arith.constant 0 : index
      %c0_78 = arith.constant 0 : index
      %158 = vector.load %arg17[%157, %c0_77, %c0_78] : memref<2x1x128xf32, #tpu.memory_space<vmem>>, vector<1x1x128xf32>
      %159 = vector.shape_cast %158 : vector<1x1x128xf32> to vector<1x128xf32>
      %cst_79 = arith.constant dense<0.000000e+00> : vector<64xf32>
      %160 = vector.multi_reduction <add>, %153, %cst_79 [1] : vector<64x128xf32> to vector<64xf32>
      %161 = vector.shape_cast %160 : vector<64xf32> to vector<64x1xf32>
      %cst_80 = arith.constant 1.562500e-02 : f32
      %162 = vector.broadcast %cst_80 : f32 to vector<64x1xf32>
      %163 = arith.mulf %161, %162 : vector<64x1xf32>
      %164 = vector.broadcast %163 : vector<64x1xf32> to vector<64x128xf32>
      %165 = arith.subf %153, %164 : vector<64x128xf32>
      %166 = vector.broadcast %4 : vector<1x128xf32> to vector<64x128xf32>
      %167 = arith.mulf %165, %166 : vector<64x128xf32>
      %168 = arith.mulf %167, %167 : vector<64x128xf32>
      %cst_81 = arith.constant dense<0.000000e+00> : vector<64xf32>
      %169 = vector.multi_reduction <add>, %168, %cst_81 [1] : vector<64x128xf32> to vector<64xf32>
      %170 = vector.shape_cast %169 : vector<64xf32> to vector<64x1xf32>
      %cst_82 = arith.constant 1.562500e-02 : f32
      %171 = vector.broadcast %cst_82 : f32 to vector<64x1xf32>
      %172 = arith.mulf %170, %171 : vector<64x1xf32>
      %cst_83 = arith.constant 9.99999974E-6 : f32
      %173 = vector.broadcast %cst_83 : f32 to vector<64x1xf32>
      %174 = arith.addf %172, %173 : vector<64x1xf32>
      %175 = math.rsqrt %174 : vector<64x1xf32>
      %176 = vector.broadcast %175 : vector<64x1xf32> to vector<64x128xf32>
      %177 = arith.mulf %167, %176 : vector<64x128xf32>
      %178 = vector.broadcast %156 : vector<1x128xf32> to vector<64x128xf32>
      %179 = arith.mulf %177, %178 : vector<64x128xf32>
      %180 = vector.broadcast %159 : vector<1x128xf32> to vector<64x128xf32>
      %181 = arith.addf %179, %180 : vector<64x128xf32>
      %182 = arith.truncf %181 : vector<64x128xf32> to vector<64x128xbf16>
      %183 = arith.index_cast %arg32 : i32 to index
      %c0_84 = arith.constant 0 : index
      %c0_85 = arith.constant 0 : index
      %184 = vector.load %arg18[%183, %c0_84, %c0_85] : memref<2x128x128xbf16, #tpu.memory_space<vmem>>, vector<1x128x128xbf16>
      %185 = vector.shape_cast %184 : vector<1x128x128xbf16> to vector<128x128xbf16>
      %cst_86 = arith.constant dense<0.000000e+00> : vector<64x128xf32>
      %186 = tpu.matmul %182, %185, %cst_86 {dimension_numbers = #tpu.dot_dimension_numbers<[1], [0], [0], [1], [0, 0, 1, 1], [], []>} : vector<64x128xbf16>, vector<128x128xbf16>, vector<64x128xf32> -> vector<64x128xf32>
      %187 = arith.index_cast %arg32 : i32 to index
      %c0_87 = arith.constant 0 : index
      %c0_88 = arith.constant 0 : index
      %188 = vector.load %arg19[%187, %c0_87, %c0_88] : memref<2x1x128xf32, #tpu.memory_space<vmem>>, vector<1x1x128xf32>
      %189 = vector.shape_cast %188 : vector<1x1x128xf32> to vector<1x128xf32>
      %190 = vector.broadcast %189 : vector<1x128xf32> to vector<64x128xf32>
      %191 = arith.addf %186, %190 : vector<64x128xf32>
      %cst_89 = arith.constant 0.000000e+00 : f32
      %192 = vector.broadcast %cst_89 : f32 to vector<64x128xf32>
      %193 = arith.subf %192, %191 : vector<64x128xf32>
      %194 = math.exp %193 : vector<64x128xf32>
      %cst_90 = arith.constant 1.000000e+00 : f32
      %195 = vector.broadcast %cst_90 : f32 to vector<64x128xf32>
      %196 = arith.addf %195, %194 : vector<64x128xf32>
      %197 = arith.divf %191, %196 : vector<64x128xf32>
      %198 = arith.truncf %197 : vector<64x128xf32> to vector<64x128xbf16>
      %199 = arith.index_cast %arg32 : i32 to index
      %c0_91 = arith.constant 0 : index
      %c0_92 = arith.constant 0 : index
      %200 = vector.load %arg20[%199, %c0_91, %c0_92] : memref<2x128x128xbf16, #tpu.memory_space<vmem>>, vector<1x128x128xbf16>
      %201 = vector.shape_cast %200 : vector<1x128x128xbf16> to vector<128x128xbf16>
      %cst_93 = arith.constant dense<0.000000e+00> : vector<64x128xf32>
      %202 = tpu.matmul %198, %201, %cst_93 {dimension_numbers = #tpu.dot_dimension_numbers<[1], [0], [0], [1], [0, 0, 1, 1], [], []>} : vector<64x128xbf16>, vector<128x128xbf16>, vector<64x128xf32> -> vector<64x128xf32>
      %203 = arith.addf %153, %202 : vector<64x128xf32>
      %204 = arith.index_cast %arg32 : i32 to index
      %c0_94 = arith.constant 0 : index
      %c0_95 = arith.constant 0 : index
      %205 = vector.load %arg21[%204, %c0_94, %c0_95] : memref<2x1x128xf32, #tpu.memory_space<vmem>>, vector<1x1x128xf32>
      %206 = vector.shape_cast %205 : vector<1x1x128xf32> to vector<1x128xf32>
      %207 = vector.broadcast %206 : vector<1x128xf32> to vector<64x128xf32>
      %208 = arith.addf %203, %207 : vector<64x128xf32>
      scf.yield %208 : vector<64x128xf32>
    }
    %c2_i32_15 = arith.constant 2 : i32
    %c0_16 = arith.constant 0 : index
    %c0_17 = arith.constant 0 : index
    %33 = vector.load %arg22[%c0_16, %c0_17] : memref<1x128xf32, #tpu.memory_space<vmem>>, vector<1x128xf32>
    %c0_18 = arith.constant 0 : index
    %c0_19 = arith.constant 0 : index
    %34 = vector.load %arg23[%c0_18, %c0_19] : memref<1x128xf32, #tpu.memory_space<vmem>>, vector<1x128xf32>
    %cst_20 = arith.constant dense<0.000000e+00> : vector<64xf32>
    %35 = vector.multi_reduction <add>, %32, %cst_20 [1] : vector<64x128xf32> to vector<64xf32>
    %36 = vector.shape_cast %35 : vector<64xf32> to vector<64x1xf32>
    %cst_21 = arith.constant 1.562500e-02 : f32
    %37 = vector.broadcast %cst_21 : f32 to vector<64x1xf32>
    %38 = arith.mulf %36, %37 : vector<64x1xf32>
    %39 = vector.broadcast %38 : vector<64x1xf32> to vector<64x128xf32>
    %40 = arith.subf %32, %39 : vector<64x128xf32>
    %41 = vector.broadcast %4 : vector<1x128xf32> to vector<64x128xf32>
    %42 = arith.mulf %40, %41 : vector<64x128xf32>
    %43 = arith.mulf %42, %42 : vector<64x128xf32>
    %cst_22 = arith.constant dense<0.000000e+00> : vector<64xf32>
    %44 = vector.multi_reduction <add>, %43, %cst_22 [1] : vector<64x128xf32> to vector<64xf32>
    %45 = vector.shape_cast %44 : vector<64xf32> to vector<64x1xf32>
    %cst_23 = arith.constant 1.562500e-02 : f32
    %46 = vector.broadcast %cst_23 : f32 to vector<64x1xf32>
    %47 = arith.mulf %45, %46 : vector<64x1xf32>
    %cst_24 = arith.constant 9.99999997E-7 : f32
    %48 = vector.broadcast %cst_24 : f32 to vector<64x1xf32>
    %49 = arith.addf %47, %48 : vector<64x1xf32>
    %50 = math.rsqrt %49 : vector<64x1xf32>
    %51 = vector.broadcast %50 : vector<64x1xf32> to vector<64x128xf32>
    %52 = arith.mulf %42, %51 : vector<64x128xf32>
    %53 = vector.broadcast %33 : vector<1x128xf32> to vector<64x128xf32>
    %54 = arith.mulf %52, %53 : vector<64x128xf32>
    %55 = vector.broadcast %34 : vector<1x128xf32> to vector<64x128xf32>
    %56 = arith.addf %54, %55 : vector<64x128xf32>
    %57 = arith.truncf %56 : vector<64x128xf32> to vector<64x128xbf16>
    %c0_25 = arith.constant 0 : index
    %c0_26 = arith.constant 0 : index
    %58 = vector.load %arg24[%c0_25, %c0_26] : memref<128x128xbf16, #tpu.memory_space<vmem>>, vector<128x128xbf16>
    %cst_27 = arith.constant dense<0.000000e+00> : vector<64x128xf32>
    %59 = tpu.matmul %57, %58, %cst_27 {dimension_numbers = #tpu.dot_dimension_numbers<[1], [0], [0], [1], [0, 0, 1, 1], [], []>} : vector<64x128xbf16>, vector<128x128xbf16>, vector<64x128xf32> -> vector<64x128xf32>
    %c0_28 = arith.constant 0 : index
    %c0_29 = arith.constant 0 : index
    %60 = vector.load %arg25[%c0_28, %c0_29] : memref<1x128xf32, #tpu.memory_space<vmem>>, vector<1x128xf32>
    %61 = vector.broadcast %60 : vector<1x128xf32> to vector<64x128xf32>
    %62 = arith.addf %59, %61 : vector<64x128xf32>
    %cst_30 = arith.constant 0.000000e+00 : f32
    %63 = vector.broadcast %cst_30 : f32 to vector<64x128xf32>
    %64 = arith.subf %63, %62 : vector<64x128xf32>
    %65 = math.exp %64 : vector<64x128xf32>
    %cst_31 = arith.constant 1.000000e+00 : f32
    %66 = vector.broadcast %cst_31 : f32 to vector<64x128xf32>
    %67 = arith.addf %66, %65 : vector<64x128xf32>
    %68 = arith.divf %62, %67 : vector<64x128xf32>
    %c0_32 = arith.constant 0 : index
    %c0_33 = arith.constant 0 : index
    %69 = vector.load %arg26[%c0_32, %c0_33] : memref<48x128xbf16, #tpu.memory_space<vmem>>, vector<48x128xbf16>
    %cst_34 = arith.constant dense<0.000000e+00> : vector<64x128xf32>
    %70 = tpu.matmul %7, %69, %cst_34 {dimension_numbers = #tpu.dot_dimension_numbers<[1], [0], [0], [1], [0, 0, 1, 1], [], []>} : vector<64x48xbf16>, vector<48x128xbf16>, vector<64x128xf32> -> vector<64x128xf32>
    %c0_35 = arith.constant 0 : index
    %c0_36 = arith.constant 0 : index
    %71 = vector.load %arg28[%c0_35, %c0_36] : memref<1x128xf32, #tpu.memory_space<vmem>>, vector<1x128xf32>
    %72 = vector.broadcast %71 : vector<1x128xf32> to vector<64x128xf32>
    %73 = arith.addf %70, %72 : vector<64x128xf32>
    %74 = arith.truncf %68 : vector<64x128xf32> to vector<64x128xbf16>
    %c0_37 = arith.constant 0 : index
    %c0_38 = arith.constant 0 : index
    %c0_39 = arith.constant 0 : index
    %75 = vector.load %arg27[%c0_37, %c0_38, %c0_39] : memref<3x128x128xbf16, #tpu.memory_space<vmem>>, vector<1x128x128xbf16>
    %76 = vector.shape_cast %75 : vector<1x128x128xbf16> to vector<128x128xbf16>
    %cst_40 = arith.constant dense<0.000000e+00> : vector<64x128xf32>
    %77 = tpu.matmul %74, %76, %cst_40 {dimension_numbers = #tpu.dot_dimension_numbers<[1], [0], [0], [1], [0, 0, 1, 1], [], []>} : vector<64x128xbf16>, vector<128x128xbf16>, vector<64x128xf32> -> vector<64x128xf32>
    %78 = vector.shape_cast %77 : vector<64x128xf32> to vector<4x16x128xf32>
    %c1 = arith.constant 1 : index
    %c0_41 = arith.constant 0 : index
    %c0_42 = arith.constant 0 : index
    %79 = vector.load %arg27[%c1, %c0_41, %c0_42] : memref<3x128x128xbf16, #tpu.memory_space<vmem>>, vector<1x128x128xbf16>
    %80 = vector.shape_cast %79 : vector<1x128x128xbf16> to vector<128x128xbf16>
    %cst_43 = arith.constant dense<0.000000e+00> : vector<64x128xf32>
    %81 = tpu.matmul %74, %80, %cst_43 {dimension_numbers = #tpu.dot_dimension_numbers<[1], [0], [0], [1], [0, 0, 1, 1], [], []>} : vector<64x128xbf16>, vector<128x128xbf16>, vector<64x128xf32> -> vector<64x128xf32>
    %82 = vector.shape_cast %81 : vector<64x128xf32> to vector<4x16x128xf32>
    %c2 = arith.constant 2 : index
    %c0_44 = arith.constant 0 : index
    %c0_45 = arith.constant 0 : index
    %83 = vector.load %arg27[%c2, %c0_44, %c0_45] : memref<3x128x128xbf16, #tpu.memory_space<vmem>>, vector<1x128x128xbf16>
    %84 = vector.shape_cast %83 : vector<1x128x128xbf16> to vector<128x128xbf16>
    %cst_46 = arith.constant dense<0.000000e+00> : vector<64x128xf32>
    %85 = tpu.matmul %74, %84, %cst_46 {dimension_numbers = #tpu.dot_dimension_numbers<[1], [0], [0], [1], [0, 0, 1, 1], [], []>} : vector<64x128xbf16>, vector<128x128xbf16>, vector<64x128xf32> -> vector<64x128xf32>
    %86 = vector.shape_cast %85 : vector<64x128xf32> to vector<4x16x128xf32>
    %cst_47 = arith.constant 0.000000e+00 : f32
    %87 = vector.broadcast %cst_47 : f32 to vector<4x1x128xf32>
    %88 = vector.extract_strided_slice %78 {offsets = [0, 0, 0], sizes = [4, 15, 128], strides = [1, 1, 1]} : vector<4x16x128xf32> to vector<4x15x128xf32>
    %89 = tpu.concatenate %87, %88 in 1 : vector<4x1x128xf32>, vector<4x15x128xf32> -> vector<4x16x128xf32>
    %90 = vector.extract_strided_slice %86 {offsets = [0, 1, 0], sizes = [4, 15, 128], strides = [1, 1, 1]} : vector<4x16x128xf32> to vector<4x15x128xf32>
    %91 = tpu.concatenate %90, %87 in 1 : vector<4x15x128xf32>, vector<4x1x128xf32> -> vector<4x16x128xf32>
    %92 = arith.addf %89, %82 : vector<4x16x128xf32>
    %93 = arith.addf %92, %91 : vector<4x16x128xf32>
    %94 = vector.shape_cast %93 : vector<4x16x128xf32> to vector<64x128xf32>
    %95 = arith.addf %73, %94 : vector<64x128xf32>
    %cst_48 = arith.constant 0.000000e+00 : f32
    %96 = vector.broadcast %cst_48 : f32 to vector<64x128xf32>
    %97 = arith.subf %96, %95 : vector<64x128xf32>
    %98 = math.exp %97 : vector<64x128xf32>
    %cst_49 = arith.constant 1.000000e+00 : f32
    %99 = vector.broadcast %cst_49 : f32 to vector<64x128xf32>
    %100 = arith.addf %99, %98 : vector<64x128xf32>
    %101 = arith.divf %95, %100 : vector<64x128xf32>
    %102 = arith.truncf %101 : vector<64x128xf32> to vector<64x128xbf16>
    %c0_50 = arith.constant 0 : index
    %c0_51 = arith.constant 0 : index
    %103 = vector.load %arg29[%c0_50, %c0_51] : memref<128x128xbf16, #tpu.memory_space<vmem>>, vector<128x128xbf16>
    %cst_52 = arith.constant dense<0.000000e+00> : vector<64x128xf32>
    %104 = tpu.matmul %102, %103, %cst_52 {dimension_numbers = #tpu.dot_dimension_numbers<[1], [0], [0], [1], [0, 0, 1, 1], [], []>} : vector<64x128xbf16>, vector<128x128xbf16>, vector<64x128xf32> -> vector<64x128xf32>
    %c0_53 = arith.constant 0 : index
    %c0_54 = arith.constant 0 : index
    %105 = vector.load %arg30[%c0_53, %c0_54] : memref<1x128xf32, #tpu.memory_space<vmem>>, vector<1x128xf32>
    %106 = vector.broadcast %105 : vector<1x128xf32> to vector<64x128xf32>
    %107 = arith.addf %104, %106 : vector<64x128xf32>
    %cst_55 = arith.constant 0.000000e+00 : f32
    %108 = vector.broadcast %cst_55 : f32 to vector<64x128xf32>
    %109 = arith.subf %108, %107 : vector<64x128xf32>
    %110 = math.exp %109 : vector<64x128xf32>
    %cst_56 = arith.constant 1.000000e+00 : f32
    %111 = vector.broadcast %cst_56 : f32 to vector<64x128xf32>
    %112 = arith.addf %111, %110 : vector<64x128xf32>
    %113 = arith.divf %107, %112 : vector<64x128xf32>
    %114 = vector.shape_cast %113 : vector<64x128xf32> to vector<4x16x128xf32>
    %c0_57 = arith.constant 0 : index
    %c0_58 = arith.constant 0 : index
    %c0_59 = arith.constant 0 : index
    %115 = vector.load %arg31[%c0_57, %c0_58, %c0_59] : memref<4x16x128xf32, #tpu.memory_space<vmem>>, vector<4x16x128xf32>
    tpu.vector_store %arg31[%c0_57, %c0_58, %c0_59], %114 {strides = array<i32>} : memref<4x16x128xf32, #tpu.memory_space<vmem>>, vector<4x16x128xf32>,
    return
  }
  func.func @transform_0(%arg0: i32) -> (i32, i32, i32) {
    %c0_i32 = arith.constant 0 : i32
    %c0_i32_0 = arith.constant 0 : i32
    %c0_i32_1 = arith.constant 0 : i32
    return %arg0, %c0_i32, %c0_i32_0 : i32, i32, i32
  }
  func.func @transform_1(%arg0: i32) -> (i32, i32) {
    %c0_i32 = arith.constant 0 : i32
    %c0_i32_0 = arith.constant 0 : i32
    %c0_i32_1 = arith.constant 0 : i32
    return %c0_i32, %c0_i32_0 : i32, i32
  }
  func.func @transform_2(%arg0: i32) -> (i32, i32) {
    %c0_i32 = arith.constant 0 : i32
    %c0_i32_0 = arith.constant 0 : i32
    %c0_i32_1 = arith.constant 0 : i32
    return %c0_i32, %c0_i32_0 : i32, i32
  }
  func.func @transform_3(%arg0: i32) -> (i32, i32) {
    %c0_i32 = arith.constant 0 : i32
    %c0_i32_0 = arith.constant 0 : i32
    %c0_i32_1 = arith.constant 0 : i32
    return %c0_i32, %c0_i32_0 : i32, i32
  }
  func.func @transform_4(%arg0: i32) -> (i32, i32) {
    %c0_i32 = arith.constant 0 : i32
    %c0_i32_0 = arith.constant 0 : i32
    %c0_i32_1 = arith.constant 0 : i32
    return %c0_i32, %c0_i32_0 : i32, i32
  }
  func.func @transform_5(%arg0: i32) -> (i32, i32, i32) {
    %c0_i32 = arith.constant 0 : i32
    %c0_i32_0 = arith.constant 0 : i32
    %c0_i32_1 = arith.constant 0 : i32
    %c0_i32_2 = arith.constant 0 : i32
    return %c0_i32, %c0_i32_0, %c0_i32_1 : i32, i32, i32
  }
  func.func @transform_6(%arg0: i32) -> (i32, i32, i32) {
    %c0_i32 = arith.constant 0 : i32
    %c0_i32_0 = arith.constant 0 : i32
    %c0_i32_1 = arith.constant 0 : i32
    %c0_i32_2 = arith.constant 0 : i32
    return %c0_i32, %c0_i32_0, %c0_i32_1 : i32, i32, i32
  }
  func.func @transform_7(%arg0: i32) -> (i32, i32, i32) {
    %c0_i32 = arith.constant 0 : i32
    %c0_i32_0 = arith.constant 0 : i32
    %c0_i32_1 = arith.constant 0 : i32
    %c0_i32_2 = arith.constant 0 : i32
    return %c0_i32, %c0_i32_0, %c0_i32_1 : i32, i32, i32
  }
  func.func @transform_8(%arg0: i32) -> (i32, i32, i32) {
    %c0_i32 = arith.constant 0 : i32
    %c0_i32_0 = arith.constant 0 : i32
    %c0_i32_1 = arith.constant 0 : i32
    %c0_i32_2 = arith.constant 0 : i32
    return %c0_i32, %c0_i32_0, %c0_i32_1 : i32, i32, i32
  }
  func.func @transform_9(%arg0: i32) -> (i32, i32, i32) {
    %c0_i32 = arith.constant 0 : i32
    %c0_i32_0 = arith.constant 0 : i32
    %c0_i32_1 = arith.constant 0 : i32
    %c0_i32_2 = arith.constant 0 : i32
    return %c0_i32, %c0_i32_0, %c0_i32_1 : i32, i32, i32
  }
  func.func @transform_10(%arg0: i32) -> (i32, i32, i32) {
    %c0_i32 = arith.constant 0 : i32
    %c0_i32_0 = arith.constant 0 : i32
    %c0_i32_1 = arith.constant 0 : i32
    %c0_i32_2 = arith.constant 0 : i32
    return %c0_i32, %c0_i32_0, %c0_i32_1 : i32, i32, i32
  }
  func.func @transform_11(%arg0: i32) -> (i32, i32, i32) {
    %c0_i32 = arith.constant 0 : i32
    %c0_i32_0 = arith.constant 0 : i32
    %c0_i32_1 = arith.constant 0 : i32
    %c0_i32_2 = arith.constant 0 : i32
    return %c0_i32, %c0_i32_0, %c0_i32_1 : i32, i32, i32
  }
  func.func @transform_12(%arg0: i32) -> (i32, i32, i32) {
    %c0_i32 = arith.constant 0 : i32
    %c0_i32_0 = arith.constant 0 : i32
    %c0_i32_1 = arith.constant 0 : i32
    %c0_i32_2 = arith.constant 0 : i32
    return %c0_i32, %c0_i32_0, %c0_i32_1 : i32, i32, i32
  }
  func.func @transform_13(%arg0: i32) -> (i32, i32, i32) {
    %c0_i32 = arith.constant 0 : i32
    %c0_i32_0 = arith.constant 0 : i32
    %c0_i32_1 = arith.constant 0 : i32
    %c0_i32_2 = arith.constant 0 : i32
    return %c0_i32, %c0_i32_0, %c0_i32_1 : i32, i32, i32
  }
  func.func @transform_14(%arg0: i32) -> (i32, i32, i32) {
    %c0_i32 = arith.constant 0 : i32
    %c0_i32_0 = arith.constant 0 : i32
    %c0_i32_1 = arith.constant 0 : i32
    %c0_i32_2 = arith.constant 0 : i32
    return %c0_i32, %c0_i32_0, %c0_i32_1 : i32, i32, i32
  }
  func.func @transform_15(%arg0: i32) -> (i32, i32, i32) {
    %c0_i32 = arith.constant 0 : i32
    %c0_i32_0 = arith.constant 0 : i32
    %c0_i32_1 = arith.constant 0 : i32
    %c0_i32_2 = arith.constant 0 : i32
    return %c0_i32, %c0_i32_0, %c0_i32_1 : i32, i32, i32
  }
  func.func @transform_16(%arg0: i32) -> (i32, i32, i32) {
    %c0_i32 = arith.constant 0 : i32
    %c0_i32_0 = arith.constant 0 : i32
    %c0_i32_1 = arith.constant 0 : i32
    %c0_i32_2 = arith.constant 0 : i32
    return %c0_i32, %c0_i32_0, %c0_i32_1 : i32, i32, i32
  }
  func.func @transform_17(%arg0: i32) -> (i32, i32, i32) {
    %c0_i32 = arith.constant 0 : i32
    %c0_i32_0 = arith.constant 0 : i32
    %c0_i32_1 = arith.constant 0 : i32
    %c0_i32_2 = arith.constant 0 : i32
    return %c0_i32, %c0_i32_0, %c0_i32_1 : i32, i32, i32
  }
  func.func @transform_18(%arg0: i32) -> (i32, i32, i32) {
    %c0_i32 = arith.constant 0 : i32
    %c0_i32_0 = arith.constant 0 : i32
    %c0_i32_1 = arith.constant 0 : i32
    %c0_i32_2 = arith.constant 0 : i32
    return %c0_i32, %c0_i32_0, %c0_i32_1 : i32, i32, i32
  }
  func.func @transform_19(%arg0: i32) -> (i32, i32, i32) {
    %c0_i32 = arith.constant 0 : i32
    %c0_i32_0 = arith.constant 0 : i32
    %c0_i32_1 = arith.constant 0 : i32
    %c0_i32_2 = arith.constant 0 : i32
    return %c0_i32, %c0_i32_0, %c0_i32_1 : i32, i32, i32
  }
  func.func @transform_20(%arg0: i32) -> (i32, i32, i32) {
    %c0_i32 = arith.constant 0 : i32
    %c0_i32_0 = arith.constant 0 : i32
    %c0_i32_1 = arith.constant 0 : i32
    %c0_i32_2 = arith.constant 0 : i32
    return %c0_i32, %c0_i32_0, %c0_i32_1 : i32, i32, i32
  }
  func.func @transform_21(%arg0: i32) -> (i32, i32) {
    %c0_i32 = arith.constant 0 : i32
    %c0_i32_0 = arith.constant 0 : i32
    %c0_i32_1 = arith.constant 0 : i32
    return %c0_i32, %c0_i32_0 : i32, i32
  }
  func.func @transform_22(%arg0: i32) -> (i32, i32) {
    %c0_i32 = arith.constant 0 : i32
    %c0_i32_0 = arith.constant 0 : i32
    %c0_i32_1 = arith.constant 0 : i32
    return %c0_i32, %c0_i32_0 : i32, i32
  }
  func.func @transform_23(%arg0: i32) -> (i32, i32) {
    %c0_i32 = arith.constant 0 : i32
    %c0_i32_0 = arith.constant 0 : i32
    %c0_i32_1 = arith.constant 0 : i32
    return %c0_i32, %c0_i32_0 : i32, i32
  }
  func.func @transform_24(%arg0: i32) -> (i32, i32) {
    %c0_i32 = arith.constant 0 : i32
    %c0_i32_0 = arith.constant 0 : i32
    %c0_i32_1 = arith.constant 0 : i32
    return %c0_i32, %c0_i32_0 : i32, i32
  }
  func.func @transform_25(%arg0: i32) -> (i32, i32) {
    %c0_i32 = arith.constant 0 : i32
    %c0_i32_0 = arith.constant 0 : i32
    %c0_i32_1 = arith.constant 0 : i32
    return %c0_i32, %c0_i32_0 : i32, i32
  }
  func.func @transform_26(%arg0: i32) -> (i32, i32, i32) {
    %c0_i32 = arith.constant 0 : i32
    %c0_i32_0 = arith.constant 0 : i32
    %c0_i32_1 = arith.constant 0 : i32
    %c0_i32_2 = arith.constant 0 : i32
    return %c0_i32, %c0_i32_0, %c0_i32_1 : i32, i32, i32
  }
  func.func @transform_27(%arg0: i32) -> (i32, i32) {
    %c0_i32 = arith.constant 0 : i32
    %c0_i32_0 = arith.constant 0 : i32
    %c0_i32_1 = arith.constant 0 : i32
    return %c0_i32, %c0_i32_0 : i32, i32
  }
  func.func @transform_28(%arg0: i32) -> (i32, i32) {
    %c0_i32 = arith.constant 0 : i32
    %c0_i32_0 = arith.constant 0 : i32
    %c0_i32_1 = arith.constant 0 : i32
    return %c0_i32, %c0_i32_0 : i32, i32
  }
  func.func @transform_29(%arg0: i32) -> (i32, i32) {
    %c0_i32 = arith.constant 0 : i32
    %c0_i32_0 = arith.constant 0 : i32
    %c0_i32_1 = arith.constant 0 : i32
    return %c0_i32, %c0_i32_0 : i32, i32
  }
  func.func @transform_30(%arg0: i32) -> (i32, i32, i32) {
    %c0_i32 = arith.constant 0 : i32
    %c0_i32_0 = arith.constant 0 : i32
    %c0_i32_1 = arith.constant 0 : i32
    return %arg0, %c0_i32, %c0_i32_0 : i32, i32, i32
  }
}

</mosaic_0001>

<llo_original>
// kernel: encoder_with_svtr.1
$region0: #{encoder_with_svtr.1}
  #allocation0 [shape = 'u32[]', space=smem, size = 0x4, offset = 0x4, fixed_abs, tag = 'smem constant byte address 0x4 - core index']
  #allocation1 [shape = 'u32[144,128]{1,0:T(1,128)}', space=vmem, size = 0x12000, scoped, tag = 'internal scratch']
  %s0 = inlined_call_operand.smem [shape: u32[31], index: -1, kind: input, shape index: {}]
  %s1 = sld [smem:[%s0]]
  %s2 = scalar_lea.smem %s0, 1
  %s3 = sld [smem:[%s2]]
  %s4 = scalar_lea.smem %s0, 2
  %s5 = sld [smem:[%s4]]
  %s6 = scalar_lea.smem %s0, 3
  %s7 = sld [smem:[%s6]]
  %s8 = scalar_lea.smem %s0, 4
  %s9 = sld [smem:[%s8]]
  %s10 = scalar_lea.smem %s0, 5
  %s11 = sld [smem:[%s10]]
  %s12 = scalar_lea.smem %s0, 6
  %s13 = sld [smem:[%s12]]
  %s14 = scalar_lea.smem %s0, 7
  %s15 = sld [smem:[%s14]]
  %s16 = scalar_lea.smem %s0, 8
  %s17 = sld [smem:[%s16]]
  %s18 = scalar_lea.smem %s0, 9
  %s19 = sld [smem:[%s18]]
  %s20 = scalar_lea.smem %s0, 10
  %s21 = sld [smem:[%s20]]
  %s22 = scalar_lea.smem %s0, 11
  %s23 = sld [smem:[%s22]]
  %s24 = scalar_lea.smem %s0, 12
  %s25 = sld [smem:[%s24]]
  %s26 = scalar_lea.smem %s0, 13
  %s27 = sld [smem:[%s26]]
  %s28 = scalar_lea.smem %s0, 14
  %s29 = sld [smem:[%s28]]
  %s30 = scalar_lea.smem %s0, 15
  %s31 = sld [smem:[%s30]]
  %s32 = scalar_lea.smem %s0, 16
  %s33 = sld [smem:[%s32]]
  %s34 = scalar_lea.smem %s0, 17
  %s35 = sld [smem:[%s34]]
  %s36 = scalar_lea.smem %s0, 18
  %s37 = sld [smem:[%s36]]
  %s38 = scalar_lea.smem %s0, 19
  %s39 = sld [smem:[%s38]]
  %s40 = scalar_lea.smem %s0, 20
  %s41 = sld [smem:[%s40]]
  %s42 = scalar_lea.smem %s0, 21
  %s43 = sld [smem:[%s42]]
  %s44 = scalar_lea.smem %s0, 22
  %s45 = sld [smem:[%s44]]
  %s46 = scalar_lea.smem %s0, 23
  %s47 = sld [smem:[%s46]]
  %s48 = scalar_lea.smem %s0, 24
  %s49 = sld [smem:[%s48]]
  %s50 = scalar_lea.smem %s0, 25
  %s51 = sld [smem:[%s50]]
  %s52 = scalar_lea.smem %s0, 26
  %s53 = sld [smem:[%s52]]
  %s54 = scalar_lea.smem %s0, 27
  %s55 = sld [smem:[%s54]]
  %s56 = scalar_lea.smem %s0, 28
  %s57 = sld [smem:[%s56]]
  %s58 = scalar_lea.smem %s0, 29
  %s59 = sld [smem:[%s58]]
  %s60 = scalar_lea.smem %s0, 30
  %s61 = sld [smem:[%s60]]
  %s62 = sld [smem:[#allocation0]]
  $region263: #{encoder_with_svtr.1} parent=0
    _
  %s64 = ssub.s32 1, %s62
  %s65 = scalar_select 0, %s64, %s62
  $region1: #{encoder_with_svtr.1} parent=0
    #allocation2 [shape = 'u8[512]{0}', space=vmem, size = 0x400, scoped, tag = 'input window, operand 2, single buffered']
    #allocation3 [shape = 's32[2]{0}', space=sflag, size = 0x8, scoped, tag = 'scoped memory for encoder_with_svtr.1']
    #allocation4 [shape = 'u8[32768]{0}', space=vmem, size = 0x8000, scoped, tag = 'input window, operand 3, single buffered']
    #allocation5 [shape = 's32[1]{0}', space=sflag, size = 0x4, scoped, tag = 'scoped memory for encoder_with_svtr.1']
    #allocation6 [shape = 'u8[512]{0}', space=vmem, size = 0x400, scoped, tag = 'input window, operand 4, single buffered']
    #allocation7 [shape = 'u8[1024]{0}', space=vmem, size = 0x400, scoped, tag = 'input window, operand 5, single buffered']
    #allocation8 [shape = 's32[1]{0}', space=sflag, size = 0x4, scoped, tag = 'scoped memory for encoder_with_svtr.1']
    #allocation9 [shape = 'u8[1024]{0}', space=vmem, size = 0x400, scoped, tag = 'input window, operand 6, single buffered']
    #allocation10 [shape = 'u8[8192]{0}', space=vmem, size = 0x2000, scoped, tag = 'input window, operand 11, single buffered']
    #allocation11 [shape = 's32[1]{0}', space=sflag, size = 0x4, scoped, tag = 'scoped memory for encoder_with_svtr.1']
    #allocation12 [shape = 'u8[8192]{0}', space=vmem, size = 0x2000, scoped, tag = 'input window, operand 12, single buffered']
    #allocation13 [shape = 'u8[524288]{0}', space=vmem, size = 0x80000, scoped, tag = 'input window, operand 13, single buffered']
    #allocation14 [shape = 's32[1]{0}', space=sflag, size = 0x4, scoped, tag = 'scoped memory for encoder_with_svtr.1']
    #allocation15 [shape = 'u8[1024]{0}', space=vmem, size = 0x400, scoped, tag = 'input window, operand 14, single buffered']
    #allocation16 [shape = 'u8[1024]{0}', space=vmem, size = 0x400, scoped, tag = 'input window, operand 15, single buffered']
    #allocation17 [shape = 's32[1]{0}', space=sflag, size = 0x4, scoped, tag = 'scoped memory for encoder_with_svtr.1']
    #allocation18 [shape = 'u8[1024]{0}', space=vmem, size = 0x400, scoped, tag = 'input window, operand 16, single buffered']
    #allocation19 [shape = 'u8[65536]{0}', space=vmem, size = 0x10000, scoped, tag = 'input window, operand 17, single buffered']
    #allocation20 [shape = 's32[1]{0}', space=sflag, size = 0x4, scoped, tag = 'scoped memory for encoder_with_svtr.1']
    #allocation21 [shape = 'u8[1024]{0}', space=vmem, size = 0x400, scoped, tag = 'input window, operand 18, single buffered']
    #allocation22 [shape = 'u8[65536]{0}', space=vmem, size = 0x10000, scoped, tag = 'input window, operand 19, single buffered']
    #allocation23 [shape = 's32[1]{0}', space=sflag, size = 0x4, scoped, tag = 'scoped memory for encoder_with_svtr.1']
    #allocation24 [shape = 'u8[1024]{0}', space=vmem, size = 0x400, scoped, tag = 'input window, operand 20, single buffered']
    #allocation25 [shape = 'u8[512]{0}', space=vmem, size = 0x400, scoped, tag = 'input window, operand 21, single buffered']
    #allocation26 [shape = 's32[1]{0}', space=sflag, size = 0x4, scoped, tag = 'scoped memory for encoder_with_svtr.1']
    #allocation27 [shape = 'u8[512]{0}', space=vmem, size = 0x400, scoped, tag = 'input window, operand 22, single buffered']
    #allocation28 [shape = 'u8[32768]{0}', space=vmem, size = 0x8000, scoped, tag = 'input window, operand 23, single buffered']
    #allocation29 [shape = 's32[1]{0}', space=sflag, size = 0x4, scoped, tag = 'scoped memory for encoder_with_svtr.1']
    #allocation30 [shape = 'u8[512]{0}', space=vmem, size = 0x400, scoped, tag = 'input window, operand 24, single buffered']
    #allocation31 [shape = 'u8[12288]{0}', space=vmem, size = 0x3000, scoped, tag = 'input window, operand 25, single buffered']
    #allocation32 [shape = 's32[1]{0}', space=sflag, size = 0x4, scoped, tag = 'scoped memory for encoder_with_svtr.1']
    #allocation33 [shape = 'u8[98304]{0}', space=vmem, size = 0x18000, scoped, tag = 'input window, operand 26, single buffered']
    #allocation34 [shape = 'u8[512]{0}', space=vmem, size = 0x400, scoped, tag = 'input window, operand 27, single buffered']
    #allocation35 [shape = 's32[1]{0}', space=sflag, size = 0x4, scoped, tag = 'scoped memory for encoder_with_svtr.1']
    #allocation36 [shape = 'u8[32768]{0}', space=vmem, size = 0x8000, scoped, tag = 'input window, operand 28, single buffered']
    #allocation37 [shape = 'u8[512]{0}', space=vmem, size = 0x400, scoped, tag = 'input window, operand 29, single buffered']
    #allocation38 [shape = 's32[1]{0}', space=sflag, size = 0x4, scoped, tag = 'scoped memory for encoder_with_svtr.1']
    %66 = vsyncpa [#allocation3], 0
    %67 = vsyncpa [#allocation5], 0
    %68 = vsyncpa [#allocation8], 0
    %69 = vsyncpa [#allocation11], 0
    %70 = vsyncpa [#allocation14], 0
    %71 = vsyncpa [#allocation17], 0
    %72 = vsyncpa [#allocation20], 0
    %73 = vsyncpa [#allocation23], 0
    %74 = vsyncpa [#allocation26], 0
    %75 = vsyncpa [#allocation29], 0
    %76 = vsyncpa [#allocation32], 0
    %77 = vsyncpa [#allocation35], 0
    %78 = vsyncpa [#allocation38], 0
    loop: start=0, step=1, limit=4
    $region2: #{encoder_with_svtr.1} parent=1 // loop_pre_header
      _
    $region3: #{encoder_with_svtr.1} parent=1 // loop_header
      %s80 = sphi 0, %s84
      %p81 = scmp.ge.s32.totalorder %s80, 4
      %s90 = sphi 0, %s92
      %s93 = sphi 0, %s90
      %s94 = sphi 0, %s93
      %s110 = sphi 0, %s94
      %s114 = sphi 0, %s114
      %s116 = sphi 0, %s114
      %s117 = sphi 0, %s116
      %s131 = sphi 0, %s117
      %s135 = sphi 0, %s135
      %s137 = sphi 0, %s135
      %s138 = sphi 0, %s137
      %s152 = sphi 0, %s138
      %s156 = sphi 0, %s156
      %s158 = sphi 0, %s156
      %s159 = sphi 0, %s158
      %s173 = sphi 0, %s159
      %s177 = sphi 0, %s177
      %s179 = sphi 0, %s177
      %s180 = sphi 0, %s179
      %s194 = sphi 0, %s180
      %s198 = sphi 0, %s198
      %s200 = sphi 0, %s198
      %s201 = sphi 0, %s200
      %s215 = sphi 0, %s201
      %s219 = sphi 0, %s219
      %s221 = sphi 0, %s219
      %s222 = sphi 0, %s221
      %s236 = sphi 0, %s222
      %s240 = sphi 0, %s240
      %s242 = sphi 0, %s240
      %s243 = sphi 0, %s242
      %s257 = sphi 0, %s243
      %s261 = sphi 0, %s261
      %s263 = sphi 0, %s261
      %s264 = sphi 0, %s263
      %s278 = sphi 0, %s264
      %s282 = sphi 0, %s282
      %s284 = sphi 0, %s282
      %s285 = sphi 0, %s284
      %s299 = sphi 0, %s285
      %s303 = sphi 0, %s303
      %s305 = sphi 0, %s303
      %s306 = sphi 0, %s305
      %s320 = sphi 0, %s306
      %s324 = sphi 0, %s324
      %s326 = sphi 0, %s324
      %s327 = sphi 0, %s326
      %s341 = sphi 0, %s327
      %s345 = sphi 0, %s345
      %s347 = sphi 0, %s345
      %s348 = sphi 0, %s347
      %s362 = sphi 0, %s348
      %s366 = sphi 0, %s366
      %s368 = sphi 0, %s366
      %s369 = sphi 0, %s368
      %s383 = sphi 0, %s369
      %s387 = sphi 0, %s387
      %s389 = sphi 0, %s387
      %s390 = sphi 0, %s389
      %s404 = sphi 0, %s390
      %s408 = sphi 0, %s408
      %s410 = sphi 0, %s408
      %s411 = sphi 0, %s410
      %s425 = sphi 0, %s411
      %s429 = sphi 0, %s429
      %s431 = sphi 0, %s429
      %s432 = sphi 0, %s431
      %s446 = sphi 0, %s432
      %s450 = sphi 0, %s450
      %s452 = sphi 0, %s450
      %s453 = sphi 0, %s452
      %s467 = sphi 0, %s453
      %s471 = sphi 0, %s471
      %s473 = sphi 0, %s471
      %s474 = sphi 0, %s473
      %s488 = sphi 0, %s474
      %s492 = sphi 0, %s492
      %s494 = sphi 0, %s492
      %s495 = sphi 0, %s494
      %s509 = sphi 0, %s495
      %s513 = sphi 0, %s513
      %s515 = sphi 0, %s513
      %s516 = sphi 0, %s515
      %s530 = sphi 0, %s516
      %s534 = sphi 0, %s534
      %s536 = sphi 0, %s534
      %s537 = sphi 0, %s536
      %s551 = sphi 0, %s537
      %s555 = sphi 0, %s555
      %s557 = sphi 0, %s555
      %s558 = sphi 0, %s557
      %s572 = sphi 0, %s558
      %s576 = sphi 0, %s576
      %s578 = sphi 0, %s576
      %s579 = sphi 0, %s578
      %s593 = sphi 0, %s579
      %s597 = sphi 0, %s597
      %s599 = sphi 0, %s597
      %s600 = sphi 0, %s599
      %s614 = sphi 0, %s600
      %s618 = sphi 0, %s618
      %s620 = sphi 0, %s618
      %s621 = sphi 0, %s620
      %s635 = sphi 0, %s621
      %s639 = sphi 0, %s639
      %s641 = sphi 0, %s639
      %s642 = sphi 0, %s641
      %s656 = sphi 0, %s642
      %s660 = sphi 0, %s660
      %s662 = sphi 0, %s660
      %s663 = sphi 0, %s662
      %s677 = sphi 0, %s663
      %s681 = sphi 0, %s681
      %s683 = sphi 0, %s681
      %s684 = sphi 0, %s683
      %s698 = sphi 0, %s684
      %s702 = sphi 0, %s702
      %s704 = sphi 0, %s702
      %s705 = sphi 0, %s704
      %s719 = sphi 0, %s705
      %s725 = sphi 0, %s727
      %s728 = sphi 0, %s725
      %s729 = sphi 0, %s728
      %s745 = sphi 0, %s729
    $region4: #{encoder_with_svtr.1} parent=1 // loop_header_branch
      %83 = sbr.rel (%p81) target = $region8
    $region5: #{encoder_with_svtr.1} parent=1 // loop_body
      %s85 = ssub.s32 %s80, 1
      %s86 = ssub.s32 %s80, 2
      %s87 = sadd.s32 %s80, 1
      %s88 = ssub.s32 %s80, %s87
      %p89 = scmp.eq.s32.totalorder %s88, 0
      %s91 = sadd.s32 %s90, 1
      %s92 = scalar_select %p89, %s90, %s91
      %p95 = pneg %p89
      %p96 = scmp.eq.s32.totalorder %s80, 1
      %p97 = por %p95, %p96
      %p98 = scmp.ne.s32.totalorder %s90, %s93
      %p99 = scmp.eq.s32.totalorder %s80, 0
      %p100 = por %p98, %p99
      %p101 = scmp.ne.s32.totalorder %s90, %s93
      %p102 = scmp.eq.s32.totalorder %s85, 1
      %p103 = por %p101, %p102
      %p104 = scmp.ne.s32.totalorder %s93, %s94
      %p105 = scmp.eq.s32.totalorder %s85, 0
      %p106 = por %p104, %p105
      %p107 = scmp.ne.s32.totalorder %s93, %s94
      %p108 = scmp.eq.s32.totalorder %s86, 1
      %p109 = por %p107, %p108
      %p111 = scmp.ne.s32.totalorder %s94, %s110
      %p112 = scmp.eq.s32.totalorder %s86, 0
      %p113 = por %p111, %p112
      %s115 = sadd.s32 %s114, 1
      %p118 = scmp.eq.s32.totalorder %s80, 1
      %p119 = scmp.ne.s32.totalorder %s114, %s116
      %p120 = scmp.eq.s32.totalorder %s80, 0
      %p121 = por %p119, %p120
      %p122 = scmp.ne.s32.totalorder %s114, %s116
      %p123 = scmp.eq.s32.totalorder %s85, 1
      %p124 = por %p122, %p123
      %p125 = scmp.ne.s32.totalorder %s116, %s117
      %p126 = scmp.eq.s32.totalorder %s85, 0
      %p127 = por %p125, %p126
      %p128 = scmp.ne.s32.totalorder %s116, %s117
      %p129 = scmp.eq.s32.totalorder %s86, 1
      %p130 = por %p128, %p129
      %p132 = scmp.ne.s32.totalorder %s117, %s131
      %p133 = scmp.eq.s32.totalorder %s86, 0
      %p134 = por %p132, %p133
      %s136 = sadd.s32 %s135, 1
      %p139 = scmp.eq.s32.totalorder %s80, 1
      %p140 = scmp.ne.s32.totalorder %s135, %s137
      %p141 = scmp.eq.s32.totalorder %s80, 0
      %p142 = por %p140, %p141
      %p143 = scmp.ne.s32.totalorder %s135, %s137
      %p144 = scmp.eq.s32.totalorder %s85, 1
      %p145 = por %p143, %p144
      %p146 = scmp.ne.s32.totalorder %s137, %s138
      %p147 = scmp.eq.s32.totalorder %s85, 0
      %p148 = por %p146, %p147
      %p149 = scmp.ne.s32.totalorder %s137, %s138
      %p150 = scmp.eq.s32.totalorder %s86, 1
      %p151 = por %p149, %p150
      %p153 = scmp.ne.s32.totalorder %s138, %s152
      %p154 = scmp.eq.s32.totalorder %s86, 0
      %p155 = por %p153, %p154
      %s157 = sadd.s32 %s156, 1
      %p160 = scmp.eq.s32.totalorder %s80, 1
      %p161 = scmp.ne.s32.totalorder %s156, %s158
      %p162 = scmp.eq.s32.totalorder %s80, 0
      %p163 = por %p161, %p162
      %p164 = scmp.ne.s32.totalorder %s156, %s158
      %p165 = scmp.eq.s32.totalorder %s85, 1
      %p166 = por %p164, %p165
      %p167 = scmp.ne.s32.totalorder %s158, %s159
      %p168 = scmp.eq.s32.totalorder %s85, 0
      %p169 = por %p167, %p168
      %p170 = scmp.ne.s32.totalorder %s158, %s159
      %p171 = scmp.eq.s32.totalorder %s86, 1
      %p172 = por %p170, %p171
      %p174 = scmp.ne.s32.totalorder %s159, %s173
      %p175 = scmp.eq.s32.totalorder %s86, 0
      %p176 = por %p174, %p175
      %s178 = sadd.s32 %s177, 1
      %p181 = scmp.eq.s32.totalorder %s80, 1
      %p182 = scmp.ne.s32.totalorder %s177, %s179
      %p183 = scmp.eq.s32.totalorder %s80, 0
      %p184 = por %p182, %p183
      %p185 = scmp.ne.s32.totalorder %s177, %s179
      %p186 = scmp.eq.s32.totalorder %s85, 1
      %p187 = por %p185, %p186
      %p188 = scmp.ne.s32.totalorder %s179, %s180
      %p189 = scmp.eq.s32.totalorder %s85, 0
      %p190 = por %p188, %p189
      %p191 = scmp.ne.s32.totalorder %s179, %s180
      %p192 = scmp.eq.s32.totalorder %s86, 1
      %p193 = por %p191, %p192
      %p195 = scmp.ne.s32.totalorder %s180, %s194
      %p196 = scmp.eq.s32.totalorder %s86, 0
      %p197 = por %p195, %p196
      %s199 = sadd.s32 %s198, 1
      %p202 = scmp.eq.s32.totalorder %s80, 1
      %p203 = scmp.ne.s32.totalorder %s198, %s200
      %p204 = scmp.eq.s32.totalorder %s80, 0
      %p205 = por %p203, %p204
      %p206 = scmp.ne.s32.totalorder %s198, %s200
      %p207 = scmp.eq.s32.totalorder %s85, 1
      %p208 = por %p206, %p207
      %p209 = scmp.ne.s32.totalorder %s200, %s201
      %p210 = scmp.eq.s32.totalorder %s85, 0
      %p211 = por %p209, %p210
      %p212 = scmp.ne.s32.totalorder %s200, %s201
      %p213 = scmp.eq.s32.totalorder %s86, 1
      %p214 = por %p212, %p213
      %p216 = scmp.ne.s32.totalorder %s201, %s215
      %p217 = scmp.eq.s32.totalorder %s86, 0
      %p218 = por %p216, %p217
      %s220 = sadd.s32 %s219, 1
      %p223 = scmp.eq.s32.totalorder %s80, 1
      %p224 = scmp.ne.s32.totalorder %s219, %s221
      %p225 = scmp.eq.s32.totalorder %s80, 0
      %p226 = por %p224, %p225
      %p227 = scmp.ne.s32.totalorder %s219, %s221
      %p228 = scmp.eq.s32.totalorder %s85, 1
      %p229 = por %p227, %p228
      %p230 = scmp.ne.s32.totalorder %s221, %s222
      %p231 = scmp.eq.s32.totalorder %s85, 0
      %p232 = por %p230, %p231
      %p233 = scmp.ne.s32.totalorder %s221, %s222
      %p234 = scmp.eq.s32.totalorder %s86, 1
      %p235 = por %p233, %p234
      %p237 = scmp.ne.s32.totalorder %s222, %s236
      %p238 = scmp.eq.s32.totalorder %s86, 0
      %p239 = por %p237, %p238
      %s241 = sadd.s32 %s240, 1
      %p244 = scmp.eq.s32.totalorder %s80, 1
      %p245 = scmp.ne.s32.totalorder %s240, %s242
      %p246 = scmp.eq.s32.totalorder %s80, 0
      %p247 = por %p245, %p246
      %p248 = scmp.ne.s32.totalorder %s240, %s242
      %p249 = scmp.eq.s32.totalorder %s85, 1
      %p250 = por %p248, %p249
      %p251 = scmp.ne.s32.totalorder %s242, %s243
      %p252 = scmp.eq.s32.totalorder %s85, 0
      %p253 = por %p251, %p252
      %p254 = scmp.ne.s32.totalorder %s242, %s243
      %p255 = scmp.eq.s32.totalorder %s86, 1
      %p256 = por %p254, %p255
      %p258 = scmp.ne.s32.totalorder %s243, %s257
      %p259 = scmp.eq.s32.totalorder %s86, 0
      %p260 = por %p258, %p259
      %s262 = sadd.s32 %s261, 1
      %p265 = scmp.eq.s32.totalorder %s80, 1
      %p266 = scmp.ne.s32.totalorder %s261, %s263
      %p267 = scmp.eq.s32.totalorder %s80, 0
      %p268 = por %p266, %p267
      %p269 = scmp.ne.s32.totalorder %s261, %s263
      %p270 = scmp.eq.s32.totalorder %s85, 1
      %p271 = por %p269, %p270
      %p272 = scmp.ne.s32.totalorder %s263, %s264
      %p273 = scmp.eq.s32.totalorder %s85, 0
      %p274 = por %p272, %p273
      %p275 = scmp.ne.s32.totalorder %s263, %s264
      %p276 = scmp.eq.s32.totalorder %s86, 1
      %p277 = por %p275, %p276
      %p279 = scmp.ne.s32.totalorder %s264, %s278
      %p280 = scmp.eq.s32.totalorder %s86, 0
      %p281 = por %p279, %p280
      %s283 = sadd.s32 %s282, 1
      %p286 = scmp.eq.s32.totalorder %s80, 1
      %p287 = scmp.ne.s32.totalorder %s282, %s284
      %p288 = scmp.eq.s32.totalorder %s80, 0
      %p289 = por %p287, %p288
      %p290 = scmp.ne.s32.totalorder %s282, %s284
      %p291 = scmp.eq.s32.totalorder %s85, 1
      %p292 = por %p290, %p291
      %p293 = scmp.ne.s32.totalorder %s284, %s285
      %p294 = scmp.eq.s32.totalorder %s85, 0
      %p295 = por %p293, %p294
      %p296 = scmp.ne.s32.totalorder %s284, %s285
      %p297 = scmp.eq.s32.totalorder %s86, 1
      %p298 = por %p296, %p297
      %p300 = scmp.ne.s32.totalorder %s285, %s299
      %p301 = scmp.eq.s32.totalorder %s86, 0
      %p302 = por %p300, %p301
      %s304 = sadd.s32 %s303, 1
      %p307 = scmp.eq.s32.totalorder %s80, 1
      %p308 = scmp.ne.s32.totalorder %s303, %s305
      %p309 = scmp.eq.s32.totalorder %s80, 0
      %p310 = por %p308, %p309
      %p311 = scmp.ne.s32.totalorder %s303, %s305
      %p312 = scmp.eq.s32.totalorder %s85, 1
      %p313 = por %p311, %p312
      %p314 = scmp.ne.s32.totalorder %s305, %s306
      %p315 = scmp.eq.s32.totalorder %s85, 0
      %p316 = por %p314, %p315
      %p317 = scmp.ne.s32.totalorder %s305, %s306
      %p318 = scmp.eq.s32.totalorder %s86, 1
      %p319 = por %p317, %p318
      %p321 = scmp.ne.s32.totalorder %s306, %s320
      %p322 = scmp.eq.s32.totalorder %s86, 0
      %p323 = por %p321, %p322
      %s325 = sadd.s32 %s324, 1
      %p328 = scmp.eq.s32.totalorder %s80, 1
      %p329 = scmp.ne.s32.totalorder %s324, %s326
      %p330 = scmp.eq.s32.totalorder %s80, 0
      %p331 = por %p329, %p330
      %p332 = scmp.ne.s32.totalorder %s324, %s326
      %p333 = scmp.eq.s32.totalorder %s85, 1
      %p334 = por %p332, %p333
      %p335 = scmp.ne.s32.totalorder %s326, %s327
      %p336 = scmp.eq.s32.totalorder %s85, 0
      %p337 = por %p335, %p336
      %p338 = scmp.ne.s32.totalorder %s326, %s327
      %p339 = scmp.eq.s32.totalorder %s86, 1
      %p340 = por %p338, %p339
      %p342 = scmp.ne.s32.totalorder %s327, %s341
      %p343 = scmp.eq.s32.totalorder %s86, 0
      %p344 = por %p342, %p343
      %s346 = sadd.s32 %s345, 1
      %p349 = scmp.eq.s32.totalorder %s80, 1
      %p350 = scmp.ne.s32.totalorder %s345, %s347
      %p351 = scmp.eq.s32.totalorder %s80, 0
      %p352 = por %p350, %p351
      %p353 = scmp.ne.s32.totalorder %s345, %s347
      %p354 = scmp.eq.s32.totalorder %s85, 1
      %p355 = por %p353, %p354
      %p356 = scmp.ne.s32.totalorder %s347, %s348
      %p357 = scmp.eq.s32.totalorder %s85, 0
      %p358 = por %p356, %p357
      %p359 = scmp.ne.s32.totalorder %s347, %s348
      %p360 = scmp.eq.s32.totalorder %s86, 1
      %p361 = por %p359, %p360
      %p363 = scmp.ne.s32.totalorder %s348, %s362
      %p364 = scmp.eq.s32.totalorder %s86, 0
      %p365 = por %p363, %p364
      %s367 = sadd.s32 %s366, 1
      %p370 = scmp.eq.s32.totalorder %s80, 1
      %p371 = scmp.ne.s32.totalorder %s366, %s368
      %p372 = scmp.eq.s32.totalorder %s80, 0
      %p373 = por %p371, %p372
      %p374 = scmp.ne.s32.totalorder %s366, %s368
      %p375 = scmp.eq.s32.totalorder %s85, 1
      %p376 = por %p374, %p375
      %p377 = scmp.ne.s32.totalorder %s368, %s369
      %p378 = scmp.eq.s32.totalorder %s85, 0
      %p379 = por %p377, %p378
      %p380 = scmp.ne.s32.totalorder %s368, %s369
      %p381 = scmp.eq.s32.totalorder %s86, 1
      %p382 = por %p380, %p381
      %p384 = scmp.ne.s32.totalorder %s369, %s383
      %p385 = scmp.eq.s32.totalorder %s86, 0
      %p386 = por %p384, %p385
      %s388 = sadd.s32 %s387, 1
      %p391 = scmp.eq.s32.totalorder %s80, 1
      %p392 = scmp.ne.s32.totalorder %s387, %s389
      %p393 = scmp.eq.s32.totalorder %s80, 0
      %p394 = por %p392, %p393
      %p395 = scmp.ne.s32.totalorder %s387, %s389
      %p396 = scmp.eq.s32.totalorder %s85, 1
      %p397 = por %p395, %p396
      %p398 = scmp.ne.s32.totalorder %s389, %s390
      %p399 = scmp.eq.s32.totalorder %s85, 0
      %p400 = por %p398, %p399
      %p401 = scmp.ne.s32.totalorder %s389, %s390
      %p402 = scmp.eq.s32.totalorder %s86, 1
      %p403 = por %p401, %p402
      %p405 = scmp.ne.s32.totalorder %s390, %s404
      %p406 = scmp.eq.s32.totalorder %s86, 0
      %p407 = por %p405, %p406
      %s409 = sadd.s32 %s408, 1
      %p412 = scmp.eq.s32.totalorder %s80, 1
      %p413 = scmp.ne.s32.totalorder %s408, %s410
      %p414 = scmp.eq.s32.totalorder %s80, 0
      %p415 = por %p413, %p414
      %p416 = scmp.ne.s32.totalorder %s408, %s410
      %p417 = scmp.eq.s32.totalorder %s85, 1
      %p418 = por %p416, %p417
      %p419 = scmp.ne.s32.totalorder %s410, %s411
      %p420 = scmp.eq.s32.totalorder %s85, 0
      %p421 = por %p419, %p420
      %p422 = scmp.ne.s32.totalorder %s410, %s411
      %p423 = scmp.eq.s32.totalorder %s86, 1
      %p424 = por %p422, %p423
      %p426 = scmp.ne.s32.totalorder %s411, %s425
      %p427 = scmp.eq.s32.totalorder %s86, 0
      %p428 = por %p426, %p427
      %s430 = sadd.s32 %s429, 1
      %p433 = scmp.eq.s32.totalorder %s80, 1
      %p434 = scmp.ne.s32.totalorder %s429, %s431
      %p435 = scmp.eq.s32.totalorder %s80, 0
      %p436 = por %p434, %p435
      %p437 = scmp.ne.s32.totalorder %s429, %s431
      %p438 = scmp.eq.s32.totalorder %s85, 1
      %p439 = por %p437, %p438
      %p440 = scmp.ne.s32.totalorder %s431, %s432
      %p441 = scmp.eq.s32.totalorder %s85, 0
      %p442 = por %p440, %p441
      %p443 = scmp.ne.s32.totalorder %s431, %s432
      %p444 = scmp.eq.s32.totalorder %s86, 1
      %p445 = por %p443, %p444
      %p447 = scmp.ne.s32.totalorder %s432, %s446
      %p448 = scmp.eq.s32.totalorder %s86, 0
      %p449 = por %p447, %p448
      %s451 = sadd.s32 %s450, 1
      %p454 = scmp.eq.s32.totalorder %s80, 1
      %p455 = scmp.ne.s32.totalorder %s450, %s452
      %p456 = scmp.eq.s32.totalorder %s80, 0
      %p457 = por %p455, %p456
      %p458 = scmp.ne.s32.totalorder %s450, %s452
      %p459 = scmp.eq.s32.totalorder %s85, 1
      %p460 = por %p458, %p459
      %p461 = scmp.ne.s32.totalorder %s452, %s453
      %p462 = scmp.eq.s32.totalorder %s85, 0
      %p463 = por %p461, %p462
      %p464 = scmp.ne.s32.totalorder %s452, %s453
      %p465 = scmp.eq.s32.totalorder %s86, 1
      %p466 = por %p464, %p465
      %p468 = scmp.ne.s32.totalorder %s453, %s467
      %p469 = scmp.eq.s32.totalorder %s86, 0
      %p470 = por %p468, %p469
      %s472 = sadd.s32 %s471, 1
      %p475 = scmp.eq.s32.totalorder %s80, 1
      %p476 = scmp.ne.s32.totalorder %s471, %s473
      %p477 = scmp.eq.s32.totalorder %s80, 0
      %p478 = por %p476, %p477
      %p479 = scmp.ne.s32.totalorder %s471, %s473
      %p480 = scmp.eq.s32.totalorder %s85, 1
      %p481 = por %p479, %p480
      %p482 = scmp.ne.s32.totalorder %s473, %s474
      %p483 = scmp.eq.s32.totalorder %s85, 0
      %p484 = por %p482, %p483
      %p485 = scmp.ne.s32.totalorder %s473, %s474
      %p486 = scmp.eq.s32.totalorder %s86, 1
      %p487 = por %p485, %p486
      %p489 = scmp.ne.s32.totalorder %s474, %s488
      %p490 = scmp.eq.s32.totalorder %s86, 0
      %p491 = por %p489, %p490
      %s493 = sadd.s32 %s492, 1
      %p496 = scmp.eq.s32.totalorder %s80, 1
      %p497 = scmp.ne.s32.totalorder %s492, %s494
      %p498 = scmp.eq.s32.totalorder %s80, 0
      %p499 = por %p497, %p498
      %p500 = scmp.ne.s32.totalorder %s492, %s494
      %p501 = scmp.eq.s32.totalorder %s85, 1
      %p502 = por %p500, %p501
      %p503 = scmp.ne.s32.totalorder %s494, %s495
      %p504 = scmp.eq.s32.totalorder %s85, 0
      %p505 = por %p503, %p504
      %p506 = scmp.ne.s32.totalorder %s494, %s495
      %p507 = scmp.eq.s32.totalorder %s86, 1
      %p508 = por %p506, %p507
      %p510 = scmp.ne.s32.totalorder %s495, %s509
      %p511 = scmp.eq.s32.totalorder %s86, 0
      %p512 = por %p510, %p511
      %s514 = sadd.s32 %s513, 1
      %p517 = scmp.eq.s32.totalorder %s80, 1
      %p518 = scmp.ne.s32.totalorder %s513, %s515
      %p519 = scmp.eq.s32.totalorder %s80, 0
      %p520 = por %p518, %p519
      %p521 = scmp.ne.s32.totalorder %s513, %s515
      %p522 = scmp.eq.s32.totalorder %s85, 1
      %p523 = por %p521, %p522
      %p524 = scmp.ne.s32.totalorder %s515, %s516
      %p525 = scmp.eq.s32.totalorder %s85, 0
      %p526 = por %p524, %p525
      %p527 = scmp.ne.s32.totalorder %s515, %s516
      %p528 = scmp.eq.s32.totalorder %s86, 1
      %p529 = por %p527, %p528
      %p531 = scmp.ne.s32.totalorder %s516, %s530
      %p532 = scmp.eq.s32.totalorder %s86, 0
      %p533 = por %p531, %p532
      %s535 = sadd.s32 %s534, 1
      %p538 = scmp.eq.s32.totalorder %s80, 1
      %p539 = scmp.ne.s32.totalorder %s534, %s536
      %p540 = scmp.eq.s32.totalorder %s80, 0
      %p541 = por %p539, %p540
      %p542 = scmp.ne.s32.totalorder %s534, %s536
      %p543 = scmp.eq.s32.totalorder %s85, 1
      %p544 = por %p542, %p543
      %p545 = scmp.ne.s32.totalorder %s536, %s537
      %p546 = scmp.eq.s32.totalorder %s85, 0
      %p547 = por %p545, %p546
      %p548 = scmp.ne.s32.totalorder %s536, %s537
      %p549 = scmp.eq.s32.totalorder %s86, 1
      %p550 = por %p548, %p549
      %p552 = scmp.ne.s32.totalorder %s537, %s551
      %p553 = scmp.eq.s32.totalorder %s86, 0
      %p554 = por %p552, %p553
      %s556 = sadd.s32 %s555, 1
      %p559 = scmp.eq.s32.totalorder %s80, 1
      %p560 = scmp.ne.s32.totalorder %s555, %s557
      %p561 = scmp.eq.s32.totalorder %s80, 0
      %p562 = por %p560, %p561
      %p563 = scmp.ne.s32.totalorder %s555, %s557
      %p564 = scmp.eq.s32.totalorder %s85, 1
      %p565 = por %p563, %p564
      %p566 = scmp.ne.s32.totalorder %s557, %s558
      %p567 = scmp.eq.s32.totalorder %s85, 0
      %p568 = por %p566, %p567
      %p569 = scmp.ne.s32.totalorder %s557, %s558
      %p570 = scmp.eq.s32.totalorder %s86, 1
      %p571 = por %p569, %p570
      %p573 = scmp.ne.s32.totalorder %s558, %s572
      %p574 = scmp.eq.s32.totalorder %s86, 0
      %p575 = por %p573, %p574
      %s577 = sadd.s32 %s576, 1
      %p580 = scmp.eq.s32.totalorder %s80, 1
      %p581 = scmp.ne.s32.totalorder %s576, %s578
      %p582 = scmp.eq.s32.totalorder %s80, 0
      %p583 = por %p581, %p582
      %p584 = scmp.ne.s32.totalorder %s576, %s578
      %p585 = scmp.eq.s32.totalorder %s85, 1
      %p586 = por %p584, %p585
      %p587 = scmp.ne.s32.totalorder %s578, %s579
      %p588 = scmp.eq.s32.totalorder %s85, 0
      %p589 = por %p587, %p588
      %p590 = scmp.ne.s32.totalorder %s578, %s579
      %p591 = scmp.eq.s32.totalorder %s86, 1
      %p592 = por %p590, %p591
      %p594 = scmp.ne.s32.totalorder %s579, %s593
      %p595 = scmp.eq.s32.totalorder %s86, 0
      %p596 = por %p594, %p595
      %s598 = sadd.s32 %s597, 1
      %p601 = scmp.eq.s32.totalorder %s80, 1
      %p602 = scmp.ne.s32.totalorder %s597, %s599
      %p603 = scmp.eq.s32.totalorder %s80, 0
      %p604 = por %p602, %p603
      %p605 = scmp.ne.s32.totalorder %s597, %s599
      %p606 = scmp.eq.s32.totalorder %s85, 1
      %p607 = por %p605, %p606
      %p608 = scmp.ne.s32.totalorder %s599, %s600
      %p609 = scmp.eq.s32.totalorder %s85, 0
      %p610 = por %p608, %p609
      %p611 = scmp.ne.s32.totalorder %s599, %s600
      %p612 = scmp.eq.s32.totalorder %s86, 1
      %p613 = por %p611, %p612
      %p615 = scmp.ne.s32.totalorder %s600, %s614
      %p616 = scmp.eq.s32.totalorder %s86, 0
      %p617 = por %p615, %p616
      %s619 = sadd.s32 %s618, 1
      %p622 = scmp.eq.s32.totalorder %s80, 1
      %p623 = scmp.ne.s32.totalorder %s618, %s620
      %p624 = scmp.eq.s32.totalorder %s80, 0
      %p625 = por %p623, %p624
      %p626 = scmp.ne.s32.totalorder %s618, %s620
      %p627 = scmp.eq.s32.totalorder %s85, 1
      %p628 = por %p626, %p627
      %p629 = scmp.ne.s32.totalorder %s620, %s621
      %p630 = scmp.eq.s32.totalorder %s85, 0
      %p631 = por %p629, %p630
      %p632 = scmp.ne.s32.totalorder %s620, %s621
      %p633 = scmp.eq.s32.totalorder %s86, 1
      %p634 = por %p632, %p633
      %p636 = scmp.ne.s32.totalorder %s621, %s635
      %p637 = scmp.eq.s32.totalorder %s86, 0
      %p638 = por %p636, %p637
      %s640 = sadd.s32 %s639, 1
      %p643 = scmp.eq.s32.totalorder %s80, 1
      %p644 = scmp.ne.s32.totalorder %s639, %s641
      %p645 = scmp.eq.s32.totalorder %s80, 0
      %p646 = por %p644, %p645
      %p647 = scmp.ne.s32.totalorder %s639, %s641
      %p648 = scmp.eq.s32.totalorder %s85, 1
      %p649 = por %p647, %p648
      %p650 = scmp.ne.s32.totalorder %s641, %s642
      %p651 = scmp.eq.s32.totalorder %s85, 0
      %p652 = por %p650, %p651
      %p653 = scmp.ne.s32.totalorder %s641, %s642
      %p654 = scmp.eq.s32.totalorder %s86, 1
      %p655 = por %p653, %p654
      %p657 = scmp.ne.s32.totalorder %s642, %s656
      %p658 = scmp.eq.s32.totalorder %s86, 0
      %p659 = por %p657, %p658
      %s661 = sadd.s32 %s660, 1
      %p664 = scmp.eq.s32.totalorder %s80, 1
      %p665 = scmp.ne.s32.totalorder %s660, %s662
      %p666 = scmp.eq.s32.totalorder %s80, 0
      %p667 = por %p665, %p666
      %p668 = scmp.ne.s32.totalorder %s660, %s662
      %p669 = scmp.eq.s32.totalorder %s85, 1
      %p670 = por %p668, %p669
      %p671 = scmp.ne.s32.totalorder %s662, %s663
      %p672 = scmp.eq.s32.totalorder %s85, 0
      %p673 = por %p671, %p672
      %p674 = scmp.ne.s32.totalorder %s662, %s663
      %p675 = scmp.eq.s32.totalorder %s86, 1
      %p676 = por %p674, %p675
      %p678 = scmp.ne.s32.totalorder %s663, %s677
      %p679 = scmp.eq.s32.totalorder %s86, 0
      %p680 = por %p678, %p679
      %s682 = sadd.s32 %s681, 1
      %p685 = scmp.eq.s32.totalorder %s80, 1
      %p686 = scmp.ne.s32.totalorder %s681, %s683
      %p687 = scmp.eq.s32.totalorder %s80, 0
      %p688 = por %p686, %p687
      %p689 = scmp.ne.s32.totalorder %s681, %s683
      %p690 = scmp.eq.s32.totalorder %s85, 1
      %p691 = por %p689, %p690
      %p692 = scmp.ne.s32.totalorder %s683, %s684
      %p693 = scmp.eq.s32.totalorder %s85, 0
      %p694 = por %p692, %p693
      %p695 = scmp.ne.s32.totalorder %s683, %s684
      %p696 = scmp.eq.s32.totalorder %s86, 1
      %p697 = por %p695, %p696
      %p699 = scmp.ne.s32.totalorder %s684, %s698
      %p700 = scmp.eq.s32.totalorder %s86, 0
      %p701 = por %p699, %p700
      %s703 = sadd.s32 %s702, 1
      %p706 = scmp.eq.s32.totalorder %s80, 1
      %p707 = scmp.ne.s32.totalorder %s702, %s704
      %p708 = scmp.eq.s32.totalorder %s80, 0
      %p709 = por %p707, %p708
      %p710 = scmp.ne.s32.totalorder %s702, %s704
      %p711 = scmp.eq.s32.totalorder %s85, 1
      %p712 = por %p710, %p711
      %p713 = scmp.ne.s32.totalorder %s704, %s705
      %p714 = scmp.eq.s32.totalorder %s85, 0
      %p715 = por %p713, %p714
      %p716 = scmp.ne.s32.totalorder %s704, %s705
      %p717 = scmp.eq.s32.totalorder %s86, 1
      %p718 = por %p716, %p717
      %p720 = scmp.ne.s32.totalorder %s705, %s719
      %p721 = scmp.eq.s32.totalorder %s86, 0
      %p722 = por %p720, %p721
      %s723 = ssub.s32 %s80, %s87
      %p724 = scmp.eq.s32.totalorder %s723, 0
      %s726 = sadd.s32 %s725, 1
      %s727 = scalar_select %p724, %s725, %s726
      %p730 = pneg %p724
      %p731 = scmp.eq.s32.totalorder %s80, 1
      %p732 = por %p730, %p731
      %p733 = scmp.ne.s32.totalorder %s725, %s728
      %p734 = scmp.eq.s32.totalorder %s80, 0
      %p735 = por %p733, %p734
      %p736 = scmp.ne.s32.totalorder %s725, %s728
      %p737 = scmp.eq.s32.totalorder %s85, 1
      %p738 = por %p736, %p737
      %p739 = scmp.ne.s32.totalorder %s728, %s729
      %p740 = scmp.eq.s32.totalorder %s85, 0
      %p741 = por %p739, %p740
      %p742 = scmp.ne.s32.totalorder %s728, %s729
      %p743 = scmp.eq.s32.totalorder %s86, 1
      %p744 = por %p742, %p743
      %p746 = scmp.ne.s32.totalorder %s729, %s745
      %p747 = scmp.eq.s32.totalorder %s86, 0
      %p748 = por %p746, %p747
      %p749 = scmp.le.s32.totalorder 1, %s80
      %p750 = scmp.lt.s32.totalorder %s80, 3
      %p751 = pnand %p749, %p750
      %p752 = pneg %p751
      // Predicated region
      $region9: #{encoder_with_svtr.1} parent=5 // pred_check
        _
      $region10: #{encoder_with_svtr.1} parent=5 // pred_check_branch
        %754 = sbr.rel (%p751) target = $region12
      $region11: #{encoder_with_svtr.1} parent=5 // pred_region
        %s755 = ssub.s32 %s80, 1
        // Predicated region
        $region13: #{encoder_with_svtr.1} parent=11 // pred_check
          %p756 = pneg %p127
        $region14: #{encoder_with_svtr.1} parent=11 // pred_check_branch
          %758 = sbr.rel (%p756) target = $region16
        $region15: #{encoder_with_svtr.1} parent=11 // pred_region
          _
        $region16: #{encoder_with_svtr.1} parent=11 // pred_fallthru
          _
        // Predicated region
        $region17: #{encoder_with_svtr.1} parent=11 // pred_check
          %p759 = pneg %p148
        $region18: #{encoder_with_svtr.1} parent=11 // pred_check_branch
          %761 = sbr.rel (%p759) target = $region20
        $region19: #{encoder_with_svtr.1} parent=11 // pred_region
          %s763 = ssub.s32 16, 16
          %764 = vsyncadd [#allocation3], %s763
          %s766 = sshll.u32 [#allocation2], 4
          %s767 = int_to_ptr.vmem [resolvable:$true] %s766
          %769 = dma.hbm_to_vmem [thread:$0]  %s5, 16, %s767, [#allocation3]
        $region20: #{encoder_with_svtr.1} parent=11 // pred_fallthru
          _
        // Predicated region
        $region21: #{encoder_with_svtr.1} parent=11 // pred_check
          %p770 = pneg %p169
        $region22: #{encoder_with_svtr.1} parent=11 // pred_check_branch
          %772 = sbr.rel (%p770) target = $region24
        $region23: #{encoder_with_svtr.1} parent=11 // pred_region
          %s774 = ssub.s32 1024, 1024
          %775 = vsyncadd [#allocation5], %s774
          %s776 = sshll.u32 [#allocation4], 4
          %s777 = int_to_ptr.vmem [resolvable:$true] %s776
          %782 = dma.hbm_to_vmem [thread:$0]  %s7, 1024, %s777, [#allocation5], 64, 64, 4
        $region24: #{encoder_with_svtr.1} parent=11 // pred_fallthru
          _
        // Predicated region
        $region25: #{encoder_with_svtr.1} parent=11 // pred_check
          %p783 = pneg %p190
        $region26: #{encoder_with_svtr.1} parent=11 // pred_check_branch
          %785 = sbr.rel (%p783) target = $region28
        $region27: #{encoder_with_svtr.1} parent=11 // pred_region
          %s787 = ssub.s32 16, 16
          %788 = vsyncadd [#allocation5], %s787
          %s790 = sshll.u32 [#allocation6], 4
          %s791 = int_to_ptr.vmem [resolvable:$true] %s790
          %793 = dma.hbm_to_vmem [thread:$0]  %s9, 16, %s791, [#allocation5]
        $region28: #{encoder_with_svtr.1} parent=11 // pred_fallthru
          _
        // Predicated region
        $region29: #{encoder_with_svtr.1} parent=11 // pred_check
          %p794 = pneg %p211
        $region30: #{encoder_with_svtr.1} parent=11 // pred_check_branch
          %796 = sbr.rel (%p794) target = $region32
        $region31: #{encoder_with_svtr.1} parent=11 // pred_region
          %s798 = ssub.s32 32, 32
          %799 = vsyncadd [#allocation8], %s798
          %s800 = sshll.u32 [#allocation7], 4
          %s801 = int_to_ptr.vmem [resolvable:$true] %s800
          %806 = dma.hbm_to_vmem [thread:$0]  %s11, 32, %s801, [#allocation8], 16, 16, 1
        $region32: #{encoder_with_svtr.1} parent=11 // pred_fallthru
          _
        // Predicated region
        $region33: #{encoder_with_svtr.1} parent=11 // pred_check
          %p807 = pneg %p232
        $region34: #{encoder_with_svtr.1} parent=11 // pred_check_branch
          %809 = sbr.rel (%p807) target = $region36
        $region35: #{encoder_with_svtr.1} parent=11 // pred_region
          %s811 = ssub.s32 32, 32
          %812 = vsyncadd [#allocation8], %s811
          %s813 = sshll.u32 [#allocation9], 4
          %s814 = int_to_ptr.vmem [resolvable:$true] %s813
          %819 = dma.hbm_to_vmem [thread:$0]  %s13, 32, %s814, [#allocation8], 16, 16, 1
        $region36: #{encoder_with_svtr.1} parent=11 // pred_fallthru
          _
        // Predicated region
        $region37: #{encoder_with_svtr.1} parent=11 // pred_check
          %p820 = pneg %p253
        $region38: #{encoder_with_svtr.1} parent=11 // pred_check_branch
          %822 = sbr.rel (%p820) target = $region40
        $region39: #{encoder_with_svtr.1} parent=11 // pred_region
          _
        $region40: #{encoder_with_svtr.1} parent=11 // pred_fallthru
          _
        // Predicated region
        $region41: #{encoder_with_svtr.1} parent=11 // pred_check
          %p823 = pneg %p274
        $region42: #{encoder_with_svtr.1} parent=11 // pred_check_branch
          %825 = sbr.rel (%p823) target = $region44
        $region43: #{encoder_with_svtr.1} parent=11 // pred_region
          _
        $region44: #{encoder_with_svtr.1} parent=11 // pred_fallthru
          _
        // Predicated region
        $region45: #{encoder_with_svtr.1} parent=11 // pred_check
          %p826 = pneg %p295
        $region46: #{encoder_with_svtr.1} parent=11 // pred_check_branch
          %828 = sbr.rel (%p826) target = $region48
        $region47: #{encoder_with_svtr.1} parent=11 // pred_region
          _
        $region48: #{encoder_with_svtr.1} parent=11 // pred_fallthru
          _
        // Predicated region
        $region49: #{encoder_with_svtr.1} parent=11 // pred_check
          %p829 = pneg %p316
        $region50: #{encoder_with_svtr.1} parent=11 // pred_check_branch
          %831 = sbr.rel (%p829) target = $region52
        $region51: #{encoder_with_svtr.1} parent=11 // pred_region
          _
        $region52: #{encoder_with_svtr.1} parent=11 // pred_fallthru
          _
        // Predicated region
        $region53: #{encoder_with_svtr.1} parent=11 // pred_check
          %p832 = pneg %p337
        $region54: #{encoder_with_svtr.1} parent=11 // pred_check_branch
          %834 = sbr.rel (%p832) target = $region56
        $region55: #{encoder_with_svtr.1} parent=11 // pred_region
          %s836 = ssub.s32 256, 256
          %837 = vsyncadd [#allocation11], %s836
          %s838 = sshll.u32 [#allocation10], 4
          %s839 = int_to_ptr.vmem [resolvable:$true] %s838
          %844 = dma.hbm_to_vmem [thread:$0]  %s23, 256, %s839, [#allocation11], 16, 16, 1
        $region56: #{encoder_with_svtr.1} parent=11 // pred_fallthru
          _
        // Predicated region
        $region57: #{encoder_with_svtr.1} parent=11 // pred_check
          %p845 = pneg %p358
        $region58: #{encoder_with_svtr.1} parent=11 // pred_check_branch
          %847 = sbr.rel (%p845) target = $region60
        $region59: #{encoder_with_svtr.1} parent=11 // pred_region
          %s849 = ssub.s32 256, 256
          %850 = vsyncadd [#allocation11], %s849
          %s851 = sshll.u32 [#allocation12], 4
          %s852 = int_to_ptr.vmem [resolvable:$true] %s851
          %857 = dma.hbm_to_vmem [thread:$0]  %s25, 256, %s852, [#allocation11], 16, 16, 1
        $region60: #{encoder_with_svtr.1} parent=11 // pred_fallthru
          _
        // Predicated region
        $region61: #{encoder_with_svtr.1} parent=11 // pred_check
          %p858 = pneg %p379
        $region62: #{encoder_with_svtr.1} parent=11 // pred_check_branch
          %860 = sbr.rel (%p858) target = $region64
        $region63: #{encoder_with_svtr.1} parent=11 // pred_region
          %s862 = ssub.s32 16384, 16384
          %863 = vsyncadd [#allocation14], %s862
          %s864 = sshll.u32 [#allocation13], 4
          %s865 = int_to_ptr.vmem [resolvable:$true] %s864
          %870 = dma.hbm_to_vmem [thread:$0]  %s27, 16384, %s865, [#allocation14], 64, 64, 4
        $region64: #{encoder_with_svtr.1} parent=11 // pred_fallthru
          _
        // Predicated region
        $region65: #{encoder_with_svtr.1} parent=11 // pred_check
          %p871 = pneg %p400
        $region66: #{encoder_with_svtr.1} parent=11 // pred_check_branch
          %873 = sbr.rel (%p871) target = $region68
        $region67: #{encoder_with_svtr.1} parent=11 // pred_region
          %s875 = ssub.s32 32, 32
          %876 = vsyncadd [#allocation14], %s875
          %s877 = sshll.u32 [#allocation15], 4
          %s878 = int_to_ptr.vmem [resolvable:$true] %s877
          %883 = dma.hbm_to_vmem [thread:$0]  %s29, 32, %s878, [#allocation14], 16, 16, 1
        $region68: #{encoder_with_svtr.1} parent=11 // pred_fallthru
          _
        // Predicated region
        $region69: #{encoder_with_svtr.1} parent=11 // pred_check
          %p884 = pneg %p421
        $region70: #{encoder_with_svtr.1} parent=11 // pred_check_branch
          %886 = sbr.rel (%p884) target = $region72
        $region71: #{encoder_with_svtr.1} parent=11 // pred_region
          %s888 = ssub.s32 32, 32
          %889 = vsyncadd [#allocation17], %s888
          %s890 = sshll.u32 [#allocation16], 4
          %s891 = int_to_ptr.vmem [resolvable:$true] %s890
          %896 = dma.hbm_to_vmem [thread:$0]  %s31, 32, %s891, [#allocation17], 16, 16, 1
        $region72: #{encoder_with_svtr.1} parent=11 // pred_fallthru
          _
        // Predicated region
        $region73: #{encoder_with_svtr.1} parent=11 // pred_check
          %p897 = pneg %p442
        $region74: #{encoder_with_svtr.1} parent=11 // pred_check_branch
          %899 = sbr.rel (%p897) target = $region76
        $region75: #{encoder_with_svtr.1} parent=11 // pred_region
          %s901 = ssub.s32 32, 32
          %902 = vsyncadd [#allocation17], %s901
          %s903 = sshll.u32 [#allocation18], 4
          %s904 = int_to_ptr.vmem [resolvable:$true] %s903
          %909 = dma.hbm_to_vmem [thread:$0]  %s33, 32, %s904, [#allocation17], 16, 16, 1
        $region76: #{encoder_with_svtr.1} parent=11 // pred_fallthru
          _
        // Predicated region
        $region77: #{encoder_with_svtr.1} parent=11 // pred_check
          %p910 = pneg %p463
        $region78: #{encoder_with_svtr.1} parent=11 // pred_check_branch
          %912 = sbr.rel (%p910) target = $region80
        $region79: #{encoder_with_svtr.1} parent=11 // pred_region
          %s914 = ssub.s32 2048, 2048
          %915 = vsyncadd [#allocation20], %s914
          %s916 = sshll.u32 [#allocation19], 4
          %s917 = int_to_ptr.vmem [resolvable:$true] %s916
          %922 = dma.hbm_to_vmem [thread:$0]  %s35, 2048, %s917, [#allocation20], 64, 64, 4
        $region80: #{encoder_with_svtr.1} parent=11 // pred_fallthru
          _
        // Predicated region
        $region81: #{encoder_with_svtr.1} parent=11 // pred_check
          %p923 = pneg %p484
        $region82: #{encoder_with_svtr.1} parent=11 // pred_check_branch
          %925 = sbr.rel (%p923) target = $region84
        $region83: #{encoder_with_svtr.1} parent=11 // pred_region
          %s927 = ssub.s32 32, 32
          %928 = vsyncadd [#allocation20], %s927
          %s929 = sshll.u32 [#allocation21], 4
          %s930 = int_to_ptr.vmem [resolvable:$true] %s929
          %935 = dma.hbm_to_vmem [thread:$0]  %s37, 32, %s930, [#allocation20], 16, 16, 1
        $region84: #{encoder_with_svtr.1} parent=11 // pred_fallthru
          _
        // Predicated region
        $region85: #{encoder_with_svtr.1} parent=11 // pred_check
          %p936 = pneg %p505
        $region86: #{encoder_with_svtr.1} parent=11 // pred_check_branch
          %938 = sbr.rel (%p936) target = $region88
        $region87: #{encoder_with_svtr.1} parent=11 // pred_region
          %s940 = ssub.s32 2048, 2048
          %941 = vsyncadd [#allocation23], %s940
          %s942 = sshll.u32 [#allocation22], 4
          %s943 = int_to_ptr.vmem [resolvable:$true] %s942
          %948 = dma.hbm_to_vmem [thread:$0]  %s39, 2048, %s943, [#allocation23], 64, 64, 4
        $region88: #{encoder_with_svtr.1} parent=11 // pred_fallthru
          _
        // Predicated region
        $region89: #{encoder_with_svtr.1} parent=11 // pred_check
          %p949 = pneg %p526
        $region90: #{encoder_with_svtr.1} parent=11 // pred_check_branch
          %951 = sbr.rel (%p949) target = $region92
        $region91: #{encoder_with_svtr.1} parent=11 // pred_region
          %s953 = ssub.s32 32, 32
          %954 = vsyncadd [#allocation23], %s953
          %s955 = sshll.u32 [#allocation24], 4
          %s956 = int_to_ptr.vmem [resolvable:$true] %s955
          %961 = dma.hbm_to_vmem [thread:$0]  %s41, 32, %s956, [#allocation23], 16, 16, 1
        $region92: #{encoder_with_svtr.1} parent=11 // pred_fallthru
          _
        // Predicated region
        $region93: #{encoder_with_svtr.1} parent=11 // pred_check
          %p962 = pneg %p547
        $region94: #{encoder_with_svtr.1} parent=11 // pred_check_branch
          %964 = sbr.rel (%p962) target = $region96
        $region95: #{encoder_with_svtr.1} parent=11 // pred_region
          %s966 = ssub.s32 16, 16
          %967 = vsyncadd [#allocation26], %s966
          %s969 = sshll.u32 [#allocation25], 4
          %s970 = int_to_ptr.vmem [resolvable:$true] %s969
          %972 = dma.hbm_to_vmem [thread:$0]  %s43, 16, %s970, [#allocation26]
        $region96: #{encoder_with_svtr.1} parent=11 // pred_fallthru
          _
        // Predicated region
        $region97: #{encoder_with_svtr.1} parent=11 // pred_check
          %p973 = pneg %p568
        $region98: #{encoder_with_svtr.1} parent=11 // pred_check_branch
          %975 = sbr.rel (%p973) target = $region100
        $region99: #{encoder_with_svtr.1} parent=11 // pred_region
          %s977 = ssub.s32 16, 16
          %978 = vsyncadd [#allocation26], %s977
          %s980 = sshll.u32 [#allocation27], 4
          %s981 = int_to_ptr.vmem [resolvable:$true] %s980
          %983 = dma.hbm_to_vmem [thread:$0]  %s45, 16, %s981, [#allocation26]
        $region100: #{encoder_with_svtr.1} parent=11 // pred_fallthru
          _
        // Predicated region
        $region101: #{encoder_with_svtr.1} parent=11 // pred_check
          %p984 = pneg %p589
        $region102: #{encoder_with_svtr.1} parent=11 // pred_check_branch
          %986 = sbr.rel (%p984) target = $region104
        $region103: #{encoder_with_svtr.1} parent=11 // pred_region
          %s988 = ssub.s32 1024, 1024
          %989 = vsyncadd [#allocation29], %s988
          %s990 = sshll.u32 [#allocation28], 4
          %s991 = int_to_ptr.vmem [resolvable:$true] %s990
          %996 = dma.hbm_to_vmem [thread:$0]  %s47, 1024, %s991, [#allocation29], 64, 64, 4
        $region104: #{encoder_with_svtr.1} parent=11 // pred_fallthru
          _
        // Predicated region
        $region105: #{encoder_with_svtr.1} parent=11 // pred_check
          %p997 = pneg %p610
        $region106: #{encoder_with_svtr.1} parent=11 // pred_check_branch
          %999 = sbr.rel (%p997) target = $region108
        $region107: #{encoder_with_svtr.1} parent=11 // pred_region
          %s1001 = ssub.s32 16, 16
          %1002 = vsyncadd [#allocation29], %s1001
          %s1004 = sshll.u32 [#allocation30], 4
          %s1005 = int_to_ptr.vmem [resolvable:$true] %s1004
          %1007 = dma.hbm_to_vmem [thread:$0]  %s49, 16, %s1005, [#allocation29]
        $region108: #{encoder_with_svtr.1} parent=11 // pred_fallthru
          _
        // Predicated region
        $region109: #{encoder_with_svtr.1} parent=11 // pred_check
          %p1008 = pneg %p631
        $region110: #{encoder_with_svtr.1} parent=11 // pred_check_branch
          %1010 = sbr.rel (%p1008) target = $region112
        $region111: #{encoder_with_svtr.1} parent=11 // pred_region
          %s1012 = ssub.s32 384, 384
          %1013 = vsyncadd [#allocation32], %s1012
          %s1014 = sshll.u32 [#allocation31], 4
          %s1015 = int_to_ptr.vmem [resolvable:$true] %s1014
          %1020 = dma.hbm_to_vmem [thread:$0]  %s51, 384, %s1015, [#allocation32], 64, 64, 4
        $region112: #{encoder_with_svtr.1} parent=11 // pred_fallthru
          _
        // Predicated region
        $region113: #{encoder_with_svtr.1} parent=11 // pred_check
          %p1021 = pneg %p652
        $region114: #{encoder_with_svtr.1} parent=11 // pred_check_branch
          %1023 = sbr.rel (%p1021) target = $region116
        $region115: #{encoder_with_svtr.1} parent=11 // pred_region
          %s1025 = ssub.s32 3072, 3072
          %1026 = vsyncadd [#allocation32], %s1025
          %s1027 = sshll.u32 [#allocation33], 4
          %s1028 = int_to_ptr.vmem [resolvable:$true] %s1027
          %1033 = dma.hbm_to_vmem [thread:$0]  %s53, 3072, %s1028, [#allocation32], 64, 64, 4
        $region116: #{encoder_with_svtr.1} parent=11 // pred_fallthru
          _
        // Predicated region
        $region117: #{encoder_with_svtr.1} parent=11 // pred_check
          %p1034 = pneg %p673
        $region118: #{encoder_with_svtr.1} parent=11 // pred_check_branch
          %1036 = sbr.rel (%p1034) target = $region120
        $region119: #{encoder_with_svtr.1} parent=11 // pred_region
          %s1038 = ssub.s32 16, 16
          %1039 = vsyncadd [#allocation35], %s1038
          %s1041 = sshll.u32 [#allocation34], 4
          %s1042 = int_to_ptr.vmem [resolvable:$true] %s1041
          %1044 = dma.hbm_to_vmem [thread:$0]  %s55, 16, %s1042, [#allocation35]
        $region120: #{encoder_with_svtr.1} parent=11 // pred_fallthru
          _
        // Predicated region
        $region121: #{encoder_with_svtr.1} parent=11 // pred_check
          %p1045 = pneg %p694
        $region122: #{encoder_with_svtr.1} parent=11 // pred_check_branch
          %1047 = sbr.rel (%p1045) target = $region124
        $region123: #{encoder_with_svtr.1} parent=11 // pred_region
          %s1049 = ssub.s32 1024, 1024
          %1050 = vsyncadd [#allocation35], %s1049
          %s1051 = sshll.u32 [#allocation36], 4
          %s1052 = int_to_ptr.vmem [resolvable:$true] %s1051
          %1057 = dma.hbm_to_vmem [thread:$0]  %s57, 1024, %s1052, [#allocation35], 64, 64, 4
        $region124: #{encoder_with_svtr.1} parent=11 // pred_fallthru
          _
        // Predicated region
        $region125: #{encoder_with_svtr.1} parent=11 // pred_check
          %p1058 = pneg %p715
        $region126: #{encoder_with_svtr.1} parent=11 // pred_check_branch
          %1060 = sbr.rel (%p1058) target = $region128
        $region127: #{encoder_with_svtr.1} parent=11 // pred_region
          %s1062 = ssub.s32 16, 16
          %1063 = vsyncadd [#allocation38], %s1062
          %s1065 = sshll.u32 [#allocation37], 4
          %s1066 = int_to_ptr.vmem [resolvable:$true] %s1065
          %1068 = dma.hbm_to_vmem [thread:$0]  %s59, 16, %s1066, [#allocation38]
        $region128: #{encoder_with_svtr.1} parent=11 // pred_fallthru
          _
      $region12: #{encoder_with_svtr.1} parent=5 // pred_fallthru
        _
      %p1069 = scmp.lt.s32.totalorder %s80, 2
      // Predicated region
      $region129: #{encoder_with_svtr.1} parent=5 // pred_check
        %p1070 = pneg %p1069
      $region130: #{encoder_with_svtr.1} parent=5 // pred_check_branch
        %1072 = sbr.rel (%p1070) target = $region132
      $region131: #{encoder_with_svtr.1} parent=5 // pred_region
        // Predicated region
        $region133: #{encoder_with_svtr.1} parent=131 // pred_check
          %p1073 = pneg %p100
        $region134: #{encoder_with_svtr.1} parent=131 // pred_check_branch
          %1075 = sbr.rel (%p1073) target = $region136
        $region135: #{encoder_with_svtr.1} parent=131 // pred_region
          %s1076 = smul.u32 4, %s80
          %p1077 = scmp.lt.s32.totalorder %s1076, 7
          %s1078 = scalar_select %p1077, %s1076, 7
          %s1079 = smul.addr %s1078, 2
          %s1080 = smul.addr %s1079, 8
          %s1081 = scalar_lea.vmem %s1, %s1080
          %s1082 = smul.u32 4, %s80
        $region136: #{encoder_with_svtr.1} parent=131 // pred_fallthru
          _
      $region132: #{encoder_with_svtr.1} parent=5 // pred_fallthru
        _
      %p1083 = scmp.le.s32.totalorder 1, %s80
      %p1084 = scmp.lt.s32.totalorder %s80, 3
      %p1085 = pnand %p1083, %p1084
      %p1086 = pneg %p1085
      // Predicated region
      $region137: #{encoder_with_svtr.1} parent=5 // pred_check
        _
      $region138: #{encoder_with_svtr.1} parent=5 // pred_check_branch
        %1088 = sbr.rel (%p1085) target = $region140
      $region139: #{encoder_with_svtr.1} parent=5 // pred_region
        %s1089 = ssub.s32 %s80, 1
        // Predicated region
        $region141: #{encoder_with_svtr.1} parent=139 // pred_check
          %p1090 = pneg %p148
        $region142: #{encoder_with_svtr.1} parent=139 // pred_check_branch
          %1092 = sbr.rel (%p1090) target = $region144
        $region143: #{encoder_with_svtr.1} parent=139 // pred_region
          %1093 = dma.done [#allocation3], 16
        $region144: #{encoder_with_svtr.1} parent=139 // pred_fallthru
          _
        // Predicated region
        $region145: #{encoder_with_svtr.1} parent=139 // pred_check
          %p1094 = pneg %p169
        $region146: #{encoder_with_svtr.1} parent=139 // pred_check_branch
          %1096 = sbr.rel (%p1094) target = $region148
        $region147: #{encoder_with_svtr.1} parent=139 // pred_region
          %1097 = dma.done [#allocation5], 1024
        $region148: #{encoder_with_svtr.1} parent=139 // pred_fallthru
          _
        // Predicated region
        $region149: #{encoder_with_svtr.1} parent=139 // pred_check
          %p1098 = pneg %p190
        $region150: #{encoder_with_svtr.1} parent=139 // pred_check_branch
          %1100 = sbr.rel (%p1098) target = $region152
        $region151: #{encoder_with_svtr.1} parent=139 // pred_region
          %1101 = dma.done [#allocation5], 16
        $region152: #{encoder_with_svtr.1} parent=139 // pred_fallthru
          _
        // Predicated region
        $region153: #{encoder_with_svtr.1} parent=139 // pred_check
          %p1102 = pneg %p211
        $region154: #{encoder_with_svtr.1} parent=139 // pred_check_branch
          %1104 = sbr.rel (%p1102) target = $region156
        $region155: #{encoder_with_svtr.1} parent=139 // pred_region
          %1105 = dma.done [#allocation8], 32
        $region156: #{encoder_with_svtr.1} parent=139 // pred_fallthru
          _
        // Predicated region
        $region157: #{encoder_with_svtr.1} parent=139 // pred_check
          %p1106 = pneg %p232
        $region158: #{encoder_with_svtr.1} parent=139 // pred_check_branch
          %1108 = sbr.rel (%p1106) target = $region160
        $region159: #{encoder_with_svtr.1} parent=139 // pred_region
          %1109 = dma.done [#allocation8], 32
        $region160: #{encoder_with_svtr.1} parent=139 // pred_fallthru
          _
        // Predicated region
        $region161: #{encoder_with_svtr.1} parent=139 // pred_check
          %p1110 = pneg %p337
        $region162: #{encoder_with_svtr.1} parent=139 // pred_check_branch
          %1112 = sbr.rel (%p1110) target = $region164
        $region163: #{encoder_with_svtr.1} parent=139 // pred_region
          %1113 = dma.done [#allocation11], 256
        $region164: #{encoder_with_svtr.1} parent=139 // pred_fallthru
          _
        // Predicated region
        $region165: #{encoder_with_svtr.1} parent=139 // pred_check
          %p1114 = pneg %p358
        $region166: #{encoder_with_svtr.1} parent=139 // pred_check_branch
          %1116 = sbr.rel (%p1114) target = $region168
        $region167: #{encoder_with_svtr.1} parent=139 // pred_region
          %1117 = dma.done [#allocation11], 256
        $region168: #{encoder_with_svtr.1} parent=139 // pred_fallthru
          _
        // Predicated region
        $region169: #{encoder_with_svtr.1} parent=139 // pred_check
          %p1118 = pneg %p379
        $region170: #{encoder_with_svtr.1} parent=139 // pred_check_branch
          %1120 = sbr.rel (%p1118) target = $region172
        $region171: #{encoder_with_svtr.1} parent=139 // pred_region
          %1121 = dma.done [#allocation14], 16384
        $region172: #{encoder_with_svtr.1} parent=139 // pred_fallthru
          _
        // Predicated region
        $region173: #{encoder_with_svtr.1} parent=139 // pred_check
          %p1122 = pneg %p400
        $region174: #{encoder_with_svtr.1} parent=139 // pred_check_branch
          %1124 = sbr.rel (%p1122) target = $region176
        $region175: #{encoder_with_svtr.1} parent=139 // pred_region
          %1125 = dma.done [#allocation14], 32
        $region176: #{encoder_with_svtr.1} parent=139 // pred_fallthru
          _
        // Predicated region
        $region177: #{encoder_with_svtr.1} parent=139 // pred_check
          %p1126 = pneg %p421
        $region178: #{encoder_with_svtr.1} parent=139 // pred_check_branch
          %1128 = sbr.rel (%p1126) target = $region180
        $region179: #{encoder_with_svtr.1} parent=139 // pred_region
          %1129 = dma.done [#allocation17], 32
        $region180: #{encoder_with_svtr.1} parent=139 // pred_fallthru
          _
        // Predicated region
        $region181: #{encoder_with_svtr.1} parent=139 // pred_check
          %p1130 = pneg %p442
        $region182: #{encoder_with_svtr.1} parent=139 // pred_check_branch
          %1132 = sbr.rel (%p1130) target = $region184
        $region183: #{encoder_with_svtr.1} parent=139 // pred_region
          %1133 = dma.done [#allocation17], 32
        $region184: #{encoder_with_svtr.1} parent=139 // pred_fallthru
          _
        // Predicated region
        $region185: #{encoder_with_svtr.1} parent=139 // pred_check
          %p1134 = pneg %p463
        $region186: #{encoder_with_svtr.1} parent=139 // pred_check_branch
          %1136 = sbr.rel (%p1134) target = $region188
        $region187: #{encoder_with_svtr.1} parent=139 // pred_region
          %1137 = dma.done [#allocation20], 2048
        $region188: #{encoder_with_svtr.1} parent=139 // pred_fallthru
          _
        // Predicated region
        $region189: #{encoder_with_svtr.1} parent=139 // pred_check
          %p1138 = pneg %p484
        $region190: #{encoder_with_svtr.1} parent=139 // pred_check_branch
          %1140 = sbr.rel (%p1138) target = $region192
        $region191: #{encoder_with_svtr.1} parent=139 // pred_region
          %1141 = dma.done [#allocation20], 32
        $region192: #{encoder_with_svtr.1} parent=139 // pred_fallthru
          _
        // Predicated region
        $region193: #{encoder_with_svtr.1} parent=139 // pred_check
          %p1142 = pneg %p505
        $region194: #{encoder_with_svtr.1} parent=139 // pred_check_branch
          %1144 = sbr.rel (%p1142) target = $region196
        $region195: #{encoder_with_svtr.1} parent=139 // pred_region
          %1145 = dma.done [#allocation23], 2048
        $region196: #{encoder_with_svtr.1} parent=139 // pred_fallthru
          _
        // Predicated region
        $region197: #{encoder_with_svtr.1} parent=139 // pred_check
          %p1146 = pneg %p526
        $region198: #{encoder_with_svtr.1} parent=139 // pred_check_branch
          %1148 = sbr.rel (%p1146) target = $region200
        $region199: #{encoder_with_svtr.1} parent=139 // pred_region
          %1149 = dma.done [#allocation23], 32
        $region200: #{encoder_with_svtr.1} parent=139 // pred_fallthru
          _
        // Predicated region
        $region201: #{encoder_with_svtr.1} parent=139 // pred_check
          %p1150 = pneg %p547
        $region202: #{encoder_with_svtr.1} parent=139 // pred_check_branch
          %1152 = sbr.rel (%p1150) target = $region204
        $region203: #{encoder_with_svtr.1} parent=139 // pred_region
          %1153 = dma.done [#allocation26], 16
        $region204: #{encoder_with_svtr.1} parent=139 // pred_fallthru
          _
        // Predicated region
        $region205: #{encoder_with_svtr.1} parent=139 // pred_check
          %p1154 = pneg %p568
        $region206: #{encoder_with_svtr.1} parent=139 // pred_check_branch
          %1156 = sbr.rel (%p1154) target = $region208
        $region207: #{encoder_with_svtr.1} parent=139 // pred_region
          %1157 = dma.done [#allocation26], 16
        $region208: #{encoder_with_svtr.1} parent=139 // pred_fallthru
          _
        // Predicated region
        $region209: #{encoder_with_svtr.1} parent=139 // pred_check
          %p1158 = pneg %p589
        $region210: #{encoder_with_svtr.1} parent=139 // pred_check_branch
          %1160 = sbr.rel (%p1158) target = $region212
        $region211: #{encoder_with_svtr.1} parent=139 // pred_region
          %1161 = dma.done [#allocation29], 1024
        $region212: #{encoder_with_svtr.1} parent=139 // pred_fallthru
          _
        // Predicated region
        $region213: #{encoder_with_svtr.1} parent=139 // pred_check
          %p1162 = pneg %p610
        $region214: #{encoder_with_svtr.1} parent=139 // pred_check_branch
          %1164 = sbr.rel (%p1162) target = $region216
        $region215: #{encoder_with_svtr.1} parent=139 // pred_region
          %1165 = dma.done [#allocation29], 16
        $region216: #{encoder_with_svtr.1} parent=139 // pred_fallthru
          _
        // Predicated region
        $region217: #{encoder_with_svtr.1} parent=139 // pred_check
          %p1166 = pneg %p631
        $region218: #{encoder_with_svtr.1} parent=139 // pred_check_branch
          %1168 = sbr.rel (%p1166) target = $region220
        $region219: #{encoder_with_svtr.1} parent=139 // pred_region
          %1169 = dma.done [#allocation32], 384
        $region220: #{encoder_with_svtr.1} parent=139 // pred_fallthru
          _
        // Predicated region
        $region221: #{encoder_with_svtr.1} parent=139 // pred_check
          %p1170 = pneg %p652
        $region222: #{encoder_with_svtr.1} parent=139 // pred_check_branch
          %1172 = sbr.rel (%p1170) target = $region224
        $region223: #{encoder_with_svtr.1} parent=139 // pred_region
          %1173 = dma.done [#allocation32], 3072
        $region224: #{encoder_with_svtr.1} parent=139 // pred_fallthru
          _
        // Predicated region
        $region225: #{encoder_with_svtr.1} parent=139 // pred_check
          %p1174 = pneg %p673
        $region226: #{encoder_with_svtr.1} parent=139 // pred_check_branch
          %1176 = sbr.rel (%p1174) target = $region228
        $region227: #{encoder_with_svtr.1} parent=139 // pred_region
          %1177 = dma.done [#allocation35], 16
        $region228: #{encoder_with_svtr.1} parent=139 // pred_fallthru
          _
        // Predicated region
        $region229: #{encoder_with_svtr.1} parent=139 // pred_check
          %p1178 = pneg %p694
        $region230: #{encoder_with_svtr.1} parent=139 // pred_check_branch
          %1180 = sbr.rel (%p1178) target = $region232
        $region231: #{encoder_with_svtr.1} parent=139 // pred_region
          %1181 = dma.done [#allocation35], 1024
        $region232: #{encoder_with_svtr.1} parent=139 // pred_fallthru
          _
        // Predicated region
        $region233: #{encoder_with_svtr.1} parent=139 // pred_check
          %p1182 = pneg %p715
        $region234: #{encoder_with_svtr.1} parent=139 // pred_check_branch
          %1184 = sbr.rel (%p1182) target = $region236
        $region235: #{encoder_with_svtr.1} parent=139 // pred_region
          %1185 = dma.done [#allocation38], 16
        $region236: #{encoder_with_svtr.1} parent=139 // pred_fallthru
          _
        %s1186 = smul.u32 4, %s85
        %p1187 = scmp.lt.s32.totalorder %s1186, 7
        %s1188 = scalar_select %p1187, %s1186, 7
        %s1189 = smul.addr %s1188, 2
        %s1190 = smul.addr %s1189, 8
        %s1191 = scalar_lea.vmem %s1, %s1190
        %p1192 = pneg %p106
        %p1193 = pneg %p103
        %p1194 = pneg %p127
        %p1195 = pneg %p124
        %p1196 = pneg %p148
        %p1197 = pneg %p145
        %p1198 = pneg %p169
        %p1199 = pneg %p166
        %p1200 = pneg %p190
        %p1201 = pneg %p187
        %p1202 = pneg %p211
        %p1203 = pneg %p208
        %p1204 = pneg %p232
        %p1205 = pneg %p229
        %p1206 = pneg %p253
        %p1207 = pneg %p250
        %p1208 = pneg %p274
        %p1209 = pneg %p271
        %p1210 = pneg %p295
        %p1211 = pneg %p292
        %p1212 = pneg %p316
        %p1213 = pneg %p313
        %p1214 = pneg %p337
        %p1215 = pneg %p334
        %p1216 = pneg %p358
        %p1217 = pneg %p355
        %p1218 = pneg %p379
        %p1219 = pneg %p376
        %p1220 = pneg %p400
        %p1221 = pneg %p397
        %p1222 = pneg %p421
        %p1223 = pneg %p418
        %p1224 = pneg %p442
        %p1225 = pneg %p439
        %p1226 = pneg %p463
        %p1227 = pneg %p460
        %p1228 = pneg %p484
        %p1229 = pneg %p481
        %p1230 = pneg %p505
        %p1231 = pneg %p502
        %p1232 = pneg %p526
        %p1233 = pneg %p523
        %p1234 = pneg %p547
        %p1235 = pneg %p544
        %p1236 = pneg %p568
        %p1237 = pneg %p565
        %p1238 = pneg %p589
        %p1239 = pneg %p586
        %p1240 = pneg %p610
        %p1241 = pneg %p607
        %p1242 = pneg %p631
        %p1243 = pneg %p628
        %p1244 = pneg %p652
        %p1245 = pneg %p649
        %p1246 = pneg %p673
        %p1247 = pneg %p670
        %p1248 = pneg %p694
        %p1249 = pneg %p691
        %p1250 = pneg %p715
        %p1251 = pneg %p712
        %p1252 = pneg %p741
        %p1253 = pneg %p738
        %s1254 = smul.u32 4, %s85
        %p1255 = scmp.lt.s32.totalorder %s1254, 7
        %s1256 = scalar_select %p1255, %s1254, 7
        %s1257 = smul.addr %s1256, 2
        %s1258 = smul.addr %s1257, 8
        %s1259 = scalar_lea.vmem %s61, %s1258
        %s1260 = smul.u32 4, %s85
        %p1261 = scmp.lt.s32.totalorder %s1260, 7
        %s1262 = scalar_select %p1261, %s1260, 7
        %s1263 = smul.addr %s1262, 2
        %s1264 = smul.addr %s1263, 8
        %s1265 = scalar_lea.vmem %s1, %s1264
        %s1266 = smul.u32 4, %s85
        %s1267 = smul.u32 4, %s85
        %p1268 = scmp.lt.s32.totalorder %s1267, 7
        %s1269 = scalar_select %p1268, %s1267, 7
        %s1270 = smul.addr %s1269, 2
        %s1271 = smul.addr %s1270, 8
        %s1272 = scalar_lea.vmem %s61, %s1271
        %s1273 = smul.u32 4, %s85
        %v1275 = vlaneseq
        %v1276 = vand.u32 %v1275, 127
        %vm1277 = vcmp.lt.s32.totalorder %v1276, 64
        %v1278 = vsel %vm1277, 1, 0
        %v1279 = vcvt.s32.f32 %v1278
        %v1280 = vld [vmem:[%s1265] sm:$0xff]
        %v1281 = vld [vmem:[%s1265 + $0x8] sm:$0xff]
        %v1282 = vld [vmem:[%s1265 + $0x10] sm:$0xff]
        %v1283 = vld [vmem:[%s1265 + $0x18] sm:$0xff]
        %v1284 = vld [vmem:[%s1265 + $0x20] sm:$0xff]
        %v1285 = vld [vmem:[%s1265 + $0x28] sm:$0xff]
        %v1286 = vld [vmem:[%s1265 + $0x30] sm:$0xff]
        %v1287 = vld [vmem:[%s1265 + $0x38] sm:$0xff]
        %v1288 = vpack.c.bf16 %v1281, %v1280
        %v1289 = vpack.c.bf16 %v1283, %v1282
        %v1290 = vpack.c.bf16 %v1285, %v1284
        %v1291 = vpack.c.bf16 %v1287, %v1286
        %v1292 = vld [vmem:[%s3] sm:$0xf]
        %v1293 = vld [vmem:[%s3 + $0x4] sm:$0xf]
        %v1294 = vld [vmem:[%s3 + $0x8] sm:$0xf]
        %v1295 = vld [vmem:[%s3 + $0xc] sm:$0xf]
        %v1296 = vld [vmem:[%s3 + $0x10] sm:$0xf]
        %v1297 = vld [vmem:[%s3 + $0x14] sm:$0xf]
        %v1298 = vld [vmem:[#allocation2] sm:$0x1]
        %v1300 = vlaneseq
        %v1301 = vshrl.u32 %v1300, 7
        %v1302 = vsub.s32 0, %v1301
        %v1303 = vrot.slane %v1298, %v1302
        %v1311 = vunpack.c.l.b16 %v1292
        %v1312 = vunpack.c.l.b16 %v1293
        %v1313 = vunpack.c.l.b16 %v1294
        %v1314 = vunpack.c.l.b16 %v1295
        %v1315 = vunpack.c.l.b16 %v1296
        %v1316 = vunpack.c.l.b16 %v1297
        %v1317 = vpack.c.b16 %v1312, %v1311
        %v1318 = vpack.c.b16 %v1314, %v1313
        %v1319 = vpack.c.b16 %v1316, %v1315
        %vm1323 = vcmask 392192
        %v1325 = vsel %vm1323, %v1288, 0
        %v1328 = vsel %vm1323, %v1289, 0
        %v1331 = vsel %vm1323, %v1290, 0
        %v1334 = vsel %vm1323, %v1291, 0
        %1336 = vmatprep.subr.bf16.mxu0 0
        %1337 = vmatpush1.bf16.msra.mxu0 0
        %1338 = vmatprep.subr.bf16.mxu0 0
        %1339 = vmatpush1.bf16.msra.mxu0 0
        %1340 = vmatprep.subr.bf16.mxu0 0
        %1341 = vmatpush1.bf16.msra.mxu0 0
        %1342 = vmatprep.subr.bf16.mxu0 0
        %1343 = vmatpush1.bf16.msra.mxu0 0
        %1344 = vmatprep.subr.bf16.mxu0 0
        %1345 = vmatpush1.bf16.msra.mxu0 0
        %1346 = vmatprep.subr.bf16.mxu0 0
        %1347 = vmatpush1.bf16.msra.mxu0 %v1319
        %1348 = vmatprep.subr.bf16.mxu0 0
        %1349 = vmatpush1.bf16.msra.mxu0 %v1318
        %1350 = vmatprep.subr.bf16.mxu0 0
        %1351 = vmatpush1.bf16.msra.mxu0 %v1317
        %1352 = vmatprep.subr.bf16.mxu0 0
        %1353 = vmatpush2.bf16.msra.mxu0 0
        %1354 = vmatprep.subr.bf16.mxu0 0
        %1355 = vmatpush2.bf16.msra.mxu0 0
        %1356 = vmatprep.subr.bf16.mxu0 0
        %1357 = vmatpush2.bf16.msra.mxu0 0
        %1358 = vmatprep.subr.bf16.mxu0 0
        %1359 = vmatpush2.bf16.msra.mxu0 0
        %1360 = vmatprep.subr.bf16.mxu0 0
        %1361 = vmatpush2.bf16.msra.mxu0 0
        %1362 = vmatprep.subr.bf16.mxu0 0
        %1363 = vmatpush2.bf16.msra.mxu0 0
        %1364 = vmatprep.subr.bf16.mxu0 0
        %1365 = vmatpush2.bf16.msra.mxu0 0
        %1366 = vmatprep.subr.bf16.mxu0 0
        %1367 = vmatpush2.bf16.msra.mxu0 0
        %1368 = vmatprep.mubr.bf16.mxu0 0
        %1369 = vmatmul.mubr.bf16.gmra.mxu0 %v1325
        %v1370 = vpop.f32.mrf.mxu0
        %v1371 = vadd.f32 %v1303, %v1370
        %v1372 = vpop.f32.mrf.mxu0
        %v1373 = vpop.f32.mrf.mxu0
        %v1374 = vadd.f32 %v1303, %v1373
        %v1375 = vpop.f32.mrf.mxu0
        %1376 = vmatprep.mubr.bf16.mxu0 0
        %1377 = vmatmul.mubr.bf16.gmra.mxu0 %v1328
        %v1378 = vpop.f32.mrf.mxu0
        %v1379 = vadd.f32 %v1303, %v1378
        %v1380 = vpop.f32.mrf.mxu0
        %v1381 = vpop.f32.mrf.mxu0
        %v1382 = vadd.f32 %v1303, %v1381
        %v1383 = vpop.f32.mrf.mxu0
        %1384 = vmatprep.mubr.bf16.mxu0 0
        %1385 = vmatmul.mubr.bf16.gmra.mxu0 %v1331
        %v1386 = vpop.f32.mrf.mxu0
        %v1387 = vadd.f32 %v1303, %v1386
        %v1388 = vpop.f32.mrf.mxu0
        %v1389 = vpop.f32.mrf.mxu0
        %v1390 = vadd.f32 %v1303, %v1389
        %v1391 = vpop.f32.mrf.mxu0
        %1392 = vmatprep.mubr.bf16.mxu0 0
        %1393 = vmatmul.mubr.bf16.gmra.mxu0 %v1334
        %v1394 = vpop.f32.mrf.mxu0
        %v1395 = vadd.f32 %v1303, %v1394
        %v1396 = vpop.f32.mrf.mxu0
        %v1397 = vpop.f32.mrf.mxu0
        %v1398 = vadd.f32 %v1303, %v1397
        %v1399 = vpop.f32.mrf.mxu0
        %1400 = vdwg.mxu0
        %v1401 = vsub.f32 0.0, %v1371
        %v1402 = vsub.f32 0.0, %v1374
        %v1403 = vsub.f32 0.0, %v1379
        %v1404 = vsub.f32 0.0, %v1382
        %v1405 = vsub.f32 0.0, %v1387
        %v1406 = vsub.f32 0.0, %v1390
        %v1407 = vsub.f32 0.0, %v1395
        %v1408 = vsub.f32 0.0, %v1398
        %v1409 = vmul.f32 %v1401, 1.442695
        %v1410 = vpow.pop %v1409
        %v1411 = vmul.f32 %v1402, 1.442695
        %v1412 = vpow.pop %v1411
        %v1413 = vmul.f32 %v1403, 1.442695
        %v1414 = vpow.pop %v1413
        %v1415 = vmul.f32 %v1404, 1.442695
        %v1416 = vpow.pop %v1415
        %v1417 = vmul.f32 %v1405, 1.442695
        %v1418 = vpow.pop %v1417
        %v1419 = vmul.f32 %v1406, 1.442695
        %v1420 = vpow.pop %v1419
        %v1421 = vmul.f32 %v1407, 1.442695
        %v1422 = vpow.pop %v1421
        %v1423 = vmul.f32 %v1408, 1.442695
        %v1424 = vpow.pop %v1423
        %v1425 = vadd.f32 %v1410, 1.0
        %v1426 = vadd.f32 %v1412, 1.0
        %v1427 = vadd.f32 %v1414, 1.0
        %v1428 = vadd.f32 %v1416, 1.0
        %v1429 = vadd.f32 %v1418, 1.0
        %v1430 = vadd.f32 %v1420, 1.0
        %v1431 = vadd.f32 %v1422, 1.0
        %v1432 = vadd.f32 %v1424, 1.0
        %v1433 = vrcp.pop %v1425
        %v1434 = vmul.f32 %v1371, %v1433
        %v1435 = vrcp.pop %v1426
        %v1436 = vmul.f32 %v1374, %v1435
        %v1437 = vrcp.pop %v1427
        %v1438 = vmul.f32 %v1379, %v1437
        %v1439 = vrcp.pop %v1428
        %v1440 = vmul.f32 %v1382, %v1439
        %v1441 = vrcp.pop %v1429
        %v1442 = vmul.f32 %v1387, %v1441
        %v1443 = vrcp.pop %v1430
        %v1444 = vmul.f32 %v1390, %v1443
        %v1445 = vrcp.pop %v1431
        %v1446 = vmul.f32 %v1395, %v1445
        %v1447 = vrcp.pop %v1432
        %v1448 = vmul.f32 %v1398, %v1447
        %v1449 = vpack.c.bf16 %v1436, %v1434
        %v1450 = vpack.c.bf16 %v1440, %v1438
        %v1451 = vpack.c.bf16 %v1444, %v1442
        %v1452 = vpack.c.bf16 %v1448, %v1446
        %v1453 = vld [vmem:[#allocation4] sm:$0xf]
        %v1454 = vld [vmem:[#allocation4 + $0x4] sm:$0xf]
        %v1455 = vld [vmem:[#allocation4 + $0x8] sm:$0xf]
        %v1456 = vld [vmem:[#allocation4 + $0xc] sm:$0xf]
        %v1457 = vld [vmem:[#allocation4 + $0x10] sm:$0xf]
        %v1458 = vld [vmem:[#allocation4 + $0x14] sm:$0xf]
        %v1459 = vld [vmem:[#allocation4 + $0x18] sm:$0xf]
        %v1460 = vld [vmem:[#allocation4 + $0x1c] sm:$0xf]
        %v1461 = vld [vmem:[#allocation4 + $0x20] sm:$0xf]
        %v1462 = vld [vmem:[#allocation4 + $0x24] sm:$0xf]
        %v1463 = vld [vmem:[#allocation4 + $0x28] sm:$0xf]
        %v1464 = vld [vmem:[#allocation4 + $0x2c] sm:$0xf]
        %v1465 = vld [vmem:[#allocation4 + $0x30] sm:$0xf]
        %v1466 = vld [vmem:[#allocation4 + $0x34] sm:$0xf]
        %v1467 = vld [vmem:[#allocation4 + $0x38] sm:$0xf]
        %v1468 = vld [vmem:[#allocation4 + $0x3c] sm:$0xf]
        %v1469 = vld [vmem:[#allocation6] sm:$0x1]
        %v1471 = vlaneseq
        %v1472 = vshrl.u32 %v1471, 7
        %v1473 = vsub.s32 0, %v1472
        %v1474 = vrot.slane %v1469, %v1473
        %v1492 = vunpack.c.l.b16 %v1453
        %v1493 = vunpack.c.l.b16 %v1454
        %v1494 = vunpack.c.l.b16 %v1455
        %v1495 = vunpack.c.l.b16 %v1456
        %v1496 = vunpack.c.l.b16 %v1457
        %v1497 = vunpack.c.l.b16 %v1458
        %v1498 = vunpack.c.l.b16 %v1459
        %v1499 = vunpack.c.l.b16 %v1460
        %v1500 = vunpack.c.l.b16 %v1461
        %v1501 = vunpack.c.l.b16 %v1462
        %v1502 = vunpack.c.l.b16 %v1463
        %v1503 = vunpack.c.l.b16 %v1464
        %v1504 = vunpack.c.l.b16 %v1465
        %v1505 = vunpack.c.l.b16 %v1466
        %v1506 = vunpack.c.l.b16 %v1467
        %v1507 = vunpack.c.l.b16 %v1468
        %v1508 = vpack.c.b16 %v1493, %v1492
        %v1509 = vpack.c.b16 %v1495, %v1494
        %v1510 = vpack.c.b16 %v1497, %v1496
        %v1511 = vpack.c.b16 %v1499, %v1498
        %v1512 = vpack.c.b16 %v1501, %v1500
        %v1513 = vpack.c.b16 %v1503, %v1502
        %v1514 = vpack.c.b16 %v1505, %v1504
        %v1515 = vpack.c.b16 %v1507, %v1506
        %1524 = vmatprep.subr.bf16.mxu0 0
        %1525 = vmatpush1.bf16.msra.mxu0 %v1515
        %1526 = vmatprep.subr.bf16.mxu0 0
        %1527 = vmatpush1.bf16.msra.mxu0 %v1514
        %1528 = vmatprep.subr.bf16.mxu0 0
        %1529 = vmatpush1.bf16.msra.mxu0 %v1513
        %1530 = vmatprep.subr.bf16.mxu0 0
        %1531 = vmatpush1.bf16.msra.mxu0 %v1512
        %1532 = vmatprep.subr.bf16.mxu0 0
        %1533 = vmatpush1.bf16.msra.mxu0 %v1511
        %1534 = vmatprep.subr.bf16.mxu0 0
        %1535 = vmatpush1.bf16.msra.mxu0 %v1510
        %1536 = vmatprep.subr.bf16.mxu0 0
        %1537 = vmatpush1.bf16.msra.mxu0 %v1509
        %1538 = vmatprep.subr.bf16.mxu0 0
        %1539 = vmatpush1.bf16.msra.mxu0 %v1508
        %1540 = vmatprep.subr.bf16.mxu0 0
        %1541 = vmatpush2.bf16.msra.mxu0 0
        %1542 = vmatprep.subr.bf16.mxu0 0
        %1543 = vmatpush2.bf16.msra.mxu0 0
        %1544 = vmatprep.subr.bf16.mxu0 0
        %1545 = vmatpush2.bf16.msra.mxu0 0
        %1546 = vmatprep.subr.bf16.mxu0 0
        %1547 = vmatpush2.bf16.msra.mxu0 0
        %1548 = vmatprep.subr.bf16.mxu0 0
        %1549 = vmatpush2.bf16.msra.mxu0 0
        %1550 = vmatprep.subr.bf16.mxu0 0
        %1551 = vmatpush2.bf16.msra.mxu0 0
        %1552 = vmatprep.subr.bf16.mxu0 0
        %1553 = vmatpush2.bf16.msra.mxu0 0
        %1554 = vmatprep.subr.bf16.mxu0 0
        %1555 = vmatpush2.bf16.msra.mxu0 0
        %1556 = vmatprep.mubr.bf16.mxu0 0
        %1557 = vmatmul.mubr.bf16.gmra.mxu0 %v1449
        %v1558 = vpop.f32.mrf.mxu0
        %v1559 = vadd.f32 %v1474, %v1558
        %v1560 = vpop.f32.mrf.mxu0
        %v1561 = vpop.f32.mrf.mxu0
        %v1562 = vadd.f32 %v1474, %v1561
        %v1563 = vpop.f32.mrf.mxu0
        %1564 = vmatprep.mubr.bf16.mxu0 0
        %1565 = vmatmul.mubr.bf16.gmra.mxu0 %v1450
        %v1566 = vpop.f32.mrf.mxu0
        %v1567 = vadd.f32 %v1474, %v1566
        %v1568 = vpop.f32.mrf.mxu0
        %v1569 = vpop.f32.mrf.mxu0
        %v1570 = vadd.f32 %v1474, %v1569
        %v1571 = vpop.f32.mrf.mxu0
        %1572 = vmatprep.mubr.bf16.mxu0 0
        %1573 = vmatmul.mubr.bf16.gmra.mxu0 %v1451
        %v1574 = vpop.f32.mrf.mxu0
        %v1575 = vadd.f32 %v1474, %v1574
        %v1576 = vpop.f32.mrf.mxu0
        %v1577 = vpop.f32.mrf.mxu0
        %v1578 = vadd.f32 %v1474, %v1577
        %v1579 = vpop.f32.mrf.mxu0
        %1580 = vmatprep.mubr.bf16.mxu0 0
        %1581 = vmatmul.mubr.bf16.gmra.mxu0 %v1452
        %v1582 = vpop.f32.mrf.mxu0
        %v1583 = vadd.f32 %v1474, %v1582
        %v1584 = vpop.f32.mrf.mxu0
        %v1585 = vpop.f32.mrf.mxu0
        %v1586 = vadd.f32 %v1474, %v1585
        %v1587 = vpop.f32.mrf.mxu0
        %1588 = vdwg.mxu0
        %v1589 = vsub.f32 0.0, %v1559
        %v1590 = vsub.f32 0.0, %v1562
        %v1591 = vsub.f32 0.0, %v1567
        %v1592 = vsub.f32 0.0, %v1570
        %v1593 = vsub.f32 0.0, %v1575
        %v1594 = vsub.f32 0.0, %v1578
        %v1595 = vsub.f32 0.0, %v1583
        %v1596 = vsub.f32 0.0, %v1586
        %v1597 = vmul.f32 %v1589, 1.442695
        %v1598 = vpow.pop %v1597
        %v1599 = vmul.f32 %v1590, 1.442695
        %v1600 = vpow.pop %v1599
        %v1601 = vmul.f32 %v1591, 1.442695
        %v1602 = vpow.pop %v1601
        %v1603 = vmul.f32 %v1592, 1.442695
        %v1604 = vpow.pop %v1603
        %v1605 = vmul.f32 %v1593, 1.442695
        %v1606 = vpow.pop %v1605
        %v1607 = vmul.f32 %v1594, 1.442695
        %v1608 = vpow.pop %v1607
        %v1609 = vmul.f32 %v1595, 1.442695
        %v1610 = vpow.pop %v1609
        %v1611 = vmul.f32 %v1596, 1.442695
        %v1612 = vpow.pop %v1611
        %v1613 = vadd.f32 %v1598, 1.0
        %v1614 = vadd.f32 %v1600, 1.0
        %v1615 = vadd.f32 %v1602, 1.0
        %v1616 = vadd.f32 %v1604, 1.0
        %v1617 = vadd.f32 %v1606, 1.0
        %v1618 = vadd.f32 %v1608, 1.0
        %v1619 = vadd.f32 %v1610, 1.0
        %v1620 = vadd.f32 %v1612, 1.0
        %v1621 = vrcp.pop %v1613
        %v1622 = vmul.f32 %v1559, %v1621
        %v1623 = vrcp.pop %v1614
        %v1624 = vmul.f32 %v1562, %v1623
        %v1625 = vrcp.pop %v1615
        %v1626 = vmul.f32 %v1567, %v1625
        %v1627 = vrcp.pop %v1616
        %v1628 = vmul.f32 %v1570, %v1627
        %v1629 = vrcp.pop %v1617
        %v1630 = vmul.f32 %v1575, %v1629
        %v1631 = vrcp.pop %v1618
        %v1632 = vmul.f32 %v1578, %v1631
        %v1633 = vrcp.pop %v1619
        %v1634 = vmul.f32 %v1583, %v1633
        %v1635 = vrcp.pop %v1620
        %v1636 = vmul.f32 %v1586, %v1635
        loop: start=0, step=1, limit=2
        $region237: #{encoder_with_svtr.1} parent=139 // loop_pre_header
          _
        $region238: #{encoder_with_svtr.1} parent=139 // loop_header
          %s1638 = sphi 0, %s1642
          %p1639 = scmp.ge.s32.totalorder %s1638, 2
          %v1643 = vphi %v1622, %v3308
          %v1644 = vphi %v1624, %v3309
          %v1645 = vphi %v1626, %v3310
          %v1646 = vphi %v1628, %v3311
          %v1647 = vphi %v1630, %v3312
          %v1648 = vphi %v1632, %v3313
          %v1649 = vphi %v1634, %v3314
          %v1650 = vphi %v1636, %v3315
        $region239: #{encoder_with_svtr.1} parent=139 // loop_header_branch
          %1641 = sbr.rel (%p1639) target = $region243
        $region240: #{encoder_with_svtr.1} parent=139 // loop_body
          %s1651 = scalar_lea.vmem [#allocation7], %s1638
          %v1652 = vld [vmem:[%s1651] sm:$0x1]
          %s1653 = scalar_lea.vmem [#allocation9], %s1638
          %v1654 = vld [vmem:[%s1653] sm:$0x1]
          %1655 = vadd.xlane.f32.xlu0 %v1643
          %v1656 = vpop.xlane.xlu0 %1655
          %1657 = vadd.xlane.f32.xlu0 %v1644
          %v1658 = vpop.xlane.xlu0 %1657
          %1659 = vadd.xlane.f32.xlu0 %v1645
          %v1660 = vpop.xlane.xlu0 %1659
          %1661 = vadd.xlane.f32.xlu0 %v1646
          %v1662 = vpop.xlane.xlu0 %1661
          %1663 = vadd.xlane.f32.xlu0 %v1647
          %v1664 = vpop.xlane.xlu0 %1663
          %1665 = vadd.xlane.f32.xlu0 %v1648
          %v1666 = vpop.xlane.xlu0 %1665
          %1667 = vadd.xlane.f32.xlu0 %v1649
          %v1668 = vpop.xlane.xlu0 %1667
          %1669 = vadd.xlane.f32.xlu0 %v1650
          %v1670 = vpop.xlane.xlu0 %1669
          %v1671 = vmul.f32 %v1656, 0.015625
          %v1672 = vmul.f32 %v1658, 0.015625
          %v1673 = vmul.f32 %v1660, 0.015625
          %v1674 = vmul.f32 %v1662, 0.015625
          %v1675 = vmul.f32 %v1664, 0.015625
          %v1676 = vmul.f32 %v1666, 0.015625
          %v1677 = vmul.f32 %v1668, 0.015625
          %v1678 = vmul.f32 %v1670, 0.015625
          %v1679 = vsub.f32 %v1643, %v1671
          %v1680 = vsub.f32 %v1644, %v1672
          %v1681 = vsub.f32 %v1645, %v1673
          %v1682 = vsub.f32 %v1646, %v1674
          %v1683 = vsub.f32 %v1647, %v1675
          %v1684 = vsub.f32 %v1648, %v1676
          %v1685 = vsub.f32 %v1649, %v1677
          %v1686 = vsub.f32 %v1650, %v1678
          %v1687 = vmul.f32 %v1679, %v1279
          %v1688 = vmul.f32 %v1680, %v1279
          %v1689 = vmul.f32 %v1681, %v1279
          %v1690 = vmul.f32 %v1682, %v1279
          %v1691 = vmul.f32 %v1683, %v1279
          %v1692 = vmul.f32 %v1684, %v1279
          %v1693 = vmul.f32 %v1685, %v1279
          %v1694 = vmul.f32 %v1686, %v1279
          %v1695 = vmul.f32 %v1687, %v1687
          %v1696 = vmul.f32 %v1688, %v1688
          %v1697 = vmul.f32 %v1689, %v1689
          %v1698 = vmul.f32 %v1690, %v1690
          %v1699 = vmul.f32 %v1691, %v1691
          %v1700 = vmul.f32 %v1692, %v1692
          %v1701 = vmul.f32 %v1693, %v1693
          %v1702 = vmul.f32 %v1694, %v1694
          %1703 = vadd.xlane.f32.xlu0 %v1695
          %v1704 = vpop.xlane.xlu0 %1703
          %1705 = vadd.xlane.f32.xlu0 %v1696
          %v1706 = vpop.xlane.xlu0 %1705
          %1707 = vadd.xlane.f32.xlu0 %v1697
          %v1708 = vpop.xlane.xlu0 %1707
          %1709 = vadd.xlane.f32.xlu0 %v1698
          %v1710 = vpop.xlane.xlu0 %1709
          %1711 = vadd.xlane.f32.xlu0 %v1699
          %v1712 = vpop.xlane.xlu0 %1711
          %1713 = vadd.xlane.f32.xlu0 %v1700
          %v1714 = vpop.xlane.xlu0 %1713
          %1715 = vadd.xlane.f32.xlu0 %v1701
          %v1716 = vpop.xlane.xlu0 %1715
          %1717 = vadd.xlane.f32.xlu0 %v1702
          %v1718 = vpop.xlane.xlu0 %1717
          %v1719 = vmul.f32 %v1704, 0.015625
          %v1720 = vmul.f32 %v1706, 0.015625
          %v1721 = vmul.f32 %v1708, 0.015625
          %v1722 = vmul.f32 %v1710, 0.015625
          %v1723 = vmul.f32 %v1712, 0.015625
          %v1724 = vmul.f32 %v1714, 0.015625
          %v1725 = vmul.f32 %v1716, 0.015625
          %v1726 = vmul.f32 %v1718, 0.015625
          %v1727 = vadd.f32 %v1719, 1e-05
          %v1728 = vadd.f32 %v1720, 1e-05
          %v1729 = vadd.f32 %v1721, 1e-05
          %v1730 = vadd.f32 %v1722, 1e-05
          %v1731 = vadd.f32 %v1723, 1e-05
          %v1732 = vadd.f32 %v1724, 1e-05
          %v1733 = vadd.f32 %v1725, 1e-05
          %v1734 = vadd.f32 %v1726, 1e-05
          %v1735 = vrsqrt.pop %v1727
          %v1736 = vrsqrt.pop %v1728
          %v1737 = vrsqrt.pop %v1729
          %v1738 = vrsqrt.pop %v1730
          %v1739 = vrsqrt.pop %v1731
          %v1740 = vrsqrt.pop %v1732
          %v1741 = vrsqrt.pop %v1733
          %v1742 = vrsqrt.pop %v1734
          %v1743 = vmul.f32 %v1687, %v1735
          %v1744 = vmul.f32 %v1688, %v1736
          %v1745 = vmul.f32 %v1689, %v1737
          %v1746 = vmul.f32 %v1690, %v1738
          %v1747 = vmul.f32 %v1691, %v1739
          %v1748 = vmul.f32 %v1692, %v1740
          %v1749 = vmul.f32 %v1693, %v1741
          %v1750 = vmul.f32 %v1694, %v1742
          %v1752 = vlaneseq
          %v1753 = vshrl.u32 %v1752, 7
          %v1754 = vsub.s32 0, %v1753
          %v1755 = vrot.slane %v1652, %v1754
          %v1757 = vmul.f32 %v1743, %v1755
          %v1758 = vmul.f32 %v1744, %v1755
          %v1759 = vmul.f32 %v1745, %v1755
          %v1760 = vmul.f32 %v1746, %v1755
          %v1761 = vmul.f32 %v1747, %v1755
          %v1762 = vmul.f32 %v1748, %v1755
          %v1763 = vmul.f32 %v1749, %v1755
          %v1764 = vmul.f32 %v1750, %v1755
          %v1766 = vlaneseq
          %v1767 = vshrl.u32 %v1766, 7
          %v1768 = vsub.s32 0, %v1767
          %v1769 = vrot.slane %v1654, %v1768
          %v1771 = vadd.f32 %v1757, %v1769
          %v1772 = vadd.f32 %v1758, %v1769
          %v1773 = vadd.f32 %v1759, %v1769
          %v1774 = vadd.f32 %v1760, %v1769
          %v1775 = vadd.f32 %v1761, %v1769
          %v1776 = vadd.f32 %v1762, %v1769
          %v1777 = vadd.f32 %v1763, %v1769
          %v1778 = vadd.f32 %v1764, %v1769
          %v1779 = vpack.c.bf16 %v1772, %v1771
          %v1780 = vpack.c.bf16 %v1774, %v1773
          %v1781 = vpack.c.bf16 %v1776, %v1775
          %v1782 = vpack.c.bf16 %v1778, %v1777
          loop: start=0, step=1, limit=8
          $region244: #{encoder_with_svtr.1} parent=240 // loop_pre_header
            _
          $region245: #{encoder_with_svtr.1} parent=240 // loop_header
            %s1784 = sphi 0, %s1788
            %p1785 = scmp.ge.s32.totalorder %s1784, 8
            %v1789 = vphi 0.0, %v2805
            %v1790 = vphi 0.0, %v2806
            %v1791 = vphi 0.0, %v2807
            %v1792 = vphi 0.0, %v2808
            %v1793 = vphi 0.0, %v2809
            %v1794 = vphi 0.0, %v2810
            %v1795 = vphi 0.0, %v2811
            %v1796 = vphi 0.0, %v2812
          $region246: #{encoder_with_svtr.1} parent=240 // loop_header_branch
            %1787 = sbr.rel (%p1785) target = $region250
          $region247: #{encoder_with_svtr.1} parent=240 // loop_body
            %s1797 = smul.u32 %s1638, 8
            %s1798 = sadd.s32 %s1797, %s1784
            %s1799 = smul.u32 %s1798, 16
            %s1800 = smul.addr %s1799, 4
            %s1801 = scalar_lea.vmem %s15, %s1800
            %v1802 = vld [vmem:[%s1801] sm:$0xf]
            %v1803 = vld [vmem:[%s1801 + $0x4] sm:$0xf]
            %v1804 = vld [vmem:[%s1801 + $0x8] sm:$0xf]
            %v1805 = vld [vmem:[%s1801 + $0xc] sm:$0xf]
            %v1806 = vld [vmem:[%s1801 + $0x10] sm:$0xf]
            %v1807 = vld [vmem:[%s1801 + $0x14] sm:$0xf]
            %v1808 = vld [vmem:[%s1801 + $0x18] sm:$0xf]
            %v1809 = vld [vmem:[%s1801 + $0x1c] sm:$0xf]
            %v1810 = vld [vmem:[%s1801 + $0x20] sm:$0xf]
            %v1811 = vld [vmem:[%s1801 + $0x24] sm:$0xf]
            %v1812 = vld [vmem:[%s1801 + $0x28] sm:$0xf]
            %v1813 = vld [vmem:[%s1801 + $0x2c] sm:$0xf]
            %v1814 = vld [vmem:[%s1801 + $0x30] sm:$0xf]
            %v1815 = vld [vmem:[%s1801 + $0x34] sm:$0xf]
            %v1816 = vld [vmem:[%s1801 + $0x38] sm:$0xf]
            %v1817 = vld [vmem:[%s1801 + $0x3c] sm:$0xf]
            %s1818 = scalar_lea.vmem %s21, %s1798
            %v1819 = vld [vmem:[%s1818] sm:$0x1]
            %v1821 = vlaneseq
            %v1822 = vshrl.u32 %v1821, 7
            %v1823 = vsub.s32 0, %v1822
            %v1824 = vrot.slane %v1819, %v1823
            %v1842 = vunpack.c.l.b16 %v1802
            %v1843 = vunpack.c.l.b16 %v1803
            %v1844 = vunpack.c.l.b16 %v1804
            %v1845 = vunpack.c.l.b16 %v1805
            %v1846 = vunpack.c.l.b16 %v1806
            %v1847 = vunpack.c.l.b16 %v1807
            %v1848 = vunpack.c.l.b16 %v1808
            %v1849 = vunpack.c.l.b16 %v1809
            %v1850 = vunpack.c.l.b16 %v1810
            %v1851 = vunpack.c.l.b16 %v1811
            %v1852 = vunpack.c.l.b16 %v1812
            %v1853 = vunpack.c.l.b16 %v1813
            %v1854 = vunpack.c.l.b16 %v1814
            %v1855 = vunpack.c.l.b16 %v1815
            %v1856 = vunpack.c.l.b16 %v1816
            %v1857 = vunpack.c.l.b16 %v1817
            %v1858 = vpack.c.b16 %v1843, %v1842
            %v1859 = vpack.c.b16 %v1845, %v1844
            %v1860 = vpack.c.b16 %v1847, %v1846
            %v1861 = vpack.c.b16 %v1849, %v1848
            %v1862 = vpack.c.b16 %v1851, %v1850
            %v1863 = vpack.c.b16 %v1853, %v1852
            %v1864 = vpack.c.b16 %v1855, %v1854
            %v1865 = vpack.c.b16 %v1857, %v1856
            %1874 = vmatprep.subr.bf16.mxu0 0
            %1875 = vmatpush1.bf16.msra.mxu0 %v1865
            %1876 = vmatprep.subr.bf16.mxu0 0
            %1877 = vmatpush1.bf16.msra.mxu0 %v1864
            %1878 = vmatprep.subr.bf16.mxu0 0
            %1879 = vmatpush1.bf16.msra.mxu0 %v1863
            %1880 = vmatprep.subr.bf16.mxu0 0
            %1881 = vmatpush1.bf16.msra.mxu0 %v1862
            %1882 = vmatprep.subr.bf16.mxu0 0
            %1883 = vmatpush1.bf16.msra.mxu0 %v1861
            %1884 = vmatprep.subr.bf16.mxu0 0
            %1885 = vmatpush1.bf16.msra.mxu0 %v1860
            %1886 = vmatprep.subr.bf16.mxu0 0
            %1887 = vmatpush1.bf16.msra.mxu0 %v1859
            %1888 = vmatprep.subr.bf16.mxu0 0
            %1889 = vmatpush1.bf16.msra.mxu0 %v1858
            %1890 = vmatprep.subr.bf16.mxu0 0
            %1891 = vmatpush2.bf16.msra.mxu0 0
            %1892 = vmatprep.subr.bf16.mxu0 0
            %1893 = vmatpush2.bf16.msra.mxu0 0
            %1894 = vmatprep.subr.bf16.mxu0 0
            %1895 = vmatpush2.bf16.msra.mxu0 0
            %1896 = vmatprep.subr.bf16.mxu0 0
            %1897 = vmatpush2.bf16.msra.mxu0 0
            %1898 = vmatprep.subr.bf16.mxu0 0
            %1899 = vmatpush2.bf16.msra.mxu0 0
            %1900 = vmatprep.subr.bf16.mxu0 0
            %1901 = vmatpush2.bf16.msra.mxu0 0
            %1902 = vmatprep.subr.bf16.mxu0 0
            %1903 = vmatpush2.bf16.msra.mxu0 0
            %1904 = vmatprep.subr.bf16.mxu0 0
            %1905 = vmatpush2.bf16.msra.mxu0 0
            %1906 = vmatprep.mubr.bf16.mxu0 0
            %1907 = vmatmul.mubr.bf16.gmra.mxu0 %v1779
            %v1908 = vpop.f32.mrf.mxu0
            %v1909 = vadd.f32 %v1824, %v1908
            %v1910 = vpop.f32.mrf.mxu0
            %v1911 = vpop.f32.mrf.mxu0
            %v1912 = vadd.f32 %v1824, %v1911
            %v1913 = vpop.f32.mrf.mxu0
            %1914 = vmatprep.mubr.bf16.mxu0 0
            %1915 = vmatmul.mubr.bf16.gmra.mxu0 %v1780
            %v1916 = vpop.f32.mrf.mxu0
            %v1917 = vadd.f32 %v1824, %v1916
            %v1918 = vpop.f32.mrf.mxu0
            %v1919 = vpop.f32.mrf.mxu0
            %v1920 = vadd.f32 %v1824, %v1919
            %v1921 = vpop.f32.mrf.mxu0
            %1922 = vmatprep.mubr.bf16.mxu0 0
            %1923 = vmatmul.mubr.bf16.gmra.mxu0 %v1781
            %v1924 = vpop.f32.mrf.mxu0
            %v1925 = vadd.f32 %v1824, %v1924
            %v1926 = vpop.f32.mrf.mxu0
            %v1927 = vpop.f32.mrf.mxu0
            %v1928 = vadd.f32 %v1824, %v1927
            %v1929 = vpop.f32.mrf.mxu0
            %1930 = vmatprep.mubr.bf16.mxu0 0
            %1931 = vmatmul.mubr.bf16.gmra.mxu0 %v1782
            %v1932 = vpop.f32.mrf.mxu0
            %v1933 = vadd.f32 %v1824, %v1932
            %v1934 = vpop.f32.mrf.mxu0
            %v1935 = vpop.f32.mrf.mxu0
            %v1936 = vadd.f32 %v1824, %v1935
            %v1937 = vpop.f32.mrf.mxu0
            %1938 = vdwg.mxu0
            %s1939 = smul.addr %s1799, 4
            %s1940 = scalar_lea.vmem %s17, %s1939
            %v1941 = vld [vmem:[%s1940] sm:$0xf]
            %v1942 = vld [vmem:[%s1940 + $0x4] sm:$0xf]
            %v1943 = vld [vmem:[%s1940 + $0x8] sm:$0xf]
            %v1944 = vld [vmem:[%s1940 + $0xc] sm:$0xf]
            %v1945 = vld [vmem:[%s1940 + $0x10] sm:$0xf]
            %v1946 = vld [vmem:[%s1940 + $0x14] sm:$0xf]
            %v1947 = vld [vmem:[%s1940 + $0x18] sm:$0xf]
            %v1948 = vld [vmem:[%s1940 + $0x1c] sm:$0xf]
            %v1949 = vld [vmem:[%s1940 + $0x20] sm:$0xf]
            %v1950 = vld [vmem:[%s1940 + $0x24] sm:$0xf]
            %v1951 = vld [vmem:[%s1940 + $0x28] sm:$0xf]
            %v1952 = vld [vmem:[%s1940 + $0x2c] sm:$0xf]
            %v1953 = vld [vmem:[%s1940 + $0x30] sm:$0xf]
            %v1954 = vld [vmem:[%s1940 + $0x34] sm:$0xf]
            %v1955 = vld [vmem:[%s1940 + $0x38] sm:$0xf]
            %v1956 = vld [vmem:[%s1940 + $0x3c] sm:$0xf]
            %s1957 = scalar_lea.vmem [#allocation10], %s1798
            %v1958 = vld [vmem:[%s1957] sm:$0x1]
            %v1960 = vlaneseq
            %v1961 = vshrl.u32 %v1960, 7
            %v1962 = vsub.s32 0, %v1961
            %v1963 = vrot.slane %v1958, %v1962
            %v1981 = vunpack.c.l.b16 %v1941
            %v1982 = vunpack.c.l.b16 %v1942
            %v1983 = vunpack.c.l.b16 %v1943
            %v1984 = vunpack.c.l.b16 %v1944
            %v1985 = vunpack.c.l.b16 %v1945
            %v1986 = vunpack.c.l.b16 %v1946
            %v1987 = vunpack.c.l.b16 %v1947
            %v1988 = vunpack.c.l.b16 %v1948
            %v1989 = vunpack.c.l.b16 %v1949
            %v1990 = vunpack.c.l.b16 %v1950
            %v1991 = vunpack.c.l.b16 %v1951
            %v1992 = vunpack.c.l.b16 %v1952
            %v1993 = vunpack.c.l.b16 %v1953
            %v1994 = vunpack.c.l.b16 %v1954
            %v1995 = vunpack.c.l.b16 %v1955
            %v1996 = vunpack.c.l.b16 %v1956
            %v1997 = vpack.c.b16 %v1982, %v1981
            %v1998 = vpack.c.b16 %v1984, %v1983
            %v1999 = vpack.c.b16 %v1986, %v1985
            %v2000 = vpack.c.b16 %v1988, %v1987
            %v2001 = vpack.c.b16 %v1990, %v1989
            %v2002 = vpack.c.b16 %v1992, %v1991
            %v2003 = vpack.c.b16 %v1994, %v1993
            %v2004 = vpack.c.b16 %v1996, %v1995
            %2013 = vmatprep.subr.bf16.mxu0 0
            %2014 = vmatpush1.bf16.msra.mxu0 %v2004
            %2015 = vmatprep.subr.bf16.mxu0 0
            %2016 = vmatpush1.bf16.msra.mxu0 %v2003
            %2017 = vmatprep.subr.bf16.mxu0 0
            %2018 = vmatpush1.bf16.msra.mxu0 %v2002
            %2019 = vmatprep.subr.bf16.mxu0 0
            %2020 = vmatpush1.bf16.msra.mxu0 %v2001
            %2021 = vmatprep.subr.bf16.mxu0 0
            %2022 = vmatpush1.bf16.msra.mxu0 %v2000
            %2023 = vmatprep.subr.bf16.mxu0 0
            %2024 = vmatpush1.bf16.msra.mxu0 %v1999
            %2025 = vmatprep.subr.bf16.mxu0 0
            %2026 = vmatpush1.bf16.msra.mxu0 %v1998
            %2027 = vmatprep.subr.bf16.mxu0 0
            %2028 = vmatpush1.bf16.msra.mxu0 %v1997
            %2029 = vmatprep.subr.bf16.mxu0 0
            %2030 = vmatpush2.bf16.msra.mxu0 0
            %2031 = vmatprep.subr.bf16.mxu0 0
            %2032 = vmatpush2.bf16.msra.mxu0 0
            %2033 = vmatprep.subr.bf16.mxu0 0
            %2034 = vmatpush2.bf16.msra.mxu0 0
            %2035 = vmatprep.subr.bf16.mxu0 0
            %2036 = vmatpush2.bf16.msra.mxu0 0
            %2037 = vmatprep.subr.bf16.mxu0 0
            %2038 = vmatpush2.bf16.msra.mxu0 0
            %2039 = vmatprep.subr.bf16.mxu0 0
            %2040 = vmatpush2.bf16.msra.mxu0 0
            %2041 = vmatprep.subr.bf16.mxu0 0
            %2042 = vmatpush2.bf16.msra.mxu0 0
            %2043 = vmatprep.subr.bf16.mxu0 0
            %2044 = vmatpush2.bf16.msra.mxu0 0
            %2045 = vmatprep.mubr.bf16.mxu0 0
            %2046 = vmatmul.mubr.bf16.gmra.mxu0 %v1779
            %v2047 = vpop.f32.mrf.mxu0
            %v2048 = vadd.f32 %v1963, %v2047
            %v2049 = vpop.f32.mrf.mxu0
            %v2050 = vpop.f32.mrf.mxu0
            %v2051 = vadd.f32 %v1963, %v2050
            %v2052 = vpop.f32.mrf.mxu0
            %2053 = vmatprep.mubr.bf16.mxu0 0
            %2054 = vmatmul.mubr.bf16.gmra.mxu0 %v1780
            %v2055 = vpop.f32.mrf.mxu0
            %v2056 = vadd.f32 %v1963, %v2055
            %v2057 = vpop.f32.mrf.mxu0
            %v2058 = vpop.f32.mrf.mxu0
            %v2059 = vadd.f32 %v1963, %v2058
            %v2060 = vpop.f32.mrf.mxu0
            %2061 = vmatprep.mubr.bf16.mxu0 0
            %2062 = vmatmul.mubr.bf16.gmra.mxu0 %v1781
            %v2063 = vpop.f32.mrf.mxu0
            %v2064 = vadd.f32 %v1963, %v2063
            %v2065 = vpop.f32.mrf.mxu0
            %v2066 = vpop.f32.mrf.mxu0
            %v2067 = vadd.f32 %v1963, %v2066
            %v2068 = vpop.f32.mrf.mxu0
            %2069 = vmatprep.mubr.bf16.mxu0 0
            %2070 = vmatmul.mubr.bf16.gmra.mxu0 %v1782
            %v2071 = vpop.f32.mrf.mxu0
            %v2072 = vadd.f32 %v1963, %v2071
            %v2073 = vpop.f32.mrf.mxu0
            %v2074 = vpop.f32.mrf.mxu0
            %v2075 = vadd.f32 %v1963, %v2074
            %v2076 = vpop.f32.mrf.mxu0
            %2077 = vdwg.mxu0
            %s2078 = smul.addr %s1799, 4
            %s2079 = scalar_lea.vmem %s19, %s2078
            %v2080 = vld [vmem:[%s2079] sm:$0xf]
            %v2081 = vld [vmem:[%s2079 + $0x4] sm:$0xf]
            %v2082 = vld [vmem:[%s2079 + $0x8] sm:$0xf]
            %v2083 = vld [vmem:[%s2079 + $0xc] sm:$0xf]
            %v2084 = vld [vmem:[%s2079 + $0x10] sm:$0xf]
            %v2085 = vld [vmem:[%s2079 + $0x14] sm:$0xf]
            %v2086 = vld [vmem:[%s2079 + $0x18] sm:$0xf]
            %v2087 = vld [vmem:[%s2079 + $0x1c] sm:$0xf]
            %v2088 = vld [vmem:[%s2079 + $0x20] sm:$0xf]
            %v2089 = vld [vmem:[%s2079 + $0x24] sm:$0xf]
            %v2090 = vld [vmem:[%s2079 + $0x28] sm:$0xf]
            %v2091 = vld [vmem:[%s2079 + $0x2c] sm:$0xf]
            %v2092 = vld [vmem:[%s2079 + $0x30] sm:$0xf]
            %v2093 = vld [vmem:[%s2079 + $0x34] sm:$0xf]
            %v2094 = vld [vmem:[%s2079 + $0x38] sm:$0xf]
            %v2095 = vld [vmem:[%s2079 + $0x3c] sm:$0xf]
            %s2096 = scalar_lea.vmem [#allocation12], %s1798
            %v2097 = vld [vmem:[%s2096] sm:$0x1]
            %v2099 = vlaneseq
            %v2100 = vshrl.u32 %v2099, 7
            %v2101 = vsub.s32 0, %v2100
            %v2102 = vrot.slane %v2097, %v2101
            %v2120 = vunpack.c.l.b16 %v2080
            %v2121 = vunpack.c.l.b16 %v2081
            %v2122 = vunpack.c.l.b16 %v2082
            %v2123 = vunpack.c.l.b16 %v2083
            %v2124 = vunpack.c.l.b16 %v2084
            %v2125 = vunpack.c.l.b16 %v2085
            %v2126 = vunpack.c.l.b16 %v2086
            %v2127 = vunpack.c.l.b16 %v2087
            %v2128 = vunpack.c.l.b16 %v2088
            %v2129 = vunpack.c.l.b16 %v2089
            %v2130 = vunpack.c.l.b16 %v2090
            %v2131 = vunpack.c.l.b16 %v2091
            %v2132 = vunpack.c.l.b16 %v2092
            %v2133 = vunpack.c.l.b16 %v2093
            %v2134 = vunpack.c.l.b16 %v2094
            %v2135 = vunpack.c.l.b16 %v2095
            %v2136 = vpack.c.b16 %v2121, %v2120
            %v2137 = vpack.c.b16 %v2123, %v2122
            %v2138 = vpack.c.b16 %v2125, %v2124
            %v2139 = vpack.c.b16 %v2127, %v2126
            %v2140 = vpack.c.b16 %v2129, %v2128
            %v2141 = vpack.c.b16 %v2131, %v2130
            %v2142 = vpack.c.b16 %v2133, %v2132
            %v2143 = vpack.c.b16 %v2135, %v2134
            %2152 = vmatprep.subr.bf16.mxu0 0
            %2153 = vmatpush1.bf16.msra.mxu0 %v2143
            %2154 = vmatprep.subr.bf16.mxu0 0
            %2155 = vmatpush1.bf16.msra.mxu0 %v2142
            %2156 = vmatprep.subr.bf16.mxu0 0
            %2157 = vmatpush1.bf16.msra.mxu0 %v2141
            %2158 = vmatprep.subr.bf16.mxu0 0
            %2159 = vmatpush1.bf16.msra.mxu0 %v2140
            %2160 = vmatprep.subr.bf16.mxu0 0
            %2161 = vmatpush1.bf16.msra.mxu0 %v2139
            %2162 = vmatprep.subr.bf16.mxu0 0
            %2163 = vmatpush1.bf16.msra.mxu0 %v2138
            %2164 = vmatprep.subr.bf16.mxu0 0
            %2165 = vmatpush1.bf16.msra.mxu0 %v2137
            %2166 = vmatprep.subr.bf16.mxu0 0
            %2167 = vmatpush1.bf16.msra.mxu0 %v2136
            %2168 = vmatprep.subr.bf16.mxu0 0
            %2169 = vmatpush2.bf16.msra.mxu0 0
            %2170 = vmatprep.subr.bf16.mxu0 0
            %2171 = vmatpush2.bf16.msra.mxu0 0
            %2172 = vmatprep.subr.bf16.mxu0 0
            %2173 = vmatpush2.bf16.msra.mxu0 0
            %2174 = vmatprep.subr.bf16.mxu0 0
            %2175 = vmatpush2.bf16.msra.mxu0 0
            %2176 = vmatprep.subr.bf16.mxu0 0
            %2177 = vmatpush2.bf16.msra.mxu0 0
            %2178 = vmatprep.subr.bf16.mxu0 0
            %2179 = vmatpush2.bf16.msra.mxu0 0
            %2180 = vmatprep.subr.bf16.mxu0 0
            %2181 = vmatpush2.bf16.msra.mxu0 0
            %2182 = vmatprep.subr.bf16.mxu0 0
            %2183 = vmatpush2.bf16.msra.mxu0 0
            %2184 = vmatprep.mubr.bf16.mxu0 0
            %2185 = vmatmul.mubr.bf16.gmra.mxu0 %v1779
            %v2186 = vpop.f32.mrf.mxu0
            %v2187 = vadd.f32 %v2102, %v2186
            %v2188 = vpop.f32.mrf.mxu0
            %v2189 = vpop.f32.mrf.mxu0
            %v2190 = vadd.f32 %v2102, %v2189
            %v2191 = vpop.f32.mrf.mxu0
            %2192 = vmatprep.mubr.bf16.mxu0 0
            %2193 = vmatmul.mubr.bf16.gmra.mxu0 %v1780
            %v2194 = vpop.f32.mrf.mxu0
            %v2195 = vadd.f32 %v2102, %v2194
            %v2196 = vpop.f32.mrf.mxu0
            %v2197 = vpop.f32.mrf.mxu0
            %v2198 = vadd.f32 %v2102, %v2197
            %v2199 = vpop.f32.mrf.mxu0
            %2200 = vmatprep.mubr.bf16.mxu0 0
            %2201 = vmatmul.mubr.bf16.gmra.mxu0 %v1781
            %v2202 = vpop.f32.mrf.mxu0
            %v2203 = vadd.f32 %v2102, %v2202
            %v2204 = vpop.f32.mrf.mxu0
            %v2205 = vpop.f32.mrf.mxu0
            %v2206 = vadd.f32 %v2102, %v2205
            %v2207 = vpop.f32.mrf.mxu0
            %2208 = vmatprep.mubr.bf16.mxu0 0
            %2209 = vmatmul.mubr.bf16.gmra.mxu0 %v1782
            %v2210 = vpop.f32.mrf.mxu0
            %v2211 = vadd.f32 %v2102, %v2210
            %v2212 = vpop.f32.mrf.mxu0
            %v2213 = vpop.f32.mrf.mxu0
            %v2214 = vadd.f32 %v2102, %v2213
            %v2215 = vpop.f32.mrf.mxu0
            %2216 = vdwg.mxu0
            %v2217 = vpack.c.bf16 %v1912, %v1909
            %v2218 = vpack.c.bf16 %v1920, %v1917
            %v2219 = vpack.c.bf16 %v1928, %v1925
            %v2220 = vpack.c.bf16 %v1936, %v1933
            %v2221 = vpack.c.bf16 %v2051, %v2048
            %v2222 = vpack.c.bf16 %v2059, %v2056
            %v2223 = vpack.c.bf16 %v2067, %v2064
            %v2224 = vpack.c.bf16 %v2075, %v2072
            %v2225 = vpack.c.bf16 %v2190, %v2187
            %v2226 = vpack.c.bf16 %v2198, %v2195
            %v2227 = vpack.c.bf16 %v2206, %v2203
            %v2228 = vpack.c.bf16 %v2214, %v2211
            %2229 = vmatprep.subr.bf16.mxu0 0
            %2230 = vmatpush1.bf16.xpose.msra.mxu0 0
            %2231 = vmatprep.subr.bf16.mxu0 0
            %2232 = vmatpush1.bf16.xpose.msra.mxu0 0
            %2233 = vmatprep.subr.bf16.mxu0 0
            %2234 = vmatpush1.bf16.xpose.msra.mxu0 0
            %2235 = vmatprep.subr.bf16.mxu0 0
            %2236 = vmatpush1.bf16.xpose.msra.mxu0 0
            %2237 = vmatprep.subr.bf16.mxu0 0
            %2238 = vmatpush1.bf16.xpose.msra.mxu0 0
            %2239 = vmatprep.subr.bf16.mxu0 0
            %2240 = vmatpush1.bf16.xpose.msra.mxu0 0
            %2241 = vmatprep.subr.bf16.mxu0 0
            %2242 = vmatpush1.bf16.xpose.msra.mxu0 0
            %2243 = vmatprep.subr.bf16.mxu0 0
            %2244 = vmatpush1.bf16.xpose.msra.mxu0 %v2221
            %2245 = vmatprep.subr.bf16.mxu0 0
            %2246 = vmatpush2.bf16.xpose.msra.mxu0 0
            %2247 = vmatprep.subr.bf16.mxu0 0
            %2248 = vmatpush2.bf16.xpose.msra.mxu0 0
            %2249 = vmatprep.subr.bf16.mxu0 0
            %2250 = vmatpush2.bf16.xpose.msra.mxu0 0
            %2251 = vmatprep.subr.bf16.mxu0 0
            %2252 = vmatpush2.bf16.xpose.msra.mxu0 0
            %2253 = vmatprep.subr.bf16.mxu0 0
            %2254 = vmatpush2.bf16.xpose.msra.mxu0 0
            %2255 = vmatprep.subr.bf16.mxu0 0
            %2256 = vmatpush2.bf16.xpose.msra.mxu0 0
            %2257 = vmatprep.subr.bf16.mxu0 0
            %2258 = vmatpush2.bf16.xpose.msra.mxu0 0
            %2259 = vmatprep.subr.bf16.mxu0 0
            %2260 = vmatpush2.bf16.xpose.msra.mxu0 0
            %2261 = vmatprep.mubr.bf16.mxu0 0
            %2262 = vmatmul.mubr.bf16.gmra.mxu0 %v2217
            %v2263 = vpop.f32.mrf.mxu0
            %v2264 = vadd.f32 0.0, %v2263
            %v2265 = vpop.f32.mrf.mxu0
            %v2266 = vpop.f32.mrf.mxu0
            %v2267 = vadd.f32 0.0, %v2266
            %v2268 = vpop.f32.mrf.mxu0
            %2269 = vdwg.mxu0
            %2270 = vmatprep.subr.bf16.mxu0 0
            %2271 = vmatpush1.bf16.xpose.msra.mxu0 0
            %2272 = vmatprep.subr.bf16.mxu0 0
            %2273 = vmatpush1.bf16.xpose.msra.mxu0 0
            %2274 = vmatprep.subr.bf16.mxu0 0
            %2275 = vmatpush1.bf16.xpose.msra.mxu0 0
            %2276 = vmatprep.subr.bf16.mxu0 0
            %2277 = vmatpush1.bf16.xpose.msra.mxu0 0
            %2278 = vmatprep.subr.bf16.mxu0 0
            %2279 = vmatpush1.bf16.xpose.msra.mxu0 0
            %2280 = vmatprep.subr.bf16.mxu0 0
            %2281 = vmatpush1.bf16.xpose.msra.mxu0 0
            %2282 = vmatprep.subr.bf16.mxu0 0
            %2283 = vmatpush1.bf16.xpose.msra.mxu0 0
            %2284 = vmatprep.subr.bf16.mxu0 0
            %2285 = vmatpush1.bf16.xpose.msra.mxu0 %v2222
            %2286 = vmatprep.subr.bf16.mxu0 0
            %2287 = vmatpush2.bf16.xpose.msra.mxu0 0
            %2288 = vmatprep.subr.bf16.mxu0 0
            %2289 = vmatpush2.bf16.xpose.msra.mxu0 0
            %2290 = vmatprep.subr.bf16.mxu0 0
            %2291 = vmatpush2.bf16.xpose.msra.mxu0 0
            %2292 = vmatprep.subr.bf16.mxu0 0
            %2293 = vmatpush2.bf16.xpose.msra.mxu0 0
            %2294 = vmatprep.subr.bf16.mxu0 0
            %2295 = vmatpush2.bf16.xpose.msra.mxu0 0
            %2296 = vmatprep.subr.bf16.mxu0 0
            %2297 = vmatpush2.bf16.xpose.msra.mxu0 0
            %2298 = vmatprep.subr.bf16.mxu0 0
            %2299 = vmatpush2.bf16.xpose.msra.mxu0 0
            %2300 = vmatprep.subr.bf16.mxu0 0
            %2301 = vmatpush2.bf16.xpose.msra.mxu0 0
            %2302 = vmatprep.mubr.bf16.mxu0 0
            %2303 = vmatmul.mubr.bf16.gmra.mxu0 %v2218
            %v2304 = vpop.f32.mrf.mxu0
            %v2305 = vadd.f32 0.0, %v2304
            %v2306 = vpop.f32.mrf.mxu0
            %v2307 = vpop.f32.mrf.mxu0
            %v2308 = vadd.f32 0.0, %v2307
            %v2309 = vpop.f32.mrf.mxu0
            %2310 = vdwg.mxu0
            %2311 = vmatprep.subr.bf16.mxu0 0
            %2312 = vmatpush1.bf16.xpose.msra.mxu0 0
            %2313 = vmatprep.subr.bf16.mxu0 0
            %2314 = vmatpush1.bf16.xpose.msra.mxu0 0
            %2315 = vmatprep.subr.bf16.mxu0 0
            %2316 = vmatpush1.bf16.xpose.msra.mxu0 0
            %2317 = vmatprep.subr.bf16.mxu0 0
            %2318 = vmatpush1.bf16.xpose.msra.mxu0 0
            %2319 = vmatprep.subr.bf16.mxu0 0
            %2320 = vmatpush1.bf16.xpose.msra.mxu0 0
            %2321 = vmatprep.subr.bf16.mxu0 0
            %2322 = vmatpush1.bf16.xpose.msra.mxu0 0
            %2323 = vmatprep.subr.bf16.mxu0 0
            %2324 = vmatpush1.bf16.xpose.msra.mxu0 0
            %2325 = vmatprep.subr.bf16.mxu0 0
            %2326 = vmatpush1.bf16.xpose.msra.mxu0 %v2223
            %2327 = vmatprep.subr.bf16.mxu0 0
            %2328 = vmatpush2.bf16.xpose.msra.mxu0 0
            %2329 = vmatprep.subr.bf16.mxu0 0
            %2330 = vmatpush2.bf16.xpose.msra.mxu0 0
            %2331 = vmatprep.subr.bf16.mxu0 0
            %2332 = vmatpush2.bf16.xpose.msra.mxu0 0
            %2333 = vmatprep.subr.bf16.mxu0 0
            %2334 = vmatpush2.bf16.xpose.msra.mxu0 0
            %2335 = vmatprep.subr.bf16.mxu0 0
            %2336 = vmatpush2.bf16.xpose.msra.mxu0 0
            %2337 = vmatprep.subr.bf16.mxu0 0
            %2338 = vmatpush2.bf16.xpose.msra.mxu0 0
            %2339 = vmatprep.subr.bf16.mxu0 0
            %2340 = vmatpush2.bf16.xpose.msra.mxu0 0
            %2341 = vmatprep.subr.bf16.mxu0 0
            %2342 = vmatpush2.bf16.xpose.msra.mxu0 0
            %2343 = vmatprep.mubr.bf16.mxu0 0
            %2344 = vmatmul.mubr.bf16.gmra.mxu0 %v2219
            %v2345 = vpop.f32.mrf.mxu0
            %v2346 = vadd.f32 0.0, %v2345
            %v2347 = vpop.f32.mrf.mxu0
            %v2348 = vpop.f32.mrf.mxu0
            %v2349 = vadd.f32 0.0, %v2348
            %v2350 = vpop.f32.mrf.mxu0
            %2351 = vdwg.mxu0
            %2352 = vmatprep.subr.bf16.mxu0 0
            %2353 = vmatpush1.bf16.xpose.msra.mxu0 0
            %2354 = vmatprep.subr.bf16.mxu0 0
            %2355 = vmatpush1.bf16.xpose.msra.mxu0 0
            %2356 = vmatprep.subr.bf16.mxu0 0
            %2357 = vmatpush1.bf16.xpose.msra.mxu0 0
            %2358 = vmatprep.subr.bf16.mxu0 0
            %2359 = vmatpush1.bf16.xpose.msra.mxu0 0
            %2360 = vmatprep.subr.bf16.mxu0 0
            %2361 = vmatpush1.bf16.xpose.msra.mxu0 0
            %2362 = vmatprep.subr.bf16.mxu0 0
            %2363 = vmatpush1.bf16.xpose.msra.mxu0 0
            %2364 = vmatprep.subr.bf16.mxu0 0
            %2365 = vmatpush1.bf16.xpose.msra.mxu0 0
            %2366 = vmatprep.subr.bf16.mxu0 0
            %2367 = vmatpush1.bf16.xpose.msra.mxu0 %v2224
            %2368 = vmatprep.subr.bf16.mxu0 0
            %2369 = vmatpush2.bf16.xpose.msra.mxu0 0
            %2370 = vmatprep.subr.bf16.mxu0 0
            %2371 = vmatpush2.bf16.xpose.msra.mxu0 0
            %2372 = vmatprep.subr.bf16.mxu0 0
            %2373 = vmatpush2.bf16.xpose.msra.mxu0 0
            %2374 = vmatprep.subr.bf16.mxu0 0
            %2375 = vmatpush2.bf16.xpose.msra.mxu0 0
            %2376 = vmatprep.subr.bf16.mxu0 0
            %2377 = vmatpush2.bf16.xpose.msra.mxu0 0
            %2378 = vmatprep.subr.bf16.mxu0 0
            %2379 = vmatpush2.bf16.xpose.msra.mxu0 0
            %2380 = vmatprep.subr.bf16.mxu0 0
            %2381 = vmatpush2.bf16.xpose.msra.mxu0 0
            %2382 = vmatprep.subr.bf16.mxu0 0
            %2383 = vmatpush2.bf16.xpose.msra.mxu0 0
            %2384 = vmatprep.mubr.bf16.mxu0 0
            %2385 = vmatmul.mubr.bf16.gmra.mxu0 %v2220
            %v2386 = vpop.f32.mrf.mxu0
            %v2387 = vadd.f32 0.0, %v2386
            %v2388 = vpop.f32.mrf.mxu0
            %v2389 = vpop.f32.mrf.mxu0
            %v2390 = vadd.f32 0.0, %v2389
            %v2391 = vpop.f32.mrf.mxu0
            %2392 = vdwg.mxu0
            %v2393 = vmul.f32 %v2264, 0.35355338
            %v2394 = vmul.f32 %v2267, 0.35355338
            %v2395 = vmul.f32 %v2305, 0.35355338
            %v2396 = vmul.f32 %v2308, 0.35355338
            %v2397 = vmul.f32 %v2346, 0.35355338
            %v2398 = vmul.f32 %v2349, 0.35355338
            %v2399 = vmul.f32 %v2387, 0.35355338
            %v2400 = vmul.f32 %v2390, 0.35355338
            %vm2401 = vcmask 130048
            %v2402 = vsel %vm2401, %v2393, -inf
            %2403 = vmax.xlane.f32.xlu0 %v2402
            %v2404 = vpop.xlane.xlu0 %2403
            %v2405 = vsel %vm2401, %v2394, -inf
            %2406 = vmax.xlane.f32.xlu0 %v2405
            %v2407 = vpop.xlane.xlu0 %2406
            %v2408 = vsel %vm2401, %v2395, -inf
            %2409 = vmax.xlane.f32.xlu0 %v2408
            %v2410 = vpop.xlane.xlu0 %2409
            %v2411 = vsel %vm2401, %v2396, -inf
            %2412 = vmax.xlane.f32.xlu0 %v2411
            %v2413 = vpop.xlane.xlu0 %2412
            %v2414 = vsel %vm2401, %v2397, -inf
            %2415 = vmax.xlane.f32.xlu0 %v2414
            %v2416 = vpop.xlane.xlu0 %2415
            %v2417 = vsel %vm2401, %v2398, -inf
            %2418 = vmax.xlane.f32.xlu0 %v2417
            %v2419 = vpop.xlane.xlu0 %2418
            %v2420 = vsel %vm2401, %v2399, -inf
            %2421 = vmax.xlane.f32.xlu0 %v2420
            %v2422 = vpop.xlane.xlu0 %2421
            %v2423 = vsel %vm2401, %v2400, -inf
            %2424 = vmax.xlane.f32.xlu0 %v2423
            %v2425 = vpop.xlane.xlu0 %2424
            %v2426 = vsub.f32 %v2393, %v2404
            %v2427 = vsub.f32 %v2394, %v2407
            %v2428 = vsub.f32 %v2395, %v2410
            %v2429 = vsub.f32 %v2396, %v2413
            %v2430 = vsub.f32 %v2397, %v2416
            %v2431 = vsub.f32 %v2398, %v2419
            %v2432 = vsub.f32 %v2399, %v2422
            %v2433 = vsub.f32 %v2400, %v2425
            %v2434 = vmul.f32 %v2426, 1.442695
            %v2435 = vpow.pop %v2434
            %v2436 = vmul.f32 %v2427, 1.442695
            %v2437 = vpow.pop %v2436
            %v2438 = vmul.f32 %v2428, 1.442695
            %v2439 = vpow.pop %v2438
            %v2440 = vmul.f32 %v2429, 1.442695
            %v2441 = vpow.pop %v2440
            %v2442 = vmul.f32 %v2430, 1.442695
            %v2443 = vpow.pop %v2442
            %v2444 = vmul.f32 %v2431, 1.442695
            %v2445 = vpow.pop %v2444
            %v2446 = vmul.f32 %v2432, 1.442695
            %v2447 = vpow.pop %v2446
            %v2448 = vmul.f32 %v2433, 1.442695
            %v2449 = vpow.pop %v2448
            %v2450 = vsel %vm2401, %v2435, 0.0
            %2451 = vadd.xlane.f32.xlu0 %v2450
            %v2452 = vpop.xlane.xlu0 %2451
            %v2453 = vsel %vm2401, %v2437, 0.0
            %2454 = vadd.xlane.f32.xlu0 %v2453
            %v2455 = vpop.xlane.xlu0 %2454
            %v2456 = vsel %vm2401, %v2439, 0.0
            %2457 = vadd.xlane.f32.xlu0 %v2456
            %v2458 = vpop.xlane.xlu0 %2457
            %v2459 = vsel %vm2401, %v2441, 0.0
            %2460 = vadd.xlane.f32.xlu0 %v2459
            %v2461 = vpop.xlane.xlu0 %2460
            %v2462 = vsel %vm2401, %v2443, 0.0
            %2463 = vadd.xlane.f32.xlu0 %v2462
            %v2464 = vpop.xlane.xlu0 %2463
            %v2465 = vsel %vm2401, %v2445, 0.0
            %2466 = vadd.xlane.f32.xlu0 %v2465
            %v2467 = vpop.xlane.xlu0 %2466
            %v2468 = vsel %vm2401, %v2447, 0.0
            %2469 = vadd.xlane.f32.xlu0 %v2468
            %v2470 = vpop.xlane.xlu0 %2469
            %v2471 = vsel %vm2401, %v2449, 0.0
            %2472 = vadd.xlane.f32.xlu0 %v2471
            %v2473 = vpop.xlane.xlu0 %2472
            %v2474 = vrcp.pop %v2452
            %v2475 = vrcp.pop %v2455
            %v2476 = vrcp.pop %v2458
            %v2477 = vrcp.pop %v2461
            %v2478 = vrcp.pop %v2464
            %v2479 = vrcp.pop %v2467
            %v2480 = vrcp.pop %v2470
            %v2481 = vrcp.pop %v2473
            %v2482 = vmul.f32 %v2435, %v2474
            %v2483 = vmul.f32 %v2437, %v2475
            %v2484 = vmul.f32 %v2439, %v2476
            %v2485 = vmul.f32 %v2441, %v2477
            %v2486 = vmul.f32 %v2443, %v2478
            %v2487 = vmul.f32 %v2445, %v2479
            %v2488 = vmul.f32 %v2447, %v2480
            %v2489 = vmul.f32 %v2449, %v2481
            %v2490 = vpack.c.bf16 %v2483, %v2482
            %v2491 = vpack.c.bf16 %v2485, %v2484
            %v2492 = vpack.c.bf16 %v2487, %v2486
            %v2493 = vpack.c.bf16 %v2489, %v2488
            %v2495 = vsel %vm2401, %v2490, 0
            %2497 = vmatprep.subr.bf16.mxu0 0
            %2498 = vmatpush1.bf16.msra.mxu0 0
            %2499 = vmatprep.subr.bf16.mxu0 0
            %2500 = vmatpush1.bf16.msra.mxu0 0
            %2501 = vmatprep.subr.bf16.mxu0 0
            %2502 = vmatpush1.bf16.msra.mxu0 0
            %2503 = vmatprep.subr.bf16.mxu0 0
            %2504 = vmatpush1.bf16.msra.mxu0 0
            %2505 = vmatprep.subr.bf16.mxu0 0
            %2506 = vmatpush1.bf16.msra.mxu0 0
            %2507 = vmatprep.subr.bf16.mxu0 0
            %2508 = vmatpush1.bf16.msra.mxu0 0
            %2509 = vmatprep.subr.bf16.mxu0 0
            %2510 = vmatpush1.bf16.msra.mxu0 0
            %2511 = vmatprep.subr.bf16.mxu0 0
            %2512 = vmatpush1.bf16.msra.mxu0 %v2225
            %2513 = vmatprep.subr.bf16.mxu0 0
            %2514 = vmatpush2.bf16.msra.mxu0 0
            %2515 = vmatprep.subr.bf16.mxu0 0
            %2516 = vmatpush2.bf16.msra.mxu0 0
            %2517 = vmatprep.subr.bf16.mxu0 0
            %2518 = vmatpush2.bf16.msra.mxu0 0
            %2519 = vmatprep.subr.bf16.mxu0 0
            %2520 = vmatpush2.bf16.msra.mxu0 0
            %2521 = vmatprep.subr.bf16.mxu0 0
            %2522 = vmatpush2.bf16.msra.mxu0 0
            %2523 = vmatprep.subr.bf16.mxu0 0
            %2524 = vmatpush2.bf16.msra.mxu0 0
            %2525 = vmatprep.subr.bf16.mxu0 0
            %2526 = vmatpush2.bf16.msra.mxu0 0
            %2527 = vmatprep.subr.bf16.mxu0 0
            %2528 = vmatpush2.bf16.msra.mxu0 0
            %2529 = vmatprep.mubr.bf16.mxu0 0
            %2530 = vmatmul.mubr.bf16.gmra.mxu0 %v2495
            %v2531 = vpop.f32.mrf.mxu0
            %v2532 = vadd.f32 0.0, %v2531
            %v2533 = vpop.f32.mrf.mxu0
            %v2534 = vpop.f32.mrf.mxu0
            %v2535 = vadd.f32 0.0, %v2534
            %v2536 = vpop.f32.mrf.mxu0
            %2537 = vdwg.mxu0
            %v2539 = vsel %vm2401, %v2491, 0
            %2541 = vmatprep.subr.bf16.mxu0 0
            %2542 = vmatpush1.bf16.msra.mxu0 0
            %2543 = vmatprep.subr.bf16.mxu0 0
            %2544 = vmatpush1.bf16.msra.mxu0 0
            %2545 = vmatprep.subr.bf16.mxu0 0
            %2546 = vmatpush1.bf16.msra.mxu0 0
            %2547 = vmatprep.subr.bf16.mxu0 0
            %2548 = vmatpush1.bf16.msra.mxu0 0
            %2549 = vmatprep.subr.bf16.mxu0 0
            %2550 = vmatpush1.bf16.msra.mxu0 0
            %2551 = vmatprep.subr.bf16.mxu0 0
            %2552 = vmatpush1.bf16.msra.mxu0 0
            %2553 = vmatprep.subr.bf16.mxu0 0
            %2554 = vmatpush1.bf16.msra.mxu0 0
            %2555 = vmatprep.subr.bf16.mxu0 0
            %2556 = vmatpush1.bf16.msra.mxu0 %v2226
            %2557 = vmatprep.subr.bf16.mxu0 0
            %2558 = vmatpush2.bf16.msra.mxu0 0
            %2559 = vmatprep.subr.bf16.mxu0 0
            %2560 = vmatpush2.bf16.msra.mxu0 0
            %2561 = vmatprep.subr.bf16.mxu0 0
            %2562 = vmatpush2.bf16.msra.mxu0 0
            %2563 = vmatprep.subr.bf16.mxu0 0
            %2564 = vmatpush2.bf16.msra.mxu0 0
            %2565 = vmatprep.subr.bf16.mxu0 0
            %2566 = vmatpush2.bf16.msra.mxu0 0
            %2567 = vmatprep.subr.bf16.mxu0 0
            %2568 = vmatpush2.bf16.msra.mxu0 0
            %2569 = vmatprep.subr.bf16.mxu0 0
            %2570 = vmatpush2.bf16.msra.mxu0 0
            %2571 = vmatprep.subr.bf16.mxu0 0
            %2572 = vmatpush2.bf16.msra.mxu0 0
            %2573 = vmatprep.mubr.bf16.mxu0 0
            %2574 = vmatmul.mubr.bf16.gmra.mxu0 %v2539
            %v2575 = vpop.f32.mrf.mxu0
            %v2576 = vadd.f32 0.0, %v2575
            %v2577 = vpop.f32.mrf.mxu0
            %v2578 = vpop.f32.mrf.mxu0
            %v2579 = vadd.f32 0.0, %v2578
            %v2580 = vpop.f32.mrf.mxu0
            %2581 = vdwg.mxu0
            %v2583 = vsel %vm2401, %v2492, 0
            %2585 = vmatprep.subr.bf16.mxu0 0
            %2586 = vmatpush1.bf16.msra.mxu0 0
            %2587 = vmatprep.subr.bf16.mxu0 0
            %2588 = vmatpush1.bf16.msra.mxu0 0
            %2589 = vmatprep.subr.bf16.mxu0 0
            %2590 = vmatpush1.bf16.msra.mxu0 0
            %2591 = vmatprep.subr.bf16.mxu0 0
            %2592 = vmatpush1.bf16.msra.mxu0 0
            %2593 = vmatprep.subr.bf16.mxu0 0
            %2594 = vmatpush1.bf16.msra.mxu0 0
            %2595 = vmatprep.subr.bf16.mxu0 0
            %2596 = vmatpush1.bf16.msra.mxu0 0
            %2597 = vmatprep.subr.bf16.mxu0 0
            %2598 = vmatpush1.bf16.msra.mxu0 0
            %2599 = vmatprep.subr.bf16.mxu0 0
            %2600 = vmatpush1.bf16.msra.mxu0 %v2227
            %2601 = vmatprep.subr.bf16.mxu0 0
            %2602 = vmatpush2.bf16.msra.mxu0 0
            %2603 = vmatprep.subr.bf16.mxu0 0
            %2604 = vmatpush2.bf16.msra.mxu0 0
            %2605 = vmatprep.subr.bf16.mxu0 0
            %2606 = vmatpush2.bf16.msra.mxu0 0
            %2607 = vmatprep.subr.bf16.mxu0 0
            %2608 = vmatpush2.bf16.msra.mxu0 0
            %2609 = vmatprep.subr.bf16.mxu0 0
            %2610 = vmatpush2.bf16.msra.mxu0 0
            %2611 = vmatprep.subr.bf16.mxu0 0
            %2612 = vmatpush2.bf16.msra.mxu0 0
            %2613 = vmatprep.subr.bf16.mxu0 0
            %2614 = vmatpush2.bf16.msra.mxu0 0
            %2615 = vmatprep.subr.bf16.mxu0 0
            %2616 = vmatpush2.bf16.msra.mxu0 0
            %2617 = vmatprep.mubr.bf16.mxu0 0
            %2618 = vmatmul.mubr.bf16.gmra.mxu0 %v2583
            %v2619 = vpop.f32.mrf.mxu0
            %v2620 = vadd.f32 0.0, %v2619
            %v2621 = vpop.f32.mrf.mxu0
            %v2622 = vpop.f32.mrf.mxu0
            %v2623 = vadd.f32 0.0, %v2622
            %v2624 = vpop.f32.mrf.mxu0
            %2625 = vdwg.mxu0
            %v2627 = vsel %vm2401, %v2493, 0
            %2629 = vmatprep.subr.bf16.mxu0 0
            %2630 = vmatpush1.bf16.msra.mxu0 0
            %2631 = vmatprep.subr.bf16.mxu0 0
            %2632 = vmatpush1.bf16.msra.mxu0 0
            %2633 = vmatprep.subr.bf16.mxu0 0
            %2634 = vmatpush1.bf16.msra.mxu0 0
            %2635 = vmatprep.subr.bf16.mxu0 0
            %2636 = vmatpush1.bf16.msra.mxu0 0
            %2637 = vmatprep.subr.bf16.mxu0 0
            %2638 = vmatpush1.bf16.msra.mxu0 0
            %2639 = vmatprep.subr.bf16.mxu0 0
            %2640 = vmatpush1.bf16.msra.mxu0 0
            %2641 = vmatprep.subr.bf16.mxu0 0
            %2642 = vmatpush1.bf16.msra.mxu0 0
            %2643 = vmatprep.subr.bf16.mxu0 0
            %2644 = vmatpush1.bf16.msra.mxu0 %v2228
            %2645 = vmatprep.subr.bf16.mxu0 0
            %2646 = vmatpush2.bf16.msra.mxu0 0
            %2647 = vmatprep.subr.bf16.mxu0 0
            %2648 = vmatpush2.bf16.msra.mxu0 0
            %2649 = vmatprep.subr.bf16.mxu0 0
            %2650 = vmatpush2.bf16.msra.mxu0 0
            %2651 = vmatprep.subr.bf16.mxu0 0
            %2652 = vmatpush2.bf16.msra.mxu0 0
            %2653 = vmatprep.subr.bf16.mxu0 0
            %2654 = vmatpush2.bf16.msra.mxu0 0
            %2655 = vmatprep.subr.bf16.mxu0 0
            %2656 = vmatpush2.bf16.msra.mxu0 0
            %2657 = vmatprep.subr.bf16.mxu0 0
            %2658 = vmatpush2.bf16.msra.mxu0 0
            %2659 = vmatprep.subr.bf16.mxu0 0
            %2660 = vmatpush2.bf16.msra.mxu0 0
            %2661 = vmatprep.mubr.bf16.mxu0 0
            %2662 = vmatmul.mubr.bf16.gmra.mxu0 %v2627
            %v2663 = vpop.f32.mrf.mxu0
            %v2664 = vadd.f32 0.0, %v2663
            %v2665 = vpop.f32.mrf.mxu0
            %v2666 = vpop.f32.mrf.mxu0
            %v2667 = vadd.f32 0.0, %v2666
            %v2668 = vpop.f32.mrf.mxu0
            %2669 = vdwg.mxu0
            %v2670 = vpack.c.bf16 %v2535, %v2532
            %v2671 = vpack.c.bf16 %v2579, %v2576
            %v2672 = vpack.c.bf16 %v2623, %v2620
            %v2673 = vpack.c.bf16 %v2667, %v2664
            %s2674 = smul.addr %s1799, 4
            %s2675 = scalar_lea.vmem [#allocation13], %s2674
            %v2676 = vld [vmem:[%s2675] sm:$0xf]
            %v2677 = vld [vmem:[%s2675 + $0x4] sm:$0xf]
            %v2678 = vld [vmem:[%s2675 + $0x8] sm:$0xf]
            %v2679 = vld [vmem:[%s2675 + $0xc] sm:$0xf]
            %v2680 = vld [vmem:[%s2675 + $0x10] sm:$0xf]
            %v2681 = vld [vmem:[%s2675 + $0x14] sm:$0xf]
            %v2682 = vld [vmem:[%s2675 + $0x18] sm:$0xf]
            %v2683 = vld [vmem:[%s2675 + $0x1c] sm:$0xf]
            %v2684 = vld [vmem:[%s2675 + $0x20] sm:$0xf]
            %v2685 = vld [vmem:[%s2675 + $0x24] sm:$0xf]
            %v2686 = vld [vmem:[%s2675 + $0x28] sm:$0xf]
            %v2687 = vld [vmem:[%s2675 + $0x2c] sm:$0xf]
            %v2688 = vld [vmem:[%s2675 + $0x30] sm:$0xf]
            %v2689 = vld [vmem:[%s2675 + $0x34] sm:$0xf]
            %v2690 = vld [vmem:[%s2675 + $0x38] sm:$0xf]
            %v2691 = vld [vmem:[%s2675 + $0x3c] sm:$0xf]
            %v2708 = vunpack.c.l.b16 %v2676
            %v2709 = vunpack.c.l.b16 %v2677
            %v2710 = vunpack.c.l.b16 %v2678
            %v2711 = vunpack.c.l.b16 %v2679
            %v2712 = vunpack.c.l.b16 %v2680
            %v2713 = vunpack.c.l.b16 %v2681
            %v2714 = vunpack.c.l.b16 %v2682
            %v2715 = vunpack.c.l.b16 %v2683
            %v2716 = vunpack.c.l.b16 %v2684
            %v2717 = vunpack.c.l.b16 %v2685
            %v2718 = vunpack.c.l.b16 %v2686
            %v2719 = vunpack.c.l.b16 %v2687
            %v2720 = vunpack.c.l.b16 %v2688
            %v2721 = vunpack.c.l.b16 %v2689
            %v2722 = vunpack.c.l.b16 %v2690
            %v2723 = vunpack.c.l.b16 %v2691
            %v2724 = vpack.c.b16 %v2709, %v2708
            %v2725 = vpack.c.b16 %v2711, %v2710
            %v2726 = vpack.c.b16 %v2713, %v2712
            %v2727 = vpack.c.b16 %v2715, %v2714
            %v2728 = vpack.c.b16 %v2717, %v2716
            %v2729 = vpack.c.b16 %v2719, %v2718
            %v2730 = vpack.c.b16 %v2721, %v2720
            %v2731 = vpack.c.b16 %v2723, %v2722
            %2740 = vmatprep.subr.bf16.mxu0 0
            %2741 = vmatpush1.bf16.msra.mxu0 %v2731
            %2742 = vmatprep.subr.bf16.mxu0 0
            %2743 = vmatpush1.bf16.msra.mxu0 %v2730
            %2744 = vmatprep.subr.bf16.mxu0 0
            %2745 = vmatpush1.bf16.msra.mxu0 %v2729
            %2746 = vmatprep.subr.bf16.mxu0 0
            %2747 = vmatpush1.bf16.msra.mxu0 %v2728
            %2748 = vmatprep.subr.bf16.mxu0 0
            %2749 = vmatpush1.bf16.msra.mxu0 %v2727
            %2750 = vmatprep.subr.bf16.mxu0 0
            %2751 = vmatpush1.bf16.msra.mxu0 %v2726
            %2752 = vmatprep.subr.bf16.mxu0 0
            %2753 = vmatpush1.bf16.msra.mxu0 %v2725
            %2754 = vmatprep.subr.bf16.mxu0 0
            %2755 = vmatpush1.bf16.msra.mxu0 %v2724
            %2756 = vmatprep.subr.bf16.mxu0 0
            %2757 = vmatpush2.bf16.msra.mxu0 0
            %2758 = vmatprep.subr.bf16.mxu0 0
            %2759 = vmatpush2.bf16.msra.mxu0 0
            %2760 = vmatprep.subr.bf16.mxu0 0
            %2761 = vmatpush2.bf16.msra.mxu0 0
            %2762 = vmatprep.subr.bf16.mxu0 0
            %2763 = vmatpush2.bf16.msra.mxu0 0
            %2764 = vmatprep.subr.bf16.mxu0 0
            %2765 = vmatpush2.bf16.msra.mxu0 0
            %2766 = vmatprep.subr.bf16.mxu0 0
            %2767 = vmatpush2.bf16.msra.mxu0 0
            %2768 = vmatprep.subr.bf16.mxu0 0
            %2769 = vmatpush2.bf16.msra.mxu0 0
            %2770 = vmatprep.subr.bf16.mxu0 0
            %2771 = vmatpush2.bf16.msra.mxu0 0
            %2772 = vmatprep.mubr.bf16.mxu0 0
            %2773 = vmatmul.mubr.bf16.gmra.mxu0 %v2670
            %v2774 = vpop.f32.mrf.mxu0
            %v2775 = vadd.f32 0.0, %v2774
            %v2776 = vpop.f32.mrf.mxu0
            %v2777 = vpop.f32.mrf.mxu0
            %v2778 = vadd.f32 0.0, %v2777
            %v2779 = vpop.f32.mrf.mxu0
            %2780 = vmatprep.mubr.bf16.mxu0 0
            %2781 = vmatmul.mubr.bf16.gmra.mxu0 %v2671
            %v2782 = vpop.f32.mrf.mxu0
            %v2783 = vadd.f32 0.0, %v2782
            %v2784 = vpop.f32.mrf.mxu0
            %v2785 = vpop.f32.mrf.mxu0
            %v2786 = vadd.f32 0.0, %v2785
            %v2787 = vpop.f32.mrf.mxu0
            %2788 = vmatprep.mubr.bf16.mxu0 0
            %2789 = vmatmul.mubr.bf16.gmra.mxu0 %v2672
            %v2790 = vpop.f32.mrf.mxu0
            %v2791 = vadd.f32 0.0, %v2790
            %v2792 = vpop.f32.mrf.mxu0
            %v2793 = vpop.f32.mrf.mxu0
            %v2794 = vadd.f32 0.0, %v2793
            %v2795 = vpop.f32.mrf.mxu0
            %2796 = vmatprep.mubr.bf16.mxu0 0
            %2797 = vmatmul.mubr.bf16.gmra.mxu0 %v2673
            %v2798 = vpop.f32.mrf.mxu0
            %v2799 = vadd.f32 0.0, %v2798
            %v2800 = vpop.f32.mrf.mxu0
            %v2801 = vpop.f32.mrf.mxu0
            %v2802 = vadd.f32 0.0, %v2801
            %v2803 = vpop.f32.mrf.mxu0
            %2804 = vdwg.mxu0
            %v2805 = vadd.f32 %v1789, %v2775
            %v2806 = vadd.f32 %v1790, %v2778
            %v2807 = vadd.f32 %v1791, %v2783
            %v2808 = vadd.f32 %v1792, %v2786
            %v2809 = vadd.f32 %v1793, %v2791
            %v2810 = vadd.f32 %v1794, %v2794
            %v2811 = vadd.f32 %v1795, %v2799
            %v2812 = vadd.f32 %v1796, %v2802
          $region248: #{encoder_with_svtr.1} parent=240 // loop_footer
            %s1788 = sadd.s32 1, %s1784
          $region249: #{encoder_with_svtr.1} parent=240 // loop_footer_branch
            %1783 = sbr.rel target = $region245
          $region250: #{encoder_with_svtr.1} parent=240 // loop_exit
            _
          %v2813 = vadd.f32 %v1643, %v1789
          %v2814 = vadd.f32 %v1644, %v1790
          %v2815 = vadd.f32 %v1645, %v1791
          %v2816 = vadd.f32 %v1646, %v1792
          %v2817 = vadd.f32 %v1647, %v1793
          %v2818 = vadd.f32 %v1648, %v1794
          %v2819 = vadd.f32 %v1649, %v1795
          %v2820 = vadd.f32 %v1650, %v1796
          %s2821 = scalar_lea.vmem [#allocation15], %s1638
          %v2822 = vld [vmem:[%s2821] sm:$0x1]
          %v2824 = vlaneseq
          %v2825 = vshrl.u32 %v2824, 7
          %v2826 = vsub.s32 0, %v2825
          %v2827 = vrot.slane %v2822, %v2826
          %v2829 = vadd.f32 %v2813, %v2827
          %v2830 = vadd.f32 %v2814, %v2827
          %v2831 = vadd.f32 %v2815, %v2827
          %v2832 = vadd.f32 %v2816, %v2827
          %v2833 = vadd.f32 %v2817, %v2827
          %v2834 = vadd.f32 %v2818, %v2827
          %v2835 = vadd.f32 %v2819, %v2827
          %v2836 = vadd.f32 %v2820, %v2827
          %s2837 = scalar_lea.vmem [#allocation16], %s1638
          %v2838 = vld [vmem:[%s2837] sm:$0x1]
          %s2839 = scalar_lea.vmem [#allocation18], %s1638
          %v2840 = vld [vmem:[%s2839] sm:$0x1]
          %2841 = vadd.xlane.f32.xlu0 %v2829
          %v2842 = vpop.xlane.xlu0 %2841
          %2843 = vadd.xlane.f32.xlu0 %v2830
          %v2844 = vpop.xlane.xlu0 %2843
          %2845 = vadd.xlane.f32.xlu0 %v2831
          %v2846 = vpop.xlane.xlu0 %2845
          %2847 = vadd.xlane.f32.xlu0 %v2832
          %v2848 = vpop.xlane.xlu0 %2847
          %2849 = vadd.xlane.f32.xlu0 %v2833
          %v2850 = vpop.xlane.xlu0 %2849
          %2851 = vadd.xlane.f32.xlu0 %v2834
          %v2852 = vpop.xlane.xlu0 %2851
          %2853 = vadd.xlane.f32.xlu0 %v2835
          %v2854 = vpop.xlane.xlu0 %2853
          %2855 = vadd.xlane.f32.xlu0 %v2836
          %v2856 = vpop.xlane.xlu0 %2855
          %v2857 = vmul.f32 %v2842, 0.015625
          %v2858 = vmul.f32 %v2844, 0.015625
          %v2859 = vmul.f32 %v2846, 0.015625
          %v2860 = vmul.f32 %v2848, 0.015625
          %v2861 = vmul.f32 %v2850, 0.015625
          %v2862 = vmul.f32 %v2852, 0.015625
          %v2863 = vmul.f32 %v2854, 0.015625
          %v2864 = vmul.f32 %v2856, 0.015625
          %v2865 = vsub.f32 %v2829, %v2857
          %v2866 = vsub.f32 %v2830, %v2858
          %v2867 = vsub.f32 %v2831, %v2859
          %v2868 = vsub.f32 %v2832, %v2860
          %v2869 = vsub.f32 %v2833, %v2861
          %v2870 = vsub.f32 %v2834, %v2862
          %v2871 = vsub.f32 %v2835, %v2863
          %v2872 = vsub.f32 %v2836, %v2864
          %v2873 = vmul.f32 %v2865, %v1279
          %v2874 = vmul.f32 %v2866, %v1279
          %v2875 = vmul.f32 %v2867, %v1279
          %v2876 = vmul.f32 %v2868, %v1279
          %v2877 = vmul.f32 %v2869, %v1279
          %v2878 = vmul.f32 %v2870, %v1279
          %v2879 = vmul.f32 %v2871, %v1279
          %v2880 = vmul.f32 %v2872, %v1279
          %v2881 = vmul.f32 %v2873, %v2873
          %v2882 = vmul.f32 %v2874, %v2874
          %v2883 = vmul.f32 %v2875, %v2875
          %v2884 = vmul.f32 %v2876, %v2876
          %v2885 = vmul.f32 %v2877, %v2877
          %v2886 = vmul.f32 %v2878, %v2878
          %v2887 = vmul.f32 %v2879, %v2879
          %v2888 = vmul.f32 %v2880, %v2880
          %2889 = vadd.xlane.f32.xlu0 %v2881
          %v2890 = vpop.xlane.xlu0 %2889
          %2891 = vadd.xlane.f32.xlu0 %v2882
          %v2892 = vpop.xlane.xlu0 %2891
          %2893 = vadd.xlane.f32.xlu0 %v2883
          %v2894 = vpop.xlane.xlu0 %2893
          %2895 = vadd.xlane.f32.xlu0 %v2884
          %v2896 = vpop.xlane.xlu0 %2895
          %2897 = vadd.xlane.f32.xlu0 %v2885
          %v2898 = vpop.xlane.xlu0 %2897
          %2899 = vadd.xlane.f32.xlu0 %v2886
          %v2900 = vpop.xlane.xlu0 %2899
          %2901 = vadd.xlane.f32.xlu0 %v2887
          %v2902 = vpop.xlane.xlu0 %2901
          %2903 = vadd.xlane.f32.xlu0 %v2888
          %v2904 = vpop.xlane.xlu0 %2903
          %v2905 = vmul.f32 %v2890, 0.015625
          %v2906 = vmul.f32 %v2892, 0.015625
          %v2907 = vmul.f32 %v2894, 0.015625
          %v2908 = vmul.f32 %v2896, 0.015625
          %v2909 = vmul.f32 %v2898, 0.015625
          %v2910 = vmul.f32 %v2900, 0.015625
          %v2911 = vmul.f32 %v2902, 0.015625
          %v2912 = vmul.f32 %v2904, 0.015625
          %v2913 = vadd.f32 %v2905, 1e-05
          %v2914 = vadd.f32 %v2906, 1e-05
          %v2915 = vadd.f32 %v2907, 1e-05
          %v2916 = vadd.f32 %v2908, 1e-05
          %v2917 = vadd.f32 %v2909, 1e-05
          %v2918 = vadd.f32 %v2910, 1e-05
          %v2919 = vadd.f32 %v2911, 1e-05
          %v2920 = vadd.f32 %v2912, 1e-05
          %v2921 = vrsqrt.pop %v2913
          %v2922 = vrsqrt.pop %v2914
          %v2923 = vrsqrt.pop %v2915
          %v2924 = vrsqrt.pop %v2916
          %v2925 = vrsqrt.pop %v2917
          %v2926 = vrsqrt.pop %v2918
          %v2927 = vrsqrt.pop %v2919
          %v2928 = vrsqrt.pop %v2920
          %v2929 = vmul.f32 %v2873, %v2921
          %v2930 = vmul.f32 %v2874, %v2922
          %v2931 = vmul.f32 %v2875, %v2923
          %v2932 = vmul.f32 %v2876, %v2924
          %v2933 = vmul.f32 %v2877, %v2925
          %v2934 = vmul.f32 %v2878, %v2926
          %v2935 = vmul.f32 %v2879, %v2927
          %v2936 = vmul.f32 %v2880, %v2928
          %v2938 = vlaneseq
          %v2939 = vshrl.u32 %v2938, 7
          %v2940 = vsub.s32 0, %v2939
          %v2941 = vrot.slane %v2838, %v2940
          %v2943 = vmul.f32 %v2929, %v2941
          %v2944 = vmul.f32 %v2930, %v2941
          %v2945 = vmul.f32 %v2931, %v2941
          %v2946 = vmul.f32 %v2932, %v2941
          %v2947 = vmul.f32 %v2933, %v2941
          %v2948 = vmul.f32 %v2934, %v2941
          %v2949 = vmul.f32 %v2935, %v2941
          %v2950 = vmul.f32 %v2936, %v2941
          %v2952 = vlaneseq
          %v2953 = vshrl.u32 %v2952, 7
          %v2954 = vsub.s32 0, %v2953
          %v2955 = vrot.slane %v2840, %v2954
          %v2957 = vadd.f32 %v2943, %v2955
          %v2958 = vadd.f32 %v2944, %v2955
          %v2959 = vadd.f32 %v2945, %v2955
          %v2960 = vadd.f32 %v2946, %v2955
          %v2961 = vadd.f32 %v2947, %v2955
          %v2962 = vadd.f32 %v2948, %v2955
          %v2963 = vadd.f32 %v2949, %v2955
          %v2964 = vadd.f32 %v2950, %v2955
          %v2965 = vpack.c.bf16 %v2958, %v2957
          %v2966 = vpack.c.bf16 %v2960, %v2959
          %v2967 = vpack.c.bf16 %v2962, %v2961
          %v2968 = vpack.c.bf16 %v2964, %v2963
          %s2969 = smul.u32 %s1638, 16
          %s2970 = smul.addr %s2969, 4
          %s2971 = scalar_lea.vmem [#allocation19], %s2970
          %v2972 = vld [vmem:[%s2971] sm:$0xf]
          %v2973 = vld [vmem:[%s2971 + $0x4] sm:$0xf]
          %v2974 = vld [vmem:[%s2971 + $0x8] sm:$0xf]
          %v2975 = vld [vmem:[%s2971 + $0xc] sm:$0xf]
          %v2976 = vld [vmem:[%s2971 + $0x10] sm:$0xf]
          %v2977 = vld [vmem:[%s2971 + $0x14] sm:$0xf]
          %v2978 = vld [vmem:[%s2971 + $0x18] sm:$0xf]
          %v2979 = vld [vmem:[%s2971 + $0x1c] sm:$0xf]
          %v2980 = vld [vmem:[%s2971 + $0x20] sm:$0xf]
          %v2981 = vld [vmem:[%s2971 + $0x24] sm:$0xf]
          %v2982 = vld [vmem:[%s2971 + $0x28] sm:$0xf]
          %v2983 = vld [vmem:[%s2971 + $0x2c] sm:$0xf]
          %v2984 = vld [vmem:[%s2971 + $0x30] sm:$0xf]
          %v2985 = vld [vmem:[%s2971 + $0x34] sm:$0xf]
          %v2986 = vld [vmem:[%s2971 + $0x38] sm:$0xf]
          %v2987 = vld [vmem:[%s2971 + $0x3c] sm:$0xf]
          %s2988 = scalar_lea.vmem [#allocation21], %s1638
          %v2989 = vld [vmem:[%s2988] sm:$0x1]
          %v2991 = vlaneseq
          %v2992 = vshrl.u32 %v2991, 7
          %v2993 = vsub.s32 0, %v2992
          %v2994 = vrot.slane %v2989, %v2993
          %v3012 = vunpack.c.l.b16 %v2972
          %v3013 = vunpack.c.l.b16 %v2973
          %v3014 = vunpack.c.l.b16 %v2974
          %v3015 = vunpack.c.l.b16 %v2975
          %v3016 = vunpack.c.l.b16 %v2976
          %v3017 = vunpack.c.l.b16 %v2977
          %v3018 = vunpack.c.l.b16 %v2978
          %v3019 = vunpack.c.l.b16 %v2979
          %v3020 = vunpack.c.l.b16 %v2980
          %v3021 = vunpack.c.l.b16 %v2981
          %v3022 = vunpack.c.l.b16 %v2982
          %v3023 = vunpack.c.l.b16 %v2983
          %v3024 = vunpack.c.l.b16 %v2984
          %v3025 = vunpack.c.l.b16 %v2985
          %v3026 = vunpack.c.l.b16 %v2986
          %v3027 = vunpack.c.l.b16 %v2987
          %v3028 = vpack.c.b16 %v3013, %v3012
          %v3029 = vpack.c.b16 %v3015, %v3014
          %v3030 = vpack.c.b16 %v3017, %v3016
          %v3031 = vpack.c.b16 %v3019, %v3018
          %v3032 = vpack.c.b16 %v3021, %v3020
          %v3033 = vpack.c.b16 %v3023, %v3022
          %v3034 = vpack.c.b16 %v3025, %v3024
          %v3035 = vpack.c.b16 %v3027, %v3026
          %3044 = vmatprep.subr.bf16.mxu0 0
          %3045 = vmatpush1.bf16.msra.mxu0 %v3035
          %3046 = vmatprep.subr.bf16.mxu0 0
          %3047 = vmatpush1.bf16.msra.mxu0 %v3034
          %3048 = vmatprep.subr.bf16.mxu0 0
          %3049 = vmatpush1.bf16.msra.mxu0 %v3033
          %3050 = vmatprep.subr.bf16.mxu0 0
          %3051 = vmatpush1.bf16.msra.mxu0 %v3032
          %3052 = vmatprep.subr.bf16.mxu0 0
          %3053 = vmatpush1.bf16.msra.mxu0 %v3031
          %3054 = vmatprep.subr.bf16.mxu0 0
          %3055 = vmatpush1.bf16.msra.mxu0 %v3030
          %3056 = vmatprep.subr.bf16.mxu0 0
          %3057 = vmatpush1.bf16.msra.mxu0 %v3029
          %3058 = vmatprep.subr.bf16.mxu0 0
          %3059 = vmatpush1.bf16.msra.mxu0 %v3028
          %3060 = vmatprep.subr.bf16.mxu0 0
          %3061 = vmatpush2.bf16.msra.mxu0 0
          %3062 = vmatprep.subr.bf16.mxu0 0
          %3063 = vmatpush2.bf16.msra.mxu0 0
          %3064 = vmatprep.subr.bf16.mxu0 0
          %3065 = vmatpush2.bf16.msra.mxu0 0
          %3066 = vmatprep.subr.bf16.mxu0 0
          %3067 = vmatpush2.bf16.msra.mxu0 0
          %3068 = vmatprep.subr.bf16.mxu0 0
          %3069 = vmatpush2.bf16.msra.mxu0 0
          %3070 = vmatprep.subr.bf16.mxu0 0
          %3071 = vmatpush2.bf16.msra.mxu0 0
          %3072 = vmatprep.subr.bf16.mxu0 0
          %3073 = vmatpush2.bf16.msra.mxu0 0
          %3074 = vmatprep.subr.bf16.mxu0 0
          %3075 = vmatpush2.bf16.msra.mxu0 0
          %3076 = vmatprep.mubr.bf16.mxu0 0
          %3077 = vmatmul.mubr.bf16.gmra.mxu0 %v2965
          %v3078 = vpop.f32.mrf.mxu0
          %v3079 = vadd.f32 %v2994, %v3078
          %v3080 = vpop.f32.mrf.mxu0
          %v3081 = vpop.f32.mrf.mxu0
          %v3082 = vadd.f32 %v2994, %v3081
          %v3083 = vpop.f32.mrf.mxu0
          %3084 = vmatprep.mubr.bf16.mxu0 0
          %3085 = vmatmul.mubr.bf16.gmra.mxu0 %v2966
          %v3086 = vpop.f32.mrf.mxu0
          %v3087 = vadd.f32 %v2994, %v3086
          %v3088 = vpop.f32.mrf.mxu0
          %v3089 = vpop.f32.mrf.mxu0
          %v3090 = vadd.f32 %v2994, %v3089
          %v3091 = vpop.f32.mrf.mxu0
          %3092 = vmatprep.mubr.bf16.mxu0 0
          %3093 = vmatmul.mubr.bf16.gmra.mxu0 %v2967
          %v3094 = vpop.f32.mrf.mxu0
          %v3095 = vadd.f32 %v2994, %v3094
          %v3096 = vpop.f32.mrf.mxu0
          %v3097 = vpop.f32.mrf.mxu0
          %v3098 = vadd.f32 %v2994, %v3097
          %v3099 = vpop.f32.mrf.mxu0
          %3100 = vmatprep.mubr.bf16.mxu0 0
          %3101 = vmatmul.mubr.bf16.gmra.mxu0 %v2968
          %v3102 = vpop.f32.mrf.mxu0
          %v3103 = vadd.f32 %v2994, %v3102
          %v3104 = vpop.f32.mrf.mxu0
          %v3105 = vpop.f32.mrf.mxu0
          %v3106 = vadd.f32 %v2994, %v3105
          %v3107 = vpop.f32.mrf.mxu0
          %3108 = vdwg.mxu0
          %v3109 = vsub.f32 0.0, %v3079
          %v3110 = vsub.f32 0.0, %v3082
          %v3111 = vsub.f32 0.0, %v3087
          %v3112 = vsub.f32 0.0, %v3090
          %v3113 = vsub.f32 0.0, %v3095
          %v3114 = vsub.f32 0.0, %v3098
          %v3115 = vsub.f32 0.0, %v3103
          %v3116 = vsub.f32 0.0, %v3106
          %v3117 = vmul.f32 %v3109, 1.442695
          %v3118 = vpow.pop %v3117
          %v3119 = vmul.f32 %v3110, 1.442695
          %v3120 = vpow.pop %v3119
          %v3121 = vmul.f32 %v3111, 1.442695
          %v3122 = vpow.pop %v3121
          %v3123 = vmul.f32 %v3112, 1.442695
          %v3124 = vpow.pop %v3123
          %v3125 = vmul.f32 %v3113, 1.442695
          %v3126 = vpow.pop %v3125
          %v3127 = vmul.f32 %v3114, 1.442695
          %v3128 = vpow.pop %v3127
          %v3129 = vmul.f32 %v3115, 1.442695
          %v3130 = vpow.pop %v3129
          %v3131 = vmul.f32 %v3116, 1.442695
          %v3132 = vpow.pop %v3131
          %v3133 = vadd.f32 %v3118, 1.0
          %v3134 = vadd.f32 %v3120, 1.0
          %v3135 = vadd.f32 %v3122, 1.0
          %v3136 = vadd.f32 %v3124, 1.0
          %v3137 = vadd.f32 %v3126, 1.0
          %v3138 = vadd.f32 %v3128, 1.0
          %v3139 = vadd.f32 %v3130, 1.0
          %v3140 = vadd.f32 %v3132, 1.0
          %v3141 = vrcp.pop %v3133
          %v3142 = vmul.f32 %v3079, %v3141
          %v3143 = vrcp.pop %v3134
          %v3144 = vmul.f32 %v3082, %v3143
          %v3145 = vrcp.pop %v3135
          %v3146 = vmul.f32 %v3087, %v3145
          %v3147 = vrcp.pop %v3136
          %v3148 = vmul.f32 %v3090, %v3147
          %v3149 = vrcp.pop %v3137
          %v3150 = vmul.f32 %v3095, %v3149
          %v3151 = vrcp.pop %v3138
          %v3152 = vmul.f32 %v3098, %v3151
          %v3153 = vrcp.pop %v3139
          %v3154 = vmul.f32 %v3103, %v3153
          %v3155 = vrcp.pop %v3140
          %v3156 = vmul.f32 %v3106, %v3155
          %v3157 = vpack.c.bf16 %v3144, %v3142
          %v3158 = vpack.c.bf16 %v3148, %v3146
          %v3159 = vpack.c.bf16 %v3152, %v3150
          %v3160 = vpack.c.bf16 %v3156, %v3154
          %s3161 = smul.addr %s2969, 4
          %s3162 = scalar_lea.vmem [#allocation22], %s3161
          %v3163 = vld [vmem:[%s3162] sm:$0xf]
          %v3164 = vld [vmem:[%s3162 + $0x4] sm:$0xf]
          %v3165 = vld [vmem:[%s3162 + $0x8] sm:$0xf]
          %v3166 = vld [vmem:[%s3162 + $0xc] sm:$0xf]
          %v3167 = vld [vmem:[%s3162 + $0x10] sm:$0xf]
          %v3168 = vld [vmem:[%s3162 + $0x14] sm:$0xf]
          %v3169 = vld [vmem:[%s3162 + $0x18] sm:$0xf]
          %v3170 = vld [vmem:[%s3162 + $0x1c] sm:$0xf]
          %v3171 = vld [vmem:[%s3162 + $0x20] sm:$0xf]
          %v3172 = vld [vmem:[%s3162 + $0x24] sm:$0xf]
          %v3173 = vld [vmem:[%s3162 + $0x28] sm:$0xf]
          %v3174 = vld [vmem:[%s3162 + $0x2c] sm:$0xf]
          %v3175 = vld [vmem:[%s3162 + $0x30] sm:$0xf]
          %v3176 = vld [vmem:[%s3162 + $0x34] sm:$0xf]
          %v3177 = vld [vmem:[%s3162 + $0x38] sm:$0xf]
          %v3178 = vld [vmem:[%s3162 + $0x3c] sm:$0xf]
          %v3195 = vunpack.c.l.b16 %v3163
          %v3196 = vunpack.c.l.b16 %v3164
          %v3197 = vunpack.c.l.b16 %v3165
          %v3198 = vunpack.c.l.b16 %v3166
          %v3199 = vunpack.c.l.b16 %v3167
          %v3200 = vunpack.c.l.b16 %v3168
          %v3201 = vunpack.c.l.b16 %v3169
          %v3202 = vunpack.c.l.b16 %v3170
          %v3203 = vunpack.c.l.b16 %v3171
          %v3204 = vunpack.c.l.b16 %v3172
          %v3205 = vunpack.c.l.b16 %v3173
          %v3206 = vunpack.c.l.b16 %v3174
          %v3207 = vunpack.c.l.b16 %v3175
          %v3208 = vunpack.c.l.b16 %v3176
          %v3209 = vunpack.c.l.b16 %v3177
          %v3210 = vunpack.c.l.b16 %v3178
          %v3211 = vpack.c.b16 %v3196, %v3195
          %v3212 = vpack.c.b16 %v3198, %v3197
          %v3213 = vpack.c.b16 %v3200, %v3199
          %v3214 = vpack.c.b16 %v3202, %v3201
          %v3215 = vpack.c.b16 %v3204, %v3203
          %v3216 = vpack.c.b16 %v3206, %v3205
          %v3217 = vpack.c.b16 %v3208, %v3207
          %v3218 = vpack.c.b16 %v3210, %v3209
          %3227 = vmatprep.subr.bf16.mxu0 0
          %3228 = vmatpush1.bf16.msra.mxu0 %v3218
          %3229 = vmatprep.subr.bf16.mxu0 0
          %3230 = vmatpush1.bf16.msra.mxu0 %v3217
          %3231 = vmatprep.subr.bf16.mxu0 0
          %3232 = vmatpush1.bf16.msra.mxu0 %v3216
          %3233 = vmatprep.subr.bf16.mxu0 0
          %3234 = vmatpush1.bf16.msra.mxu0 %v3215
          %3235 = vmatprep.subr.bf16.mxu0 0
          %3236 = vmatpush1.bf16.msra.mxu0 %v3214
          %3237 = vmatprep.subr.bf16.mxu0 0
          %3238 = vmatpush1.bf16.msra.mxu0 %v3213
          %3239 = vmatprep.subr.bf16.mxu0 0
          %3240 = vmatpush1.bf16.msra.mxu0 %v3212
          %3241 = vmatprep.subr.bf16.mxu0 0
          %3242 = vmatpush1.bf16.msra.mxu0 %v3211
          %3243 = vmatprep.subr.bf16.mxu0 0
          %3244 = vmatpush2.bf16.msra.mxu0 0
          %3245 = vmatprep.subr.bf16.mxu0 0
          %3246 = vmatpush2.bf16.msra.mxu0 0
          %3247 = vmatprep.subr.bf16.mxu0 0
          %3248 = vmatpush2.bf16.msra.mxu0 0
          %3249 = vmatprep.subr.bf16.mxu0 0
          %3250 = vmatpush2.bf16.msra.mxu0 0
          %3251 = vmatprep.subr.bf16.mxu0 0
          %3252 = vmatpush2.bf16.msra.mxu0 0
          %3253 = vmatprep.subr.bf16.mxu0 0
          %3254 = vmatpush2.bf16.msra.mxu0 0
          %3255 = vmatprep.subr.bf16.mxu0 0
          %3256 = vmatpush2.bf16.msra.mxu0 0
          %3257 = vmatprep.subr.bf16.mxu0 0
          %3258 = vmatpush2.bf16.msra.mxu0 0
          %3259 = vmatprep.mubr.bf16.mxu0 0
          %3260 = vmatmul.mubr.bf16.gmra.mxu0 %v3157
          %v3261 = vpop.f32.mrf.mxu0
          %v3262 = vadd.f32 0.0, %v3261
          %v3263 = vpop.f32.mrf.mxu0
          %v3264 = vpop.f32.mrf.mxu0
          %v3265 = vadd.f32 0.0, %v3264
          %v3266 = vpop.f32.mrf.mxu0
          %3267 = vmatprep.mubr.bf16.mxu0 0
          %3268 = vmatmul.mubr.bf16.gmra.mxu0 %v3158
          %v3269 = vpop.f32.mrf.mxu0
          %v3270 = vadd.f32 0.0, %v3269
          %v3271 = vpop.f32.mrf.mxu0
          %v3272 = vpop.f32.mrf.mxu0
          %v3273 = vadd.f32 0.0, %v3272
          %v3274 = vpop.f32.mrf.mxu0
          %3275 = vmatprep.mubr.bf16.mxu0 0
          %3276 = vmatmul.mubr.bf16.gmra.mxu0 %v3159
          %v3277 = vpop.f32.mrf.mxu0
          %v3278 = vadd.f32 0.0, %v3277
          %v3279 = vpop.f32.mrf.mxu0
          %v3280 = vpop.f32.mrf.mxu0
          %v3281 = vadd.f32 0.0, %v3280
          %v3282 = vpop.f32.mrf.mxu0
          %3283 = vmatprep.mubr.bf16.mxu0 0
          %3284 = vmatmul.mubr.bf16.gmra.mxu0 %v3160
          %v3285 = vpop.f32.mrf.mxu0
          %v3286 = vadd.f32 0.0, %v3285
          %v3287 = vpop.f32.mrf.mxu0
          %v3288 = vpop.f32.mrf.mxu0
          %v3289 = vadd.f32 0.0, %v3288
          %v3290 = vpop.f32.mrf.mxu0
          %3291 = vdwg.mxu0
          %v3292 = vadd.f32 %v2829, %v3262
          %v3293 = vadd.f32 %v2830, %v3265
          %v3294 = vadd.f32 %v2831, %v3270
          %v3295 = vadd.f32 %v2832, %v3273
          %v3296 = vadd.f32 %v2833, %v3278
          %v3297 = vadd.f32 %v2834, %v3281
          %v3298 = vadd.f32 %v2835, %v3286
          %v3299 = vadd.f32 %v2836, %v3289
          %s3300 = scalar_lea.vmem [#allocation24], %s1638
          %v3301 = vld [vmem:[%s3300] sm:$0x1]
          %v3303 = vlaneseq
          %v3304 = vshrl.u32 %v3303, 7
          %v3305 = vsub.s32 0, %v3304
          %v3306 = vrot.slane %v3301, %v3305
          %v3308 = vadd.f32 %v3292, %v3306
          %v3309 = vadd.f32 %v3293, %v3306
          %v3310 = vadd.f32 %v3294, %v3306
          %v3311 = vadd.f32 %v3295, %v3306
          %v3312 = vadd.f32 %v3296, %v3306
          %v3313 = vadd.f32 %v3297, %v3306
          %v3314 = vadd.f32 %v3298, %v3306
          %v3315 = vadd.f32 %v3299, %v3306
        $region241: #{encoder_with_svtr.1} parent=139 // loop_footer
          %s1642 = sadd.s32 1, %s1638
        $region242: #{encoder_with_svtr.1} parent=139 // loop_footer_branch
          %1637 = sbr.rel target = $region238
        $region243: #{encoder_with_svtr.1} parent=139 // loop_exit
          _
        %v3316 = vld [vmem:[#allocation25] sm:$0x1]
        %v3317 = vld [vmem:[#allocation27] sm:$0x1]
        %3318 = vadd.xlane.f32.xlu0 %v1643
        %v3319 = vpop.xlane.xlu0 %3318
        %3320 = vadd.xlane.f32.xlu0 %v1644
        %v3321 = vpop.xlane.xlu0 %3320
        %3322 = vadd.xlane.f32.xlu0 %v1645
        %v3323 = vpop.xlane.xlu0 %3322
        %3324 = vadd.xlane.f32.xlu0 %v1646
        %v3325 = vpop.xlane.xlu0 %3324
        %3326 = vadd.xlane.f32.xlu0 %v1647
        %v3327 = vpop.xlane.xlu0 %3326
        %3328 = vadd.xlane.f32.xlu0 %v1648
        %v3329 = vpop.xlane.xlu0 %3328
        %3330 = vadd.xlane.f32.xlu0 %v1649
        %v3331 = vpop.xlane.xlu0 %3330
        %3332 = vadd.xlane.f32.xlu0 %v1650
        %v3333 = vpop.xlane.xlu0 %3332
        %v3334 = vmul.f32 %v3319, 0.015625
        %v3335 = vmul.f32 %v3321, 0.015625
        %v3336 = vmul.f32 %v3323, 0.015625
        %v3337 = vmul.f32 %v3325, 0.015625
        %v3338 = vmul.f32 %v3327, 0.015625
        %v3339 = vmul.f32 %v3329, 0.015625
        %v3340 = vmul.f32 %v3331, 0.015625
        %v3341 = vmul.f32 %v3333, 0.015625
        %v3342 = vsub.f32 %v1643, %v3334
        %v3343 = vsub.f32 %v1644, %v3335
        %v3344 = vsub.f32 %v1645, %v3336
        %v3345 = vsub.f32 %v1646, %v3337
        %v3346 = vsub.f32 %v1647, %v3338
        %v3347 = vsub.f32 %v1648, %v3339
        %v3348 = vsub.f32 %v1649, %v3340
        %v3349 = vsub.f32 %v1650, %v3341
        %v3350 = vmul.f32 %v3342, %v1279
        %v3351 = vmul.f32 %v3343, %v1279
        %v3352 = vmul.f32 %v3344, %v1279
        %v3353 = vmul.f32 %v3345, %v1279
        %v3354 = vmul.f32 %v3346, %v1279
        %v3355 = vmul.f32 %v3347, %v1279
        %v3356 = vmul.f32 %v3348, %v1279
        %v3357 = vmul.f32 %v3349, %v1279
        %v3358 = vmul.f32 %v3350, %v3350
        %v3359 = vmul.f32 %v3351, %v3351
        %v3360 = vmul.f32 %v3352, %v3352
        %v3361 = vmul.f32 %v3353, %v3353
        %v3362 = vmul.f32 %v3354, %v3354
        %v3363 = vmul.f32 %v3355, %v3355
        %v3364 = vmul.f32 %v3356, %v3356
        %v3365 = vmul.f32 %v3357, %v3357
        %3366 = vadd.xlane.f32.xlu0 %v3358
        %v3367 = vpop.xlane.xlu0 %3366
        %3368 = vadd.xlane.f32.xlu0 %v3359
        %v3369 = vpop.xlane.xlu0 %3368
        %3370 = vadd.xlane.f32.xlu0 %v3360
        %v3371 = vpop.xlane.xlu0 %3370
        %3372 = vadd.xlane.f32.xlu0 %v3361
        %v3373 = vpop.xlane.xlu0 %3372
        %3374 = vadd.xlane.f32.xlu0 %v3362
        %v3375 = vpop.xlane.xlu0 %3374
        %3376 = vadd.xlane.f32.xlu0 %v3363
        %v3377 = vpop.xlane.xlu0 %3376
        %3378 = vadd.xlane.f32.xlu0 %v3364
        %v3379 = vpop.xlane.xlu0 %3378
        %3380 = vadd.xlane.f32.xlu0 %v3365
        %v3381 = vpop.xlane.xlu0 %3380
        %v3382 = vmul.f32 %v3367, 0.015625
        %v3383 = vmul.f32 %v3369, 0.015625
        %v3384 = vmul.f32 %v3371, 0.015625
        %v3385 = vmul.f32 %v3373, 0.015625
        %v3386 = vmul.f32 %v3375, 0.015625
        %v3387 = vmul.f32 %v3377, 0.015625
        %v3388 = vmul.f32 %v3379, 0.015625
        %v3389 = vmul.f32 %v3381, 0.015625
        %v3390 = vadd.f32 %v3382, 1e-06
        %v3391 = vadd.f32 %v3383, 1e-06
        %v3392 = vadd.f32 %v3384, 1e-06
        %v3393 = vadd.f32 %v3385, 1e-06
        %v3394 = vadd.f32 %v3386, 1e-06
        %v3395 = vadd.f32 %v3387, 1e-06
        %v3396 = vadd.f32 %v3388, 1e-06
        %v3397 = vadd.f32 %v3389, 1e-06
        %v3398 = vrsqrt.pop %v3390
        %v3399 = vrsqrt.pop %v3391
        %v3400 = vrsqrt.pop %v3392
        %v3401 = vrsqrt.pop %v3393
        %v3402 = vrsqrt.pop %v3394
        %v3403 = vrsqrt.pop %v3395
        %v3404 = vrsqrt.pop %v3396
        %v3405 = vrsqrt.pop %v3397
        %v3406 = vmul.f32 %v3350, %v3398
        %v3407 = vmul.f32 %v3351, %v3399
        %v3408 = vmul.f32 %v3352, %v3400
        %v3409 = vmul.f32 %v3353, %v3401
        %v3410 = vmul.f32 %v3354, %v3402
        %v3411 = vmul.f32 %v3355, %v3403
        %v3412 = vmul.f32 %v3356, %v3404
        %v3413 = vmul.f32 %v3357, %v3405
        %v3415 = vlaneseq
        %v3416 = vshrl.u32 %v3415, 7
        %v3417 = vsub.s32 0, %v3416
        %v3418 = vrot.slane %v3316, %v3417
        %v3420 = vmul.f32 %v3406, %v3418
        %v3421 = vmul.f32 %v3407, %v3418
        %v3422 = vmul.f32 %v3408, %v3418
        %v3423 = vmul.f32 %v3409, %v3418
        %v3424 = vmul.f32 %v3410, %v3418
        %v3425 = vmul.f32 %v3411, %v3418
        %v3426 = vmul.f32 %v3412, %v3418
        %v3427 = vmul.f32 %v3413, %v3418
        %v3429 = vlaneseq
        %v3430 = vshrl.u32 %v3429, 7
        %v3431 = vsub.s32 0, %v3430
        %v3432 = vrot.slane %v3317, %v3431
        %v3434 = vadd.f32 %v3420, %v3432
        %v3435 = vadd.f32 %v3421, %v3432
        %v3436 = vadd.f32 %v3422, %v3432
        %v3437 = vadd.f32 %v3423, %v3432
        %v3438 = vadd.f32 %v3424, %v3432
        %v3439 = vadd.f32 %v3425, %v3432
        %v3440 = vadd.f32 %v3426, %v3432
        %v3441 = vadd.f32 %v3427, %v3432
        %v3442 = vpack.c.bf16 %v3435, %v3434
        %v3443 = vpack.c.bf16 %v3437, %v3436
        %v3444 = vpack.c.bf16 %v3439, %v3438
        %v3445 = vpack.c.bf16 %v3441, %v3440
        %v3446 = vld [vmem:[#allocation28] sm:$0xf]
        %v3447 = vld [vmem:[#allocation28 + $0x4] sm:$0xf]
        %v3448 = vld [vmem:[#allocation28 + $0x8] sm:$0xf]
        %v3449 = vld [vmem:[#allocation28 + $0xc] sm:$0xf]
        %v3450 = vld [vmem:[#allocation28 + $0x10] sm:$0xf]
        %v3451 = vld [vmem:[#allocation28 + $0x14] sm:$0xf]
        %v3452 = vld [vmem:[#allocation28 + $0x18] sm:$0xf]
        %v3453 = vld [vmem:[#allocation28 + $0x1c] sm:$0xf]
        %v3454 = vld [vmem:[#allocation28 + $0x20] sm:$0xf]
        %v3455 = vld [vmem:[#allocation28 + $0x24] sm:$0xf]
        %v3456 = vld [vmem:[#allocation28 + $0x28] sm:$0xf]
        %v3457 = vld [vmem:[#allocation28 + $0x2c] sm:$0xf]
        %v3458 = vld [vmem:[#allocation28 + $0x30] sm:$0xf]
        %v3459 = vld [vmem:[#allocation28 + $0x34] sm:$0xf]
        %v3460 = vld [vmem:[#allocation28 + $0x38] sm:$0xf]
        %v3461 = vld [vmem:[#allocation28 + $0x3c] sm:$0xf]
        %v3462 = vld [vmem:[#allocation30] sm:$0x1]
        %v3464 = vlaneseq
        %v3465 = vshrl.u32 %v3464, 7
        %v3466 = vsub.s32 0, %v3465
        %v3467 = vrot.slane %v3462, %v3466
        %v3485 = vunpack.c.l.b16 %v3446
        %v3486 = vunpack.c.l.b16 %v3447
        %v3487 = vunpack.c.l.b16 %v3448
        %v3488 = vunpack.c.l.b16 %v3449
        %v3489 = vunpack.c.l.b16 %v3450
        %v3490 = vunpack.c.l.b16 %v3451
        %v3491 = vunpack.c.l.b16 %v3452
        %v3492 = vunpack.c.l.b16 %v3453
        %v3493 = vunpack.c.l.b16 %v3454
        %v3494 = vunpack.c.l.b16 %v3455
        %v3495 = vunpack.c.l.b16 %v3456
        %v3496 = vunpack.c.l.b16 %v3457
        %v3497 = vunpack.c.l.b16 %v3458
        %v3498 = vunpack.c.l.b16 %v3459
        %v3499 = vunpack.c.l.b16 %v3460
        %v3500 = vunpack.c.l.b16 %v3461
        %v3501 = vpack.c.b16 %v3486, %v3485
        %v3502 = vpack.c.b16 %v3488, %v3487
        %v3503 = vpack.c.b16 %v3490, %v3489
        %v3504 = vpack.c.b16 %v3492, %v3491
        %v3505 = vpack.c.b16 %v3494, %v3493
        %v3506 = vpack.c.b16 %v3496, %v3495
        %v3507 = vpack.c.b16 %v3498, %v3497
        %v3508 = vpack.c.b16 %v3500, %v3499
        %3517 = vmatprep.subr.bf16.mxu0 0
        %3518 = vmatpush1.bf16.msra.mxu0 %v3508
        %3519 = vmatprep.subr.bf16.mxu0 0
        %3520 = vmatpush1.bf16.msra.mxu0 %v3507
        %3521 = vmatprep.subr.bf16.mxu0 0
        %3522 = vmatpush1.bf16.msra.mxu0 %v3506
        %3523 = vmatprep.subr.bf16.mxu0 0
        %3524 = vmatpush1.bf16.msra.mxu0 %v3505
        %3525 = vmatprep.subr.bf16.mxu0 0
        %3526 = vmatpush1.bf16.msra.mxu0 %v3504
        %3527 = vmatprep.subr.bf16.mxu0 0
        %3528 = vmatpush1.bf16.msra.mxu0 %v3503
        %3529 = vmatprep.subr.bf16.mxu0 0
        %3530 = vmatpush1.bf16.msra.mxu0 %v3502
        %3531 = vmatprep.subr.bf16.mxu0 0
        %3532 = vmatpush1.bf16.msra.mxu0 %v3501
        %3533 = vmatprep.subr.bf16.mxu0 0
        %3534 = vmatpush2.bf16.msra.mxu0 0
        %3535 = vmatprep.subr.bf16.mxu0 0
        %3536 = vmatpush2.bf16.msra.mxu0 0
        %3537 = vmatprep.subr.bf16.mxu0 0
        %3538 = vmatpush2.bf16.msra.mxu0 0
        %3539 = vmatprep.subr.bf16.mxu0 0
        %3540 = vmatpush2.bf16.msra.mxu0 0
        %3541 = vmatprep.subr.bf16.mxu0 0
        %3542 = vmatpush2.bf16.msra.mxu0 0
        %3543 = vmatprep.subr.bf16.mxu0 0
        %3544 = vmatpush2.bf16.msra.mxu0 0
        %3545 = vmatprep.subr.bf16.mxu0 0
        %3546 = vmatpush2.bf16.msra.mxu0 0
        %3547 = vmatprep.subr.bf16.mxu0 0
        %3548 = vmatpush2.bf16.msra.mxu0 0
        %3549 = vmatprep.mubr.bf16.mxu0 0
        %3550 = vmatmul.mubr.bf16.gmra.mxu0 %v3442
        %v3551 = vpop.f32.mrf.mxu0
        %v3552 = vadd.f32 %v3467, %v3551
        %v3553 = vpop.f32.mrf.mxu0
        %v3554 = vpop.f32.mrf.mxu0
        %v3555 = vadd.f32 %v3467, %v3554
        %v3556 = vpop.f32.mrf.mxu0
        %3557 = vmatprep.mubr.bf16.mxu0 0
        %3558 = vmatmul.mubr.bf16.gmra.mxu0 %v3443
        %v3559 = vpop.f32.mrf.mxu0
        %v3560 = vadd.f32 %v3467, %v3559
        %v3561 = vpop.f32.mrf.mxu0
        %v3562 = vpop.f32.mrf.mxu0
        %v3563 = vadd.f32 %v3467, %v3562
        %v3564 = vpop.f32.mrf.mxu0
        %3565 = vmatprep.mubr.bf16.mxu0 0
        %3566 = vmatmul.mubr.bf16.gmra.mxu0 %v3444
        %v3567 = vpop.f32.mrf.mxu0
        %v3568 = vadd.f32 %v3467, %v3567
        %v3569 = vpop.f32.mrf.mxu0
        %v3570 = vpop.f32.mrf.mxu0
        %v3571 = vadd.f32 %v3467, %v3570
        %v3572 = vpop.f32.mrf.mxu0
        %3573 = vmatprep.mubr.bf16.mxu0 0
        %3574 = vmatmul.mubr.bf16.gmra.mxu0 %v3445
        %v3575 = vpop.f32.mrf.mxu0
        %v3576 = vadd.f32 %v3467, %v3575
        %v3577 = vpop.f32.mrf.mxu0
        %v3578 = vpop.f32.mrf.mxu0
        %v3579 = vadd.f32 %v3467, %v3578
        %v3580 = vpop.f32.mrf.mxu0
        %3581 = vdwg.mxu0
        %v3582 = vsub.f32 0.0, %v3552
        %v3583 = vsub.f32 0.0, %v3555
        %v3584 = vsub.f32 0.0, %v3560
        %v3585 = vsub.f32 0.0, %v3563
        %v3586 = vsub.f32 0.0, %v3568
        %v3587 = vsub.f32 0.0, %v3571
        %v3588 = vsub.f32 0.0, %v3576
        %v3589 = vsub.f32 0.0, %v3579
        %v3590 = vmul.f32 %v3582, 1.442695
        %v3591 = vpow.pop %v3590
        %v3592 = vmul.f32 %v3583, 1.442695
        %v3593 = vpow.pop %v3592
        %v3594 = vmul.f32 %v3584, 1.442695
        %v3595 = vpow.pop %v3594
        %v3596 = vmul.f32 %v3585, 1.442695
        %v3597 = vpow.pop %v3596
        %v3598 = vmul.f32 %v3586, 1.442695
        %v3599 = vpow.pop %v3598
        %v3600 = vmul.f32 %v3587, 1.442695
        %v3601 = vpow.pop %v3600
        %v3602 = vmul.f32 %v3588, 1.442695
        %v3603 = vpow.pop %v3602
        %v3604 = vmul.f32 %v3589, 1.442695
        %v3605 = vpow.pop %v3604
        %v3606 = vadd.f32 %v3591, 1.0
        %v3607 = vadd.f32 %v3593, 1.0
        %v3608 = vadd.f32 %v3595, 1.0
        %v3609 = vadd.f32 %v3597, 1.0
        %v3610 = vadd.f32 %v3599, 1.0
        %v3611 = vadd.f32 %v3601, 1.0
        %v3612 = vadd.f32 %v3603, 1.0
        %v3613 = vadd.f32 %v3605, 1.0
        %v3614 = vrcp.pop %v3606
        %v3615 = vmul.f32 %v3552, %v3614
        %v3616 = vrcp.pop %v3607
        %v3617 = vmul.f32 %v3555, %v3616
        %v3618 = vrcp.pop %v3608
        %v3619 = vmul.f32 %v3560, %v3618
        %v3620 = vrcp.pop %v3609
        %v3621 = vmul.f32 %v3563, %v3620
        %v3622 = vrcp.pop %v3610
        %v3623 = vmul.f32 %v3568, %v3622
        %v3624 = vrcp.pop %v3611
        %v3625 = vmul.f32 %v3571, %v3624
        %v3626 = vrcp.pop %v3612
        %v3627 = vmul.f32 %v3576, %v3626
        %v3628 = vrcp.pop %v3613
        %v3629 = vmul.f32 %v3579, %v3628
        %v3630 = vld [vmem:[#allocation31] sm:$0xf]
        %v3631 = vld [vmem:[#allocation31 + $0x4] sm:$0xf]
        %v3632 = vld [vmem:[#allocation31 + $0x8] sm:$0xf]
        %v3633 = vld [vmem:[#allocation31 + $0xc] sm:$0xf]
        %v3634 = vld [vmem:[#allocation31 + $0x10] sm:$0xf]
        %v3635 = vld [vmem:[#allocation31 + $0x14] sm:$0xf]
        %v3636 = vld [vmem:[#allocation34] sm:$0x1]
        %v3638 = vlaneseq
        %v3639 = vshrl.u32 %v3638, 7
        %v3640 = vsub.s32 0, %v3639
        %v3641 = vrot.slane %v3636, %v3640
        %v3649 = vunpack.c.l.b16 %v3630
        %v3650 = vunpack.c.l.b16 %v3631
        %v3651 = vunpack.c.l.b16 %v3632
        %v3652 = vunpack.c.l.b16 %v3633
        %v3653 = vunpack.c.l.b16 %v3634
        %v3654 = vunpack.c.l.b16 %v3635
        %v3655 = vpack.c.b16 %v3650, %v3649
        %v3656 = vpack.c.b16 %v3652, %v3651
        %v3657 = vpack.c.b16 %v3654, %v3653
        %3661 = vmatprep.subr.bf16.mxu0 0
        %3662 = vmatpush1.bf16.msra.mxu0 0
        %3663 = vmatprep.subr.bf16.mxu0 0
        %3664 = vmatpush1.bf16.msra.mxu0 0
        %3665 = vmatprep.subr.bf16.mxu0 0
        %3666 = vmatpush1.bf16.msra.mxu0 0
        %3667 = vmatprep.subr.bf16.mxu0 0
        %3668 = vmatpush1.bf16.msra.mxu0 0
        %3669 = vmatprep.subr.bf16.mxu0 0
        %3670 = vmatpush1.bf16.msra.mxu0 0
        %3671 = vmatprep.subr.bf16.mxu0 0
        %3672 = vmatpush1.bf16.msra.mxu0 %v3657
        %3673 = vmatprep.subr.bf16.mxu0 0
        %3674 = vmatpush1.bf16.msra.mxu0 %v3656
        %3675 = vmatprep.subr.bf16.mxu0 0
        %3676 = vmatpush1.bf16.msra.mxu0 %v3655
        %3677 = vmatprep.subr.bf16.mxu0 0
        %3678 = vmatpush2.bf16.msra.mxu0 0
        %3679 = vmatprep.subr.bf16.mxu0 0
        %3680 = vmatpush2.bf16.msra.mxu0 0
        %3681 = vmatprep.subr.bf16.mxu0 0
        %3682 = vmatpush2.bf16.msra.mxu0 0
        %3683 = vmatprep.subr.bf16.mxu0 0
        %3684 = vmatpush2.bf16.msra.mxu0 0
        %3685 = vmatprep.subr.bf16.mxu0 0
        %3686 = vmatpush2.bf16.msra.mxu0 0
        %3687 = vmatprep.subr.bf16.mxu0 0
        %3688 = vmatpush2.bf16.msra.mxu0 0
        %3689 = vmatprep.subr.bf16.mxu0 0
        %3690 = vmatpush2.bf16.msra.mxu0 0
        %3691 = vmatprep.subr.bf16.mxu0 0
        %3692 = vmatpush2.bf16.msra.mxu0 0
        %3693 = vmatprep.mubr.bf16.mxu0 0
        %3694 = vmatmul.mubr.bf16.gmra.mxu0 %v1325
        %v3695 = vpop.f32.mrf.mxu0
        %v3696 = vadd.f32 %v3641, %v3695
        %v3697 = vpop.f32.mrf.mxu0
        %v3698 = vpop.f32.mrf.mxu0
        %v3699 = vadd.f32 %v3641, %v3698
        %v3700 = vpop.f32.mrf.mxu0
        %3701 = vmatprep.mubr.bf16.mxu0 0
        %3702 = vmatmul.mubr.bf16.gmra.mxu0 %v1328
        %v3703 = vpop.f32.mrf.mxu0
        %v3704 = vadd.f32 %v3641, %v3703
        %v3705 = vpop.f32.mrf.mxu0
        %v3706 = vpop.f32.mrf.mxu0
        %v3707 = vadd.f32 %v3641, %v3706
        %v3708 = vpop.f32.mrf.mxu0
        %3709 = vmatprep.mubr.bf16.mxu0 0
        %3710 = vmatmul.mubr.bf16.gmra.mxu0 %v1331
        %v3711 = vpop.f32.mrf.mxu0
        %v3712 = vadd.f32 %v3641, %v3711
        %v3713 = vpop.f32.mrf.mxu0
        %v3714 = vpop.f32.mrf.mxu0
        %v3715 = vadd.f32 %v3641, %v3714
        %v3716 = vpop.f32.mrf.mxu0
        %3717 = vmatprep.mubr.bf16.mxu0 0
        %3718 = vmatmul.mubr.bf16.gmra.mxu0 %v1334
        %v3719 = vpop.f32.mrf.mxu0
        %v3720 = vadd.f32 %v3641, %v3719
        %v3721 = vpop.f32.mrf.mxu0
        %v3722 = vpop.f32.mrf.mxu0
        %v3723 = vadd.f32 %v3641, %v3722
        %v3724 = vpop.f32.mrf.mxu0
        %3725 = vdwg.mxu0
        %v3726 = vpack.c.bf16 %v3617, %v3615
        %v3727 = vpack.c.bf16 %v3621, %v3619
        %v3728 = vpack.c.bf16 %v3625, %v3623
        %v3729 = vpack.c.bf16 %v3629, %v3627
        %v3730 = vld [vmem:[#allocation33] sm:$0xf]
        %v3731 = vld [vmem:[#allocation33 + $0x4] sm:$0xf]
        %v3732 = vld [vmem:[#allocation33 + $0x8] sm:$0xf]
        %v3733 = vld [vmem:[#allocation33 + $0xc] sm:$0xf]
        %v3734 = vld [vmem:[#allocation33 + $0x10] sm:$0xf]
        %v3735 = vld [vmem:[#allocation33 + $0x14] sm:$0xf]
        %v3736 = vld [vmem:[#allocation33 + $0x18] sm:$0xf]
        %v3737 = vld [vmem:[#allocation33 + $0x1c] sm:$0xf]
        %v3738 = vld [vmem:[#allocation33 + $0x20] sm:$0xf]
        %v3739 = vld [vmem:[#allocation33 + $0x24] sm:$0xf]
        %v3740 = vld [vmem:[#allocation33 + $0x28] sm:$0xf]
        %v3741 = vld [vmem:[#allocation33 + $0x2c] sm:$0xf]
        %v3742 = vld [vmem:[#allocation33 + $0x30] sm:$0xf]
        %v3743 = vld [vmem:[#allocation33 + $0x34] sm:$0xf]
        %v3744 = vld [vmem:[#allocation33 + $0x38] sm:$0xf]
        %v3745 = vld [vmem:[#allocation33 + $0x3c] sm:$0xf]
        %v3762 = vunpack.c.l.b16 %v3730
        %v3763 = vunpack.c.l.b16 %v3731
        %v3764 = vunpack.c.l.b16 %v3732
        %v3765 = vunpack.c.l.b16 %v3733
        %v3766 = vunpack.c.l.b16 %v3734
        %v3767 = vunpack.c.l.b16 %v3735
        %v3768 = vunpack.c.l.b16 %v3736
        %v3769 = vunpack.c.l.b16 %v3737
        %v3770 = vunpack.c.l.b16 %v3738
        %v3771 = vunpack.c.l.b16 %v3739
        %v3772 = vunpack.c.l.b16 %v3740
        %v3773 = vunpack.c.l.b16 %v3741
        %v3774 = vunpack.c.l.b16 %v3742
        %v3775 = vunpack.c.l.b16 %v3743
        %v3776 = vunpack.c.l.b16 %v3744
        %v3777 = vunpack.c.l.b16 %v3745
        %v3778 = vpack.c.b16 %v3763, %v3762
        %v3779 = vpack.c.b16 %v3765, %v3764
        %v3780 = vpack.c.b16 %v3767, %v3766
        %v3781 = vpack.c.b16 %v3769, %v3768
        %v3782 = vpack.c.b16 %v3771, %v3770
        %v3783 = vpack.c.b16 %v3773, %v3772
        %v3784 = vpack.c.b16 %v3775, %v3774
        %v3785 = vpack.c.b16 %v3777, %v3776
        %3794 = vmatprep.subr.bf16.mxu0 0
        %3795 = vmatpush1.bf16.msra.mxu0 %v3785
        %3796 = vmatprep.subr.bf16.mxu0 0
        %3797 = vmatpush1.bf16.msra.mxu0 %v3784
        %3798 = vmatprep.subr.bf16.mxu0 0
        %3799 = vmatpush1.bf16.msra.mxu0 %v3783
        %3800 = vmatprep.subr.bf16.mxu0 0
        %3801 = vmatpush1.bf16.msra.mxu0 %v3782
        %3802 = vmatprep.subr.bf16.mxu0 0
        %3803 = vmatpush1.bf16.msra.mxu0 %v3781
        %3804 = vmatprep.subr.bf16.mxu0 0
        %3805 = vmatpush1.bf16.msra.mxu0 %v3780
        %3806 = vmatprep.subr.bf16.mxu0 0
        %3807 = vmatpush1.bf16.msra.mxu0 %v3779
        %3808 = vmatprep.subr.bf16.mxu0 0
        %3809 = vmatpush1.bf16.msra.mxu0 %v3778
        %3810 = vmatprep.subr.bf16.mxu0 0
        %3811 = vmatpush2.bf16.msra.mxu0 0
        %3812 = vmatprep.subr.bf16.mxu0 0
        %3813 = vmatpush2.bf16.msra.mxu0 0
        %3814 = vmatprep.subr.bf16.mxu0 0
        %3815 = vmatpush2.bf16.msra.mxu0 0
        %3816 = vmatprep.subr.bf16.mxu0 0
        %3817 = vmatpush2.bf16.msra.mxu0 0
        %3818 = vmatprep.subr.bf16.mxu0 0
        %3819 = vmatpush2.bf16.msra.mxu0 0
        %3820 = vmatprep.subr.bf16.mxu0 0
        %3821 = vmatpush2.bf16.msra.mxu0 0
        %3822 = vmatprep.subr.bf16.mxu0 0
        %3823 = vmatpush2.bf16.msra.mxu0 0
        %3824 = vmatprep.subr.bf16.mxu0 0
        %3825 = vmatpush2.bf16.msra.mxu0 0
        %3826 = vmatprep.mubr.bf16.mxu0 0
        %3827 = vmatmul.mubr.bf16.gmra.mxu0 %v3726
        %v3828 = vpop.f32.mrf.mxu0
        %v3829 = vadd.f32 0.0, %v3828
        %v3830 = vpop.f32.mrf.mxu0
        %v3831 = vpop.f32.mrf.mxu0
        %v3832 = vadd.f32 0.0, %v3831
        %v3833 = vpop.f32.mrf.mxu0
        %3834 = vmatprep.mubr.bf16.mxu0 0
        %3835 = vmatmul.mubr.bf16.gmra.mxu0 %v3727
        %v3836 = vpop.f32.mrf.mxu0
        %v3837 = vadd.f32 0.0, %v3836
        %v3838 = vpop.f32.mrf.mxu0
        %v3839 = vpop.f32.mrf.mxu0
        %v3840 = vadd.f32 0.0, %v3839
        %v3841 = vpop.f32.mrf.mxu0
        %3842 = vmatprep.mubr.bf16.mxu0 0
        %3843 = vmatmul.mubr.bf16.gmra.mxu0 %v3728
        %v3844 = vpop.f32.mrf.mxu0
        %v3845 = vadd.f32 0.0, %v3844
        %v3846 = vpop.f32.mrf.mxu0
        %v3847 = vpop.f32.mrf.mxu0
        %v3848 = vadd.f32 0.0, %v3847
        %v3849 = vpop.f32.mrf.mxu0
        %3850 = vmatprep.mubr.bf16.mxu0 0
        %3851 = vmatmul.mubr.bf16.gmra.mxu0 %v3729
        %v3852 = vpop.f32.mrf.mxu0
        %v3853 = vadd.f32 0.0, %v3852
        %v3854 = vpop.f32.mrf.mxu0
        %v3855 = vpop.f32.mrf.mxu0
        %v3856 = vadd.f32 0.0, %v3855
        %v3857 = vpop.f32.mrf.mxu0
        %3858 = vdwg.mxu0
        %s3859 = scalar_lea.vmem [#allocation33], 64
        %v3860 = vld [vmem:[%s3859] sm:$0xf]
        %v3861 = vld [vmem:[%s3859 + $0x4] sm:$0xf]
        %v3862 = vld [vmem:[%s3859 + $0x8] sm:$0xf]
        %v3863 = vld [vmem:[%s3859 + $0xc] sm:$0xf]
        %v3864 = vld [vmem:[%s3859 + $0x10] sm:$0xf]
        %v3865 = vld [vmem:[%s3859 + $0x14] sm:$0xf]
        %v3866 = vld [vmem:[%s3859 + $0x18] sm:$0xf]
        %v3867 = vld [vmem:[%s3859 + $0x1c] sm:$0xf]
        %v3868 = vld [vmem:[%s3859 + $0x20] sm:$0xf]
        %v3869 = vld [vmem:[%s3859 + $0x24] sm:$0xf]
        %v3870 = vld [vmem:[%s3859 + $0x28] sm:$0xf]
        %v3871 = vld [vmem:[%s3859 + $0x2c] sm:$0xf]
        %v3872 = vld [vmem:[%s3859 + $0x30] sm:$0xf]
        %v3873 = vld [vmem:[%s3859 + $0x34] sm:$0xf]
        %v3874 = vld [vmem:[%s3859 + $0x38] sm:$0xf]
        %v3875 = vld [vmem:[%s3859 + $0x3c] sm:$0xf]
        %v3892 = vunpack.c.l.b16 %v3860
        %v3893 = vunpack.c.l.b16 %v3861
        %v3894 = vunpack.c.l.b16 %v3862
        %v3895 = vunpack.c.l.b16 %v3863
        %v3896 = vunpack.c.l.b16 %v3864
        %v3897 = vunpack.c.l.b16 %v3865
        %v3898 = vunpack.c.l.b16 %v3866
        %v3899 = vunpack.c.l.b16 %v3867
        %v3900 = vunpack.c.l.b16 %v3868
        %v3901 = vunpack.c.l.b16 %v3869
        %v3902 = vunpack.c.l.b16 %v3870
        %v3903 = vunpack.c.l.b16 %v3871
        %v3904 = vunpack.c.l.b16 %v3872
        %v3905 = vunpack.c.l.b16 %v3873
        %v3906 = vunpack.c.l.b16 %v3874
        %v3907 = vunpack.c.l.b16 %v3875
        %v3908 = vpack.c.b16 %v3893, %v3892
        %v3909 = vpack.c.b16 %v3895, %v3894
        %v3910 = vpack.c.b16 %v3897, %v3896
        %v3911 = vpack.c.b16 %v3899, %v3898
        %v3912 = vpack.c.b16 %v3901, %v3900
        %v3913 = vpack.c.b16 %v3903, %v3902
        %v3914 = vpack.c.b16 %v3905, %v3904
        %v3915 = vpack.c.b16 %v3907, %v3906
        %3924 = vmatprep.subr.bf16.mxu0 0
        %3925 = vmatpush1.bf16.msra.mxu0 %v3915
        %3926 = vmatprep.subr.bf16.mxu0 0
        %3927 = vmatpush1.bf16.msra.mxu0 %v3914
        %3928 = vmatprep.subr.bf16.mxu0 0
        %3929 = vmatpush1.bf16.msra.mxu0 %v3913
        %3930 = vmatprep.subr.bf16.mxu0 0
        %3931 = vmatpush1.bf16.msra.mxu0 %v3912
        %3932 = vmatprep.subr.bf16.mxu0 0
        %3933 = vmatpush1.bf16.msra.mxu0 %v3911
        %3934 = vmatprep.subr.bf16.mxu0 0
        %3935 = vmatpush1.bf16.msra.mxu0 %v3910
        %3936 = vmatprep.subr.bf16.mxu0 0
        %3937 = vmatpush1.bf16.msra.mxu0 %v3909
        %3938 = vmatprep.subr.bf16.mxu0 0
        %3939 = vmatpush1.bf16.msra.mxu0 %v3908
        %3940 = vmatprep.subr.bf16.mxu0 0
        %3941 = vmatpush2.bf16.msra.mxu0 0
        %3942 = vmatprep.subr.bf16.mxu0 0
        %3943 = vmatpush2.bf16.msra.mxu0 0
        %3944 = vmatprep.subr.bf16.mxu0 0
        %3945 = vmatpush2.bf16.msra.mxu0 0
        %3946 = vmatprep.subr.bf16.mxu0 0
        %3947 = vmatpush2.bf16.msra.mxu0 0
        %3948 = vmatprep.subr.bf16.mxu0 0
        %3949 = vmatpush2.bf16.msra.mxu0 0
        %3950 = vmatprep.subr.bf16.mxu0 0
        %3951 = vmatpush2.bf16.msra.mxu0 0
        %3952 = vmatprep.subr.bf16.mxu0 0
        %3953 = vmatpush2.bf16.msra.mxu0 0
        %3954 = vmatprep.subr.bf16.mxu0 0
        %3955 = vmatpush2.bf16.msra.mxu0 0
        %3956 = vmatprep.mubr.bf16.mxu0 0
        %3957 = vmatmul.mubr.bf16.gmra.mxu0 %v3726
        %v3958 = vpop.f32.mrf.mxu0
        %v3959 = vadd.f32 0.0, %v3958
        %v3960 = vpop.f32.mrf.mxu0
        %v3961 = vpop.f32.mrf.mxu0
        %v3962 = vadd.f32 0.0, %v3961
        %v3963 = vpop.f32.mrf.mxu0
        %3964 = vmatprep.mubr.bf16.mxu0 0
        %3965 = vmatmul.mubr.bf16.gmra.mxu0 %v3727
        %v3966 = vpop.f32.mrf.mxu0
        %v3967 = vadd.f32 0.0, %v3966
        %v3968 = vpop.f32.mrf.mxu0
        %v3969 = vpop.f32.mrf.mxu0
        %v3970 = vadd.f32 0.0, %v3969
        %v3971 = vpop.f32.mrf.mxu0
        %3972 = vmatprep.mubr.bf16.mxu0 0
        %3973 = vmatmul.mubr.bf16.gmra.mxu0 %v3728
        %v3974 = vpop.f32.mrf.mxu0
        %v3975 = vadd.f32 0.0, %v3974
        %v3976 = vpop.f32.mrf.mxu0
        %v3977 = vpop.f32.mrf.mxu0
        %v3978 = vadd.f32 0.0, %v3977
        %v3979 = vpop.f32.mrf.mxu0
        %3980 = vmatprep.mubr.bf16.mxu0 0
        %3981 = vmatmul.mubr.bf16.gmra.mxu0 %v3729
        %v3982 = vpop.f32.mrf.mxu0
        %v3983 = vadd.f32 0.0, %v3982
        %v3984 = vpop.f32.mrf.mxu0
        %v3985 = vpop.f32.mrf.mxu0
        %v3986 = vadd.f32 0.0, %v3985
        %v3987 = vpop.f32.mrf.mxu0
        %3988 = vdwg.mxu0
        %s3989 = scalar_lea.vmem [#allocation33], 128
        %v3990 = vld [vmem:[%s3989] sm:$0xf]
        %v3991 = vld [vmem:[%s3989 + $0x4] sm:$0xf]
        %v3992 = vld [vmem:[%s3989 + $0x8] sm:$0xf]
        %v3993 = vld [vmem:[%s3989 + $0xc] sm:$0xf]
        %v3994 = vld [vmem:[%s3989 + $0x10] sm:$0xf]
        %v3995 = vld [vmem:[%s3989 + $0x14] sm:$0xf]
        %v3996 = vld [vmem:[%s3989 + $0x18] sm:$0xf]
        %v3997 = vld [vmem:[%s3989 + $0x1c] sm:$0xf]
        %v3998 = vld [vmem:[%s3989 + $0x20] sm:$0xf]
        %v3999 = vld [vmem:[%s3989 + $0x24] sm:$0xf]
        %v4000 = vld [vmem:[%s3989 + $0x28] sm:$0xf]
        %v4001 = vld [vmem:[%s3989 + $0x2c] sm:$0xf]
        %v4002 = vld [vmem:[%s3989 + $0x30] sm:$0xf]
        %v4003 = vld [vmem:[%s3989 + $0x34] sm:$0xf]
        %v4004 = vld [vmem:[%s3989 + $0x38] sm:$0xf]
        %v4005 = vld [vmem:[%s3989 + $0x3c] sm:$0xf]
        %v4022 = vunpack.c.l.b16 %v3990
        %v4023 = vunpack.c.l.b16 %v3991
        %v4024 = vunpack.c.l.b16 %v3992
        %v4025 = vunpack.c.l.b16 %v3993
        %v4026 = vunpack.c.l.b16 %v3994
        %v4027 = vunpack.c.l.b16 %v3995
        %v4028 = vunpack.c.l.b16 %v3996
        %v4029 = vunpack.c.l.b16 %v3997
        %v4030 = vunpack.c.l.b16 %v3998
        %v4031 = vunpack.c.l.b16 %v3999
        %v4032 = vunpack.c.l.b16 %v4000
        %v4033 = vunpack.c.l.b16 %v4001
        %v4034 = vunpack.c.l.b16 %v4002
        %v4035 = vunpack.c.l.b16 %v4003
        %v4036 = vunpack.c.l.b16 %v4004
        %v4037 = vunpack.c.l.b16 %v4005
        %v4038 = vpack.c.b16 %v4023, %v4022
        %v4039 = vpack.c.b16 %v4025, %v4024
        %v4040 = vpack.c.b16 %v4027, %v4026
        %v4041 = vpack.c.b16 %v4029, %v4028
        %v4042 = vpack.c.b16 %v4031, %v4030
        %v4043 = vpack.c.b16 %v4033, %v4032
        %v4044 = vpack.c.b16 %v4035, %v4034
        %v4045 = vpack.c.b16 %v4037, %v4036
        %4054 = vmatprep.subr.bf16.mxu0 0
        %4055 = vmatpush1.bf16.msra.mxu0 %v4045
        %4056 = vmatprep.subr.bf16.mxu0 0
        %4057 = vmatpush1.bf16.msra.mxu0 %v4044
        %4058 = vmatprep.subr.bf16.mxu0 0
        %4059 = vmatpush1.bf16.msra.mxu0 %v4043
        %4060 = vmatprep.subr.bf16.mxu0 0
        %4061 = vmatpush1.bf16.msra.mxu0 %v4042
        %4062 = vmatprep.subr.bf16.mxu0 0
        %4063 = vmatpush1.bf16.msra.mxu0 %v4041
        %4064 = vmatprep.subr.bf16.mxu0 0
        %4065 = vmatpush1.bf16.msra.mxu0 %v4040
        %4066 = vmatprep.subr.bf16.mxu0 0
        %4067 = vmatpush1.bf16.msra.mxu0 %v4039
        %4068 = vmatprep.subr.bf16.mxu0 0
        %4069 = vmatpush1.bf16.msra.mxu0 %v4038
        %4070 = vmatprep.subr.bf16.mxu0 0
        %4071 = vmatpush2.bf16.msra.mxu0 0
        %4072 = vmatprep.subr.bf16.mxu0 0
        %4073 = vmatpush2.bf16.msra.mxu0 0
        %4074 = vmatprep.subr.bf16.mxu0 0
        %4075 = vmatpush2.bf16.msra.mxu0 0
        %4076 = vmatprep.subr.bf16.mxu0 0
        %4077 = vmatpush2.bf16.msra.mxu0 0
        %4078 = vmatprep.subr.bf16.mxu0 0
        %4079 = vmatpush2.bf16.msra.mxu0 0
        %4080 = vmatprep.subr.bf16.mxu0 0
        %4081 = vmatpush2.bf16.msra.mxu0 0
        %4082 = vmatprep.subr.bf16.mxu0 0
        %4083 = vmatpush2.bf16.msra.mxu0 0
        %4084 = vmatprep.subr.bf16.mxu0 0
        %4085 = vmatpush2.bf16.msra.mxu0 0
        %4086 = vmatprep.mubr.bf16.mxu0 0
        %4087 = vmatmul.mubr.bf16.gmra.mxu0 %v3726
        %v4088 = vpop.f32.mrf.mxu0
        %v4089 = vadd.f32 0.0, %v4088
        %v4090 = vpop.f32.mrf.mxu0
        %v4091 = vpop.f32.mrf.mxu0
        %v4092 = vadd.f32 0.0, %v4091
        %v4093 = vpop.f32.mrf.mxu0
        %4094 = vmatprep.mubr.bf16.mxu0 0
        %4095 = vmatmul.mubr.bf16.gmra.mxu0 %v3727
        %v4096 = vpop.f32.mrf.mxu0
        %v4097 = vadd.f32 0.0, %v4096
        %v4098 = vpop.f32.mrf.mxu0
        %v4099 = vpop.f32.mrf.mxu0
        %v4100 = vadd.f32 0.0, %v4099
        %v4101 = vpop.f32.mrf.mxu0
        %4102 = vmatprep.mubr.bf16.mxu0 0
        %4103 = vmatmul.mubr.bf16.gmra.mxu0 %v3728
        %v4104 = vpop.f32.mrf.mxu0
        %v4105 = vadd.f32 0.0, %v4104
        %v4106 = vpop.f32.mrf.mxu0
        %v4107 = vpop.f32.mrf.mxu0
        %v4108 = vadd.f32 0.0, %v4107
        %v4109 = vpop.f32.mrf.mxu0
        %4110 = vmatprep.mubr.bf16.mxu0 0
        %4111 = vmatmul.mubr.bf16.gmra.mxu0 %v3729
        %v4112 = vpop.f32.mrf.mxu0
        %v4113 = vadd.f32 0.0, %v4112
        %v4114 = vpop.f32.mrf.mxu0
        %v4115 = vpop.f32.mrf.mxu0
        %v4116 = vadd.f32 0.0, %v4115
        %v4117 = vpop.f32.mrf.mxu0
        %4118 = vdwg.mxu0
        %vm4127 = vcmask 1040384
        %v4128 = vrot.slane %v3829, 7
        %v4129 = vrot.slane %v3832, 7
        %v4130 = vsel %vm4127, %v4128, %v4129
        %v4131 = vrot.slane %v3837, 7
        %v4132 = vrot.slane %v3840, 7
        %v4133 = vsel %vm4127, %v4131, %v4132
        %v4134 = vrot.slane %v3845, 7
        %v4135 = vrot.slane %v3848, 7
        %v4136 = vsel %vm4127, %v4134, %v4135
        %v4137 = vrot.slane %v3853, 7
        %v4138 = vrot.slane %v3856, 7
        %v4139 = vsel %vm4127, %v4137, %v4138
        %v4148 = vsel %vm4127, 0.0, %v4128
        %v4149 = vsel %vm4127, 0.0, %v4131
        %v4150 = vsel %vm4127, 0.0, %v4134
        %v4151 = vsel %vm4127, 0.0, %v4137
        %vm4160 = vcmask 1046528
        %v4161 = vrot.slane %v4089, 1
        %v4162 = vrot.slane %v4092, 1
        %v4163 = vsel %vm4160, %v4161, %v4162
        %v4164 = vrot.slane %v4097, 1
        %v4165 = vrot.slane %v4100, 1
        %v4166 = vsel %vm4160, %v4164, %v4165
        %v4167 = vrot.slane %v4105, 1
        %v4168 = vrot.slane %v4108, 1
        %v4169 = vsel %vm4160, %v4167, %v4168
        %v4170 = vrot.slane %v4113, 1
        %v4171 = vrot.slane %v4116, 1
        %v4172 = vsel %vm4160, %v4170, %v4171
        %v4181 = vsel %vm4160, %v4162, 0.0
        %v4182 = vsel %vm4160, %v4165, 0.0
        %v4183 = vsel %vm4160, %v4168, 0.0
        %v4184 = vsel %vm4160, %v4171, 0.0
        %v4185 = vadd.f32 %v4148, %v3959
        %v4186 = vadd.f32 %v4130, %v3962
        %v4187 = vadd.f32 %v4149, %v3967
        %v4188 = vadd.f32 %v4133, %v3970
        %v4189 = vadd.f32 %v4150, %v3975
        %v4190 = vadd.f32 %v4136, %v3978
        %v4191 = vadd.f32 %v4151, %v3983
        %v4192 = vadd.f32 %v4139, %v3986
        %v4193 = vadd.f32 %v4185, %v4163
        %v4194 = vadd.f32 %v4186, %v4181
        %v4195 = vadd.f32 %v4187, %v4166
        %v4196 = vadd.f32 %v4188, %v4182
        %v4197 = vadd.f32 %v4189, %v4169
        %v4198 = vadd.f32 %v4190, %v4183
        %v4199 = vadd.f32 %v4191, %v4172
        %v4200 = vadd.f32 %v4192, %v4184
        %v4201 = vadd.f32 %v3696, %v4193
        %v4202 = vadd.f32 %v3699, %v4194
        %v4203 = vadd.f32 %v3704, %v4195
        %v4204 = vadd.f32 %v3707, %v4196
        %v4205 = vadd.f32 %v3712, %v4197
        %v4206 = vadd.f32 %v3715, %v4198
        %v4207 = vadd.f32 %v3720, %v4199
        %v4208 = vadd.f32 %v3723, %v4200
        %v4209 = vsub.f32 0.0, %v4201
        %v4210 = vsub.f32 0.0, %v4202
        %v4211 = vsub.f32 0.0, %v4203
        %v4212 = vsub.f32 0.0, %v4204
        %v4213 = vsub.f32 0.0, %v4205
        %v4214 = vsub.f32 0.0, %v4206
        %v4215 = vsub.f32 0.0, %v4207
        %v4216 = vsub.f32 0.0, %v4208
        %v4217 = vmul.f32 %v4209, 1.442695
        %v4218 = vpow.pop %v4217
        %v4219 = vmul.f32 %v4210, 1.442695
        %v4220 = vpow.pop %v4219
        %v4221 = vmul.f32 %v4211, 1.442695
        %v4222 = vpow.pop %v4221
        %v4223 = vmul.f32 %v4212, 1.442695
        %v4224 = vpow.pop %v4223
        %v4225 = vmul.f32 %v4213, 1.442695
        %v4226 = vpow.pop %v4225
        %v4227 = vmul.f32 %v4214, 1.442695
        %v4228 = vpow.pop %v4227
        %v4229 = vmul.f32 %v4215, 1.442695
        %v4230 = vpow.pop %v4229
        %v4231 = vmul.f32 %v4216, 1.442695
        %v4232 = vpow.pop %v4231
        %v4233 = vadd.f32 %v4218, 1.0
        %v4234 = vadd.f32 %v4220, 1.0
        %v4235 = vadd.f32 %v4222, 1.0
        %v4236 = vadd.f32 %v4224, 1.0
        %v4237 = vadd.f32 %v4226, 1.0
        %v4238 = vadd.f32 %v4228, 1.0
        %v4239 = vadd.f32 %v4230, 1.0
        %v4240 = vadd.f32 %v4232, 1.0
        %v4241 = vrcp.pop %v4233
        %v4242 = vmul.f32 %v4201, %v4241
        %v4243 = vrcp.pop %v4234
        %v4244 = vmul.f32 %v4202, %v4243
        %v4245 = vrcp.pop %v4235
        %v4246 = vmul.f32 %v4203, %v4245
        %v4247 = vrcp.pop %v4236
        %v4248 = vmul.f32 %v4204, %v4247
        %v4249 = vrcp.pop %v4237
        %v4250 = vmul.f32 %v4205, %v4249
        %v4251 = vrcp.pop %v4238
        %v4252 = vmul.f32 %v4206, %v4251
        %v4253 = vrcp.pop %v4239
        %v4254 = vmul.f32 %v4207, %v4253
        %v4255 = vrcp.pop %v4240
        %v4256 = vmul.f32 %v4208, %v4255
        %v4257 = vpack.c.bf16 %v4244, %v4242
        %v4258 = vpack.c.bf16 %v4248, %v4246
        %v4259 = vpack.c.bf16 %v4252, %v4250
        %v4260 = vpack.c.bf16 %v4256, %v4254
        %v4261 = vld [vmem:[#allocation36] sm:$0xf]
        %v4262 = vld [vmem:[#allocation36 + $0x4] sm:$0xf]
        %v4263 = vld [vmem:[#allocation36 + $0x8] sm:$0xf]
        %v4264 = vld [vmem:[#allocation36 + $0xc] sm:$0xf]
        %v4265 = vld [vmem:[#allocation36 + $0x10] sm:$0xf]
        %v4266 = vld [vmem:[#allocation36 + $0x14] sm:$0xf]
        %v4267 = vld [vmem:[#allocation36 + $0x18] sm:$0xf]
        %v4268 = vld [vmem:[#allocation36 + $0x1c] sm:$0xf]
        %v4269 = vld [vmem:[#allocation36 + $0x20] sm:$0xf]
        %v4270 = vld [vmem:[#allocation36 + $0x24] sm:$0xf]
        %v4271 = vld [vmem:[#allocation36 + $0x28] sm:$0xf]
        %v4272 = vld [vmem:[#allocation36 + $0x2c] sm:$0xf]
        %v4273 = vld [vmem:[#allocation36 + $0x30] sm:$0xf]
        %v4274 = vld [vmem:[#allocation36 + $0x34] sm:$0xf]
        %v4275 = vld [vmem:[#allocation36 + $0x38] sm:$0xf]
        %v4276 = vld [vmem:[#allocation36 + $0x3c] sm:$0xf]
        %v4277 = vld [vmem:[#allocation37] sm:$0x1]
        %v4279 = vlaneseq
        %v4280 = vshrl.u32 %v4279, 7
        %v4281 = vsub.s32 0, %v4280
        %v4282 = vrot.slane %v4277, %v4281
        %v4300 = vunpack.c.l.b16 %v4261
        %v4301 = vunpack.c.l.b16 %v4262
        %v4302 = vunpack.c.l.b16 %v4263
        %v4303 = vunpack.c.l.b16 %v4264
        %v4304 = vunpack.c.l.b16 %v4265
        %v4305 = vunpack.c.l.b16 %v4266
        %v4306 = vunpack.c.l.b16 %v4267
        %v4307 = vunpack.c.l.b16 %v4268
        %v4308 = vunpack.c.l.b16 %v4269
        %v4309 = vunpack.c.l.b16 %v4270
        %v4310 = vunpack.c.l.b16 %v4271
        %v4311 = vunpack.c.l.b16 %v4272
        %v4312 = vunpack.c.l.b16 %v4273
        %v4313 = vunpack.c.l.b16 %v4274
        %v4314 = vunpack.c.l.b16 %v4275
        %v4315 = vunpack.c.l.b16 %v4276
        %v4316 = vpack.c.b16 %v4301, %v4300
        %v4317 = vpack.c.b16 %v4303, %v4302
        %v4318 = vpack.c.b16 %v4305, %v4304
        %v4319 = vpack.c.b16 %v4307, %v4306
        %v4320 = vpack.c.b16 %v4309, %v4308
        %v4321 = vpack.c.b16 %v4311, %v4310
        %v4322 = vpack.c.b16 %v4313, %v4312
        %v4323 = vpack.c.b16 %v4315, %v4314
        %4332 = vmatprep.subr.bf16.mxu0 0
        %4333 = vmatpush1.bf16.msra.mxu0 %v4323
        %4334 = vmatprep.subr.bf16.mxu0 0
        %4335 = vmatpush1.bf16.msra.mxu0 %v4322
        %4336 = vmatprep.subr.bf16.mxu0 0
        %4337 = vmatpush1.bf16.msra.mxu0 %v4321
        %4338 = vmatprep.subr.bf16.mxu0 0
        %4339 = vmatpush1.bf16.msra.mxu0 %v4320
        %4340 = vmatprep.subr.bf16.mxu0 0
        %4341 = vmatpush1.bf16.msra.mxu0 %v4319
        %4342 = vmatprep.subr.bf16.mxu0 0
        %4343 = vmatpush1.bf16.msra.mxu0 %v4318
        %4344 = vmatprep.subr.bf16.mxu0 0
        %4345 = vmatpush1.bf16.msra.mxu0 %v4317
        %4346 = vmatprep.subr.bf16.mxu0 0
        %4347 = vmatpush1.bf16.msra.mxu0 %v4316
        %4348 = vmatprep.subr.bf16.mxu0 0
        %4349 = vmatpush2.bf16.msra.mxu0 0
        %4350 = vmatprep.subr.bf16.mxu0 0
        %4351 = vmatpush2.bf16.msra.mxu0 0
        %4352 = vmatprep.subr.bf16.mxu0 0
        %4353 = vmatpush2.bf16.msra.mxu0 0
        %4354 = vmatprep.subr.bf16.mxu0 0
        %4355 = vmatpush2.bf16.msra.mxu0 0
        %4356 = vmatprep.subr.bf16.mxu0 0
        %4357 = vmatpush2.bf16.msra.mxu0 0
        %4358 = vmatprep.subr.bf16.mxu0 0
        %4359 = vmatpush2.bf16.msra.mxu0 0
        %4360 = vmatprep.subr.bf16.mxu0 0
        %4361 = vmatpush2.bf16.msra.mxu0 0
        %4362 = vmatprep.subr.bf16.mxu0 0
        %4363 = vmatpush2.bf16.msra.mxu0 0
        %4364 = vmatprep.mubr.bf16.mxu0 0
        %4365 = vmatmul.mubr.bf16.gmra.mxu0 %v4257
        %v4366 = vpop.f32.mrf.mxu0
        %v4367 = vadd.f32 %v4282, %v4366
        %v4368 = vpop.f32.mrf.mxu0
        %v4369 = vpop.f32.mrf.mxu0
        %v4370 = vadd.f32 %v4282, %v4369
        %v4371 = vpop.f32.mrf.mxu0
        %4372 = vmatprep.mubr.bf16.mxu0 0
        %4373 = vmatmul.mubr.bf16.gmra.mxu0 %v4258
        %v4374 = vpop.f32.mrf.mxu0
        %v4375 = vadd.f32 %v4282, %v4374
        %v4376 = vpop.f32.mrf.mxu0
        %v4377 = vpop.f32.mrf.mxu0
        %v4378 = vadd.f32 %v4282, %v4377
        %v4379 = vpop.f32.mrf.mxu0
        %4380 = vmatprep.mubr.bf16.mxu0 0
        %4381 = vmatmul.mubr.bf16.gmra.mxu0 %v4259
        %v4382 = vpop.f32.mrf.mxu0
        %v4383 = vadd.f32 %v4282, %v4382
        %v4384 = vpop.f32.mrf.mxu0
        %v4385 = vpop.f32.mrf.mxu0
        %v4386 = vadd.f32 %v4282, %v4385
        %v4387 = vpop.f32.mrf.mxu0
        %4388 = vmatprep.mubr.bf16.mxu0 0
        %4389 = vmatmul.mubr.bf16.gmra.mxu0 %v4260
        %v4390 = vpop.f32.mrf.mxu0
        %v4391 = vadd.f32 %v4282, %v4390
        %v4392 = vpop.f32.mrf.mxu0
        %v4393 = vpop.f32.mrf.mxu0
        %v4394 = vadd.f32 %v4282, %v4393
        %v4395 = vpop.f32.mrf.mxu0
        %4396 = vdwg.mxu0
        %v4397 = vsub.f32 0.0, %v4367
        %v4398 = vsub.f32 0.0, %v4370
        %v4399 = vsub.f32 0.0, %v4375
        %v4400 = vsub.f32 0.0, %v4378
        %v4401 = vsub.f32 0.0, %v4383
        %v4402 = vsub.f32 0.0, %v4386
        %v4403 = vsub.f32 0.0, %v4391
        %v4404 = vsub.f32 0.0, %v4394
        %v4405 = vmul.f32 %v4397, 1.442695
        %v4406 = vpow.pop %v4405
        %v4407 = vmul.f32 %v4398, 1.442695
        %v4408 = vpow.pop %v4407
        %v4409 = vmul.f32 %v4399, 1.442695
        %v4410 = vpow.pop %v4409
        %v4411 = vmul.f32 %v4400, 1.442695
        %v4412 = vpow.pop %v4411
        %v4413 = vmul.f32 %v4401, 1.442695
        %v4414 = vpow.pop %v4413
        %v4415 = vmul.f32 %v4402, 1.442695
        %v4416 = vpow.pop %v4415
        %v4417 = vmul.f32 %v4403, 1.442695
        %v4418 = vpow.pop %v4417
        %v4419 = vmul.f32 %v4404, 1.442695
        %v4420 = vpow.pop %v4419
        %v4421 = vadd.f32 %v4406, 1.0
        %v4422 = vadd.f32 %v4408, 1.0
        %v4423 = vadd.f32 %v4410, 1.0
        %v4424 = vadd.f32 %v4412, 1.0
        %v4425 = vadd.f32 %v4414, 1.0
        %v4426 = vadd.f32 %v4416, 1.0
        %v4427 = vadd.f32 %v4418, 1.0
        %v4428 = vadd.f32 %v4420, 1.0
        %v4429 = vrcp.pop %v4421
        %v4430 = vmul.f32 %v4367, %v4429
        %v4431 = vrcp.pop %v4422
        %v4432 = vmul.f32 %v4370, %v4431
        %v4433 = vrcp.pop %v4423
        %v4434 = vmul.f32 %v4375, %v4433
        %v4435 = vrcp.pop %v4424
        %v4436 = vmul.f32 %v4378, %v4435
        %v4437 = vrcp.pop %v4425
        %v4438 = vmul.f32 %v4383, %v4437
        %v4439 = vrcp.pop %v4426
        %v4440 = vmul.f32 %v4386, %v4439
        %v4441 = vrcp.pop %v4427
        %v4442 = vmul.f32 %v4391, %v4441
        %v4443 = vrcp.pop %v4428
        %v4444 = vmul.f32 %v4394, %v4443
        %4445 = vst [vmem:[%s1272] sm:$0xff] %v4430
        %4446 = vst [vmem:[%s1272 + $0x8] sm:$0xff] %v4432
        %4447 = vst [vmem:[%s1272 + $0x10] sm:$0xff] %v4434
        %4448 = vst [vmem:[%s1272 + $0x18] sm:$0xff] %v4436
        %4449 = vst [vmem:[%s1272 + $0x20] sm:$0xff] %v4438
        %4450 = vst [vmem:[%s1272 + $0x28] sm:$0xff] %v4440
        %4451 = vst [vmem:[%s1272 + $0x30] sm:$0xff] %v4442
        %4452 = vst [vmem:[%s1272 + $0x38] sm:$0xff] %v4444
        %s4453 = smul.u32 4, %s85
        %p4454 = scmp.lt.s32.totalorder %s4453, 7
        %s4455 = scalar_select %p4454, %s4453, 7
        %s4456 = smul.addr %s4455, 2
        %s4457 = smul.addr %s4456, 8
        %s4458 = scalar_lea.vmem %s61, %s4457
        // Predicated region
        $region251: #{encoder_with_svtr.1} parent=139 // pred_check
          %p4459 = pneg %p738
        $region252: #{encoder_with_svtr.1} parent=139 // pred_check_branch
          %4461 = sbr.rel (%p4459) target = $region254
        $region253: #{encoder_with_svtr.1} parent=139 // pred_region
          %s4462 = smul.u32 4, %s85
        $region254: #{encoder_with_svtr.1} parent=139 // pred_fallthru
          _
      $region140: #{encoder_with_svtr.1} parent=5 // pred_fallthru
        _
      %p4463 = scmp.le.s32.totalorder 2, %s80
      // Predicated region
      $region255: #{encoder_with_svtr.1} parent=5 // pred_check
        %p4464 = pneg %p4463
      $region256: #{encoder_with_svtr.1} parent=5 // pred_check_branch
        %4466 = sbr.rel (%p4464) target = $region258
      $region257: #{encoder_with_svtr.1} parent=5 // pred_region
        %s4467 = ssub.s32 %s80, 2
        // Predicated region
        $region259: #{encoder_with_svtr.1} parent=257 // pred_check
          %p4468 = pneg %p744
        $region260: #{encoder_with_svtr.1} parent=257 // pred_check_branch
          %4470 = sbr.rel (%p4468) target = $region262
        $region261: #{encoder_with_svtr.1} parent=257 // pred_region
          %s4471 = smul.u32 4, %s86
          %p4472 = scmp.lt.s32.totalorder %s4471, 7
          %s4473 = scalar_select %p4472, %s4471, 7
          %s4474 = smul.addr %s4473, 2
          %s4475 = smul.addr %s4474, 8
          %s4476 = scalar_lea.vmem %s61, %s4475
        $region262: #{encoder_with_svtr.1} parent=257 // pred_fallthru
          _
      $region258: #{encoder_with_svtr.1} parent=5 // pred_fallthru
        _
    $region6: #{encoder_with_svtr.1} parent=1 // loop_footer
      %s84 = sadd.s32 1, %s80
    $region7: #{encoder_with_svtr.1} parent=1 // loop_footer_branch
      %79 = sbr.rel target = $region3
    $region8: #{encoder_with_svtr.1} parent=1 // loop_exit
      _
    %4477 = vsyncpa [#allocation3], 1
    %s4478 = scalar_lea.sflag [#allocation3], 1
    %4479 = vsyncpa %s4478, 1
    %4480 = vsyncpa [#allocation5], 1
    %4481 = vsyncpa [#allocation8], 1
    %4482 = vsyncpa [#allocation11], 1
    %4483 = vsyncpa [#allocation14], 1
    %4484 = vsyncpa [#allocation17], 1
    %4485 = vsyncpa [#allocation20], 1
    %4486 = vsyncpa [#allocation23], 1
    %4487 = vsyncpa [#allocation26], 1
    %4488 = vsyncpa [#allocation29], 1
    %4489 = vsyncpa [#allocation32], 1
    %4490 = vsyncpa [#allocation35], 1
    %4491 = vsyncpa [#allocation38], 1

</llo_original>
